<compile_context>
chip_gen: v5e
topology: v5e:2x2
jax: 0.10.0
libtpu: 0.0.40
codegen_flags: <defaults>
</compile_context>

<pallas_src>
import functools
import math

import jax
import jax.numpy as jnp
from jax import lax
from jax.experimental import pallas as pl
from jax.experimental.pallas import tpu as pltpu


# ----------------------------- Pallas kernel --------------------------------
def _transformer_kernel(e_ref, ab_ref, wqkv_ref, wp_ref,
                        w1_ref, b1_ref, w2_ref, b2_ref, g_ref, beta_ref,
                        o_ref, *, attn_size, ln_eps=1e-5, nrm_eps=1e-12):
    # One grid step == a (Bt, S, E) block of batch elements; full S kept
    # resident (needed for the dim=1 F.normalize).
    x = e_ref[...] + ab_ref[...]                       # (Bt, S, E) float32
    Bt, S, E = x.shape
    A = attn_size
    H = E // A
    M = Bt * S

    # leading-dim merge only (trailing (S, E) layout unchanged -> free reshape)
    xm = x.reshape(M, E).astype(jnp.bfloat16)

    # --- fused QKV projection: one lane-dense (M,E)@(E,3E) MXU matmul --------
    # (1/sqrt(E) already folded into the Q columns of wqkvT at init)
    qkv = jnp.dot(xm, wqkv_ref[...],
                  preferred_element_type=jnp.float32)  # (M, 3E)
    qkv = qkv.reshape(Bt, S, 3 * E)

    # --- per-head attention (small matmuls; <5% of FLOPs, kept simple) -------
    ctx_heads = []
    for h in range(H):                                  # H is static (Python loop)
        qh = qkv[:, :, h * A:(h + 1) * A].astype(jnp.bfloat16)              # (Bt,S,A)
        kh = qkv[:, :, E + h * A:E + (h + 1) * A].astype(jnp.bfloat16)
        vh = qkv[:, :, 2 * E + h * A:2 * E + (h + 1) * A].astype(jnp.bfloat16)

        s = lax.dot_general(qh, kh, (((2,), (2,)), ((0,), (0,))),
                            preferred_element_type=jnp.float32)             # (Bt,S,S)
        s = s - jnp.max(s, axis=-1, keepdims=True)
        p = jnp.exp(s)
        p = p * pl.reciprocal(jnp.sum(p, axis=-1, keepdims=True), approx=True)
        ctx_heads.append(
            lax.dot_general(p.astype(jnp.bfloat16), vh,
                            (((2,), (1,)), ((0,), (0,))),
                            preferred_element_type=jnp.float32))            # (Bt,S,A)
    ctx = jnp.concatenate(ctx_heads, axis=-1)           # (Bt, S, E) head-major

    # --- output projection: single matmul, full E contraction depth ----------
    attn = jnp.dot(ctx.reshape(M, E).astype(jnp.bfloat16), wp_ref[...],
                   preferred_element_type=jnp.float32)  # (M, E)

    # --- F.normalize (p=2, dim=1 of (B,S,E)) -> L2 over the sequence axis ----
    y1 = x + attn.reshape(Bt, S, E)
    nrm1 = jnp.maximum(jnp.sqrt(jnp.sum(y1 * y1, axis=1, keepdims=True)), nrm_eps)
    mh = y1 / nrm1                                      # (Bt, S, E)

    # --- FeedForward: LayerNorm(mh + relu((mh@W1.T+b1)@W2.T+b2)) -------------
    mh_m = mh.reshape(M, E)
    h1 = jnp.dot(mh_m.astype(jnp.bfloat16), w1_ref[...],
                 preferred_element_type=jnp.float32) + b1_ref[...]          # (M,4E)
    ff = jnp.dot(h1.astype(jnp.bfloat16), w2_ref[...],
                 preferred_element_type=jnp.float32) + b2_ref[...]          # (M,E)
    ff = jnp.maximum(ff, 0.0)
    z = mh_m + ff
    mu = jnp.mean(z, axis=-1, keepdims=True)
    var = jnp.mean((z - mu) * (z - mu), axis=-1, keepdims=True)
    ln = (z - mu) * lax.rsqrt(var + ln_eps) * g_ref[...] + beta_ref[...]

    # residual + F.normalize over the sequence axis again
    y2 = (mh_m + ln).reshape(Bt, S, E)
    nrm2 = jnp.maximum(jnp.sqrt(jnp.sum(y2 * y2, axis=1, keepdims=True)), nrm_eps)
    o_ref[...] = y2 / nrm2


# ------------------------------ wrapper --------------------------------------
def _pick_block_b(B, S, target_rows=128):
    """Largest divisor of B with Bt*S <= ~target_rows; keep >= 2 grid steps."""
    want = max(1, target_rows // max(S, 1))
    best = 1
    for d in range(1, B + 1):
        if B % d == 0 and d <= want:
            best = d
    if B // best < 2:                          # prefer >= 2 steps (v7x megacore)
        for d in range(best - 1, 0, -1):
            if B % d == 0 and B // d >= 2:
                best = d
                break
    return best


def transformer_forward(embedding, attn_bias, params):
    B, S, E = embedding.shape
    A = params["attn_size"]
    Bt = _pick_block_b(B, S)
    assert B % Bt == 0

    # Weights/biases: constant block index across the grid -> single-buffer them.
    def wspec(shape):
        return pl.BlockSpec(shape, lambda i: (0,) * len(shape),
                            pipeline_mode=pl.Buffered(1))

    act_spec = pl.BlockSpec((Bt, S, E), lambda i: (i, 0, 0))
    kernel = functools.partial(_transformer_kernel, attn_size=A)

    return pl.pallas_call(
        kernel,
        out_shape=jax.ShapeDtypeStruct((B, S, E), jnp.float32),
        grid=(B // Bt,),
        in_specs=[
            act_spec, act_spec,
            wspec((E, 3 * E)),                                      # fused Wq|Wk|Wv
            wspec((E, E)),                                          # Wproj.T
            wspec((E, 4 * E)), wspec((1, 4 * E)),                   # W1, b1
            wspec((4 * E, E)), wspec((1, E)),                       # W2, b2
            wspec((1, E)), wspec((1, E)),                           # LN gamma/beta
        ],
        out_specs=act_spec,
        compiler_params=pltpu.CompilerParams(
            dimension_semantics=("parallel",),
            # ample for bf16 weight residency + double-buffered (Bt,S,E)
            # activations at these sizes; re-derive / tile FFN for large E.
            vmem_limit_bytes=32 * 1024 * 1024,
        ),
    )(embedding, attn_bias,
      params["wqkvT"], params["wpT"],
      params["w1T"], params["b1"], params["w2T"], params["b2"],
      params["ln_g"], params["ln_b"])


# ---------------------- deterministic parameter init -------------------------
def init_params(key, E, A):
    H = E // A
    inv_scale = 1.0 / math.sqrt(E)               # dk = input.shape[-1] = E

    def linear_w(k, out_f, in_f):
        bound = 1.0 / math.sqrt(in_f)
        return jax.random.uniform(k, (out_f, in_f), jnp.float32, -bound, bound)

    def linear_b(k, out_f, in_f):
        bound = 1.0 / math.sqrt(in_f)
        return jax.random.uniform(k, (out_f,), jnp.float32, -bound, bound)

    keys = jax.random.split(key, 3 * H + 5)
    wq = [linear_w(keys[3 * h + 0], A, E) for h in range(H)]
    wk = [linear_w(keys[3 * h + 1], A, E) for h in range(H)]
    wv = [linear_w(keys[3 * h + 2], A, E) for h in range(H)]

    # head-major columns inside each third; score scale folded into Q columns
    wq_cat = jnp.concatenate([w.T for w in wq], axis=1) * inv_scale   # (E, E)
    wk_cat = jnp.concatenate([w.T for w in wk], axis=1)
    wv_cat = jnp.concatenate([w.T for w in wv], axis=1)
    wqkvT = jnp.concatenate([wq_cat, wk_cat, wv_cat], axis=1).astype(jnp.bfloat16)

    kp, k1, kb1, k2, kb2 = keys[3 * H:]
    wp = linear_w(kp, E, E)                                           # proj, no bias
    w1 = linear_w(k1, 4 * E, E)
    b1 = linear_b(kb1, 4 * E, E)
    w2 = linear_w(k2, E, 4 * E)
    b2 = linear_b(kb2, E, 4 * E)

    return dict(
        attn_size=A,
        wqkvT=wqkvT,
        wpT=wp.T.astype(jnp.bfloat16),
        w1T=w1.T.astype(jnp.bfloat16), b1=b1.reshape(1, -1),
        w2T=w2.T.astype(jnp.bfloat16), b2=b2.reshape(1, -1),
        ln_g=jnp.ones((1, E), jnp.float32),                           # LayerNorm defaults
        ln_b=jnp.zeros((1, E), jnp.float32),
    )


# --------------------------- pure-JAX reference -------------------------------
def reference_forward(embedding, attn_bias, p):
    B, S, E = embedding.shape
    A = p["attn_size"]
    H = E // A

    def normalize_dim1(t):   # F.normalize(t) on (B,S,E): L2 over dim=1 (S)
        n = jnp.sqrt(jnp.sum(t * t, axis=1, keepdims=True))
        return t / jnp.maximum(n, 1e-12)

    x = embedding + attn_bias
    xb = x.astype(jnp.bfloat16)
    qkv = jnp.einsum("bse,ef->bsf", xb, p["wqkvT"],
                     preferred_element_type=jnp.float32)              # (B,S,3E)
    q = qkv[..., 0:E].reshape(B, S, H, A)
    k = qkv[..., E:2 * E].reshape(B, S, H, A)
    v = qkv[..., 2 * E:3 * E].reshape(B, S, H, A)
    s = jnp.einsum("bqha,bkha->bhqk", q.astype(jnp.bfloat16), k.astype(jnp.bfloat16),
                   preferred_element_type=jnp.float32)                # scale folded in
    imp = jax.nn.softmax(s, axis=-1)
    ctx = jnp.einsum("bhqk,bkha->bqha", imp.astype(jnp.bfloat16), v.astype(jnp.bfloat16),
                     preferred_element_type=jnp.float32).reshape(B, S, E)
    attn = jnp.einsum("bse,ef->bsf", ctx.astype(jnp.bfloat16), p["wpT"],
                      preferred_element_type=jnp.float32)
    mh = normalize_dim1(x + attn)
    h1 = jnp.einsum("bse,ef->bsf", mh.astype(jnp.bfloat16), p["w1T"],
                    preferred_element_type=jnp.float32) + p["b1"][0]
    ff = jnp.maximum(jnp.einsum("bsf,fe->bse", h1.astype(jnp.bfloat16), p["w2T"],
                                preferred_element_type=jnp.float32) + p["b2"][0], 0.0)
    z = mh + ff
    mu = jnp.mean(z, axis=-1, keepdims=True)
    var = jnp.mean((z - mu) ** 2, axis=-1, keepdims=True)
    ln = (z - mu) / jnp.sqrt(var + 1e-5) * p["ln_g"][0] + p["ln_b"][0]
    return normalize_dim1(mh + ln)


# ---------------------------------- main --------------------------------------
if __name__ == "__main__":
    # lane-dense small test: E=128 (full vreg lane width), head dim 32, 4 heads;
    # B=16, S=16 -> Bt=8 per grid step (M=128 MXU rows), grid=(2,)
    B, S, E, A = 16, 16, 128, 32
    key = jax.random.PRNGKey(0)
    k_emb, k_bias, k_par = jax.random.split(key, 3)

    embedding = jax.random.normal(k_emb, (B, S, E), jnp.float32)
    attn_bias = 0.1 * jax.random.normal(k_bias, (B, S, E), jnp.float32)
    params = init_params(k_par, E, A)

    out = jax.block_until_ready(transformer_forward(embedding, attn_bias, params))
    ref = reference_forward(embedding, attn_bias, params)

    assert out.shape == (B, S, E)
    assert jnp.allclose(out, ref, rtol=2e-2, atol=2e-2), "mismatch vs JAX reference"

    print("KERNEL_OK")
</pallas_src>

<mosaic_0001>
module attributes {stable_mosaic.version = 11 : i64} {
  func.func @_transformer_kernel(%arg0: i32, %arg1: memref<8x16x128xf32, #tpu.memory_space<vmem>>, %arg2: memref<8x16x128xf32, #tpu.memory_space<vmem>>, %arg3: memref<128x384xbf16, #tpu.memory_space<vmem>>, %arg4: memref<128x128xbf16, #tpu.memory_space<vmem>>, %arg5: memref<128x512xbf16, #tpu.memory_space<vmem>>, %arg6: memref<1x512xf32, #tpu.memory_space<vmem>>, %arg7: memref<512x128xbf16, #tpu.memory_space<vmem>>, %arg8: memref<1x128xf32, #tpu.memory_space<vmem>>, %arg9: memref<1x128xf32, #tpu.memory_space<vmem>>, %arg10: memref<1x128xf32, #tpu.memory_space<vmem>>, %arg11: memref<8x16x128xf32, #tpu.memory_space<vmem>>) attributes {dimension_semantics = [#tpu.dimension_semantics<parallel>], iteration_bounds = array<i64: 2>, scalar_prefetch = 0 : i64, scratch_operands = 0 : i64, tpu.core_type = #tpu.core_type<tc>, window_params = [{transform_indices = @transform_0, window_bounds = array<i64: 8, 16, 128>}, {transform_indices = @transform_1, window_bounds = array<i64: 8, 16, 128>}, {pipeline_mode = #tpu.pipeline_mode<synchronous>, transform_indices = @transform_2, window_bounds = array<i64: 128, 384>}, {pipeline_mode = #tpu.pipeline_mode<synchronous>, transform_indices = @transform_3, window_bounds = array<i64: 128, 128>}, {pipeline_mode = #tpu.pipeline_mode<synchronous>, transform_indices = @transform_4, window_bounds = array<i64: 128, 512>}, {pipeline_mode = #tpu.pipeline_mode<synchronous>, transform_indices = @transform_5, window_bounds = array<i64: 1, 512>}, {pipeline_mode = #tpu.pipeline_mode<synchronous>, transform_indices = @transform_6, window_bounds = array<i64: 512, 128>}, {pipeline_mode = #tpu.pipeline_mode<synchronous>, transform_indices = @transform_7, window_bounds = array<i64: 1, 128>}, {pipeline_mode = #tpu.pipeline_mode<synchronous>, transform_indices = @transform_8, window_bounds = array<i64: 1, 128>}, {pipeline_mode = #tpu.pipeline_mode<synchronous>, transform_indices = @transform_9, window_bounds = array<i64: 1, 128>}, {transform_indices = @transform_10, window_bounds = array<i64: 8, 16, 128>}]} {
    %c0 = arith.constant 0 : index
    %c0_0 = arith.constant 0 : index
    %c0_1 = arith.constant 0 : index
    %0 = vector.load %arg1[%c0, %c0_0, %c0_1] : memref<8x16x128xf32, #tpu.memory_space<vmem>>, vector<8x16x128xf32>
    %c0_2 = arith.constant 0 : index
    %c0_3 = arith.constant 0 : index
    %c0_4 = arith.constant 0 : index
    %1 = vector.load %arg2[%c0_2, %c0_3, %c0_4] : memref<8x16x128xf32, #tpu.memory_space<vmem>>, vector<8x16x128xf32>
    %2 = arith.addf %0, %1 : vector<8x16x128xf32>
    %3 = vector.shape_cast %2 : vector<8x16x128xf32> to vector<128x128xf32>
    %4 = arith.truncf %3 : vector<128x128xf32> to vector<128x128xbf16>
    %c0_5 = arith.constant 0 : index
    %c0_6 = arith.constant 0 : index
    %5 = vector.load %arg3[%c0_5, %c0_6] : memref<128x384xbf16, #tpu.memory_space<vmem>>, vector<128x384xbf16>
    %cst = arith.constant dense<0.000000e+00> : vector<128x384xf32>
    %6 = tpu.matmul %4, %5, %cst {dimension_numbers = #tpu.dot_dimension_numbers<[1], [0], [0], [1], [0, 0, 1, 1], [], []>} : vector<128x128xbf16>, vector<128x384xbf16>, vector<128x384xf32> -> vector<128x384xf32>
    %7 = vector.shape_cast %6 : vector<128x384xf32> to vector<8x16x384xf32>
    %8 = vector.extract_strided_slice %7 {offsets = [0, 0, 0], sizes = [8, 16, 32], strides = [1, 1, 1]} : vector<8x16x384xf32> to vector<8x16x32xf32>
    %9 = arith.truncf %8 : vector<8x16x32xf32> to vector<8x16x32xbf16>
    %10 = vector.extract_strided_slice %7 {offsets = [0, 0, 128], sizes = [8, 16, 32], strides = [1, 1, 1]} : vector<8x16x384xf32> to vector<8x16x32xf32>
    %11 = arith.truncf %10 : vector<8x16x32xf32> to vector<8x16x32xbf16>
    %12 = vector.extract_strided_slice %7 {offsets = [0, 0, 256], sizes = [8, 16, 32], strides = [1, 1, 1]} : vector<8x16x384xf32> to vector<8x16x32xf32>
    %13 = arith.truncf %12 : vector<8x16x32xf32> to vector<8x16x32xbf16>
    %cst_7 = arith.constant dense<0.000000e+00> : vector<8x16x16xf32>
    %14 = tpu.matmul %9, %11, %cst_7 {dimension_numbers = #tpu.dot_dimension_numbers<[2], [2], [1], [1], [0, 0, 0, 1, 1, 1], [0], [0]>} : vector<8x16x32xbf16>, vector<8x16x32xbf16>, vector<8x16x16xf32> -> vector<8x16x16xf32>
    %cst_8 = arith.constant dense<0xFF800000> : vector<8x16xf32>
    %15 = vector.multi_reduction <maximumf>, %14, %cst_8 [2] : vector<8x16x16xf32> to vector<8x16xf32>
    %16 = vector.shape_cast %15 : vector<8x16xf32> to vector<8x16x1xf32>
    %17 = vector.broadcast %16 : vector<8x16x1xf32> to vector<8x16x16xf32>
    %18 = arith.subf %14, %17 : vector<8x16x16xf32>
    %19 = math.exp %18 : vector<8x16x16xf32>
    %cst_9 = arith.constant dense<0.000000e+00> : vector<8x16xf32>
    %20 = vector.multi_reduction <add>, %19, %cst_9 [2] : vector<8x16x16xf32> to vector<8x16xf32>
    %21 = vector.shape_cast %20 : vector<8x16xf32> to vector<8x16x1xf32>
    %22 = tpu.reciprocal %21 {approx = true} : vector<8x16x1xf32> -> vector<8x16x1xf32>
    %23 = vector.broadcast %22 : vector<8x16x1xf32> to vector<8x16x16xf32>
    %24 = arith.mulf %19, %23 : vector<8x16x16xf32>
    %25 = arith.truncf %24 : vector<8x16x16xf32> to vector<8x16x16xbf16>
    %cst_10 = arith.constant dense<0.000000e+00> : vector<8x16x32xf32>
    %26 = tpu.matmul %25, %13, %cst_10 {dimension_numbers = #tpu.dot_dimension_numbers<[2], [1], [1], [2], [0, 0, 0, 1, 1, 2], [0], [0]>} : vector<8x16x16xbf16>, vector<8x16x32xbf16>, vector<8x16x32xf32> -> vector<8x16x32xf32>
    %27 = vector.extract_strided_slice %7 {offsets = [0, 0, 32], sizes = [8, 16, 32], strides = [1, 1, 1]} : vector<8x16x384xf32> to vector<8x16x32xf32>
    %28 = arith.truncf %27 : vector<8x16x32xf32> to vector<8x16x32xbf16>
    %29 = vector.extract_strided_slice %7 {offsets = [0, 0, 160], sizes = [8, 16, 32], strides = [1, 1, 1]} : vector<8x16x384xf32> to vector<8x16x32xf32>
    %30 = arith.truncf %29 : vector<8x16x32xf32> to vector<8x16x32xbf16>
    %31 = vector.extract_strided_slice %7 {offsets = [0, 0, 288], sizes = [8, 16, 32], strides = [1, 1, 1]} : vector<8x16x384xf32> to vector<8x16x32xf32>
    %32 = arith.truncf %31 : vector<8x16x32xf32> to vector<8x16x32xbf16>
    %cst_11 = arith.constant dense<0.000000e+00> : vector<8x16x16xf32>
    %33 = tpu.matmul %28, %30, %cst_11 {dimension_numbers = #tpu.dot_dimension_numbers<[2], [2], [1], [1], [0, 0, 0, 1, 1, 1], [0], [0]>} : vector<8x16x32xbf16>, vector<8x16x32xbf16>, vector<8x16x16xf32> -> vector<8x16x16xf32>
    %cst_12 = arith.constant dense<0xFF800000> : vector<8x16xf32>
    %34 = vector.multi_reduction <maximumf>, %33, %cst_12 [2] : vector<8x16x16xf32> to vector<8x16xf32>
    %35 = vector.shape_cast %34 : vector<8x16xf32> to vector<8x16x1xf32>
    %36 = vector.broadcast %35 : vector<8x16x1xf32> to vector<8x16x16xf32>
    %37 = arith.subf %33, %36 : vector<8x16x16xf32>
    %38 = math.exp %37 : vector<8x16x16xf32>
    %cst_13 = arith.constant dense<0.000000e+00> : vector<8x16xf32>
    %39 = vector.multi_reduction <add>, %38, %cst_13 [2] : vector<8x16x16xf32> to vector<8x16xf32>
    %40 = vector.shape_cast %39 : vector<8x16xf32> to vector<8x16x1xf32>
    %41 = tpu.reciprocal %40 {approx = true} : vector<8x16x1xf32> -> vector<8x16x1xf32>
    %42 = vector.broadcast %41 : vector<8x16x1xf32> to vector<8x16x16xf32>
    %43 = arith.mulf %38, %42 : vector<8x16x16xf32>
    %44 = arith.truncf %43 : vector<8x16x16xf32> to vector<8x16x16xbf16>
    %cst_14 = arith.constant dense<0.000000e+00> : vector<8x16x32xf32>
    %45 = tpu.matmul %44, %32, %cst_14 {dimension_numbers = #tpu.dot_dimension_numbers<[2], [1], [1], [2], [0, 0, 0, 1, 1, 2], [0], [0]>} : vector<8x16x16xbf16>, vector<8x16x32xbf16>, vector<8x16x32xf32> -> vector<8x16x32xf32>
    %46 = vector.extract_strided_slice %7 {offsets = [0, 0, 64], sizes = [8, 16, 32], strides = [1, 1, 1]} : vector<8x16x384xf32> to vector<8x16x32xf32>
    %47 = arith.truncf %46 : vector<8x16x32xf32> to vector<8x16x32xbf16>
    %48 = vector.extract_strided_slice %7 {offsets = [0, 0, 192], sizes = [8, 16, 32], strides = [1, 1, 1]} : vector<8x16x384xf32> to vector<8x16x32xf32>
    %49 = arith.truncf %48 : vector<8x16x32xf32> to vector<8x16x32xbf16>
    %50 = vector.extract_strided_slice %7 {offsets = [0, 0, 320], sizes = [8, 16, 32], strides = [1, 1, 1]} : vector<8x16x384xf32> to vector<8x16x32xf32>
    %51 = arith.truncf %50 : vector<8x16x32xf32> to vector<8x16x32xbf16>
    %cst_15 = arith.constant dense<0.000000e+00> : vector<8x16x16xf32>
    %52 = tpu.matmul %47, %49, %cst_15 {dimension_numbers = #tpu.dot_dimension_numbers<[2], [2], [1], [1], [0, 0, 0, 1, 1, 1], [0], [0]>} : vector<8x16x32xbf16>, vector<8x16x32xbf16>, vector<8x16x16xf32> -> vector<8x16x16xf32>
    %cst_16 = arith.constant dense<0xFF800000> : vector<8x16xf32>
    %53 = vector.multi_reduction <maximumf>, %52, %cst_16 [2] : vector<8x16x16xf32> to vector<8x16xf32>
    %54 = vector.shape_cast %53 : vector<8x16xf32> to vector<8x16x1xf32>
    %55 = vector.broadcast %54 : vector<8x16x1xf32> to vector<8x16x16xf32>
    %56 = arith.subf %52, %55 : vector<8x16x16xf32>
    %57 = math.exp %56 : vector<8x16x16xf32>
    %cst_17 = arith.constant dense<0.000000e+00> : vector<8x16xf32>
    %58 = vector.multi_reduction <add>, %57, %cst_17 [2] : vector<8x16x16xf32> to vector<8x16xf32>
    %59 = vector.shape_cast %58 : vector<8x16xf32> to vector<8x16x1xf32>
    %60 = tpu.reciprocal %59 {approx = true} : vector<8x16x1xf32> -> vector<8x16x1xf32>
    %61 = vector.broadcast %60 : vector<8x16x1xf32> to vector<8x16x16xf32>
    %62 = arith.mulf %57, %61 : vector<8x16x16xf32>
    %63 = arith.truncf %62 : vector<8x16x16xf32> to vector<8x16x16xbf16>
    %cst_18 = arith.constant dense<0.000000e+00> : vector<8x16x32xf32>
    %64 = tpu.matmul %63, %51, %cst_18 {dimension_numbers = #tpu.dot_dimension_numbers<[2], [1], [1], [2], [0, 0, 0, 1, 1, 2], [0], [0]>} : vector<8x16x16xbf16>, vector<8x16x32xbf16>, vector<8x16x32xf32> -> vector<8x16x32xf32>
    %65 = vector.extract_strided_slice %7 {offsets = [0, 0, 96], sizes = [8, 16, 32], strides = [1, 1, 1]} : vector<8x16x384xf32> to vector<8x16x32xf32>
    %66 = arith.truncf %65 : vector<8x16x32xf32> to vector<8x16x32xbf16>
    %67 = vector.extract_strided_slice %7 {offsets = [0, 0, 224], sizes = [8, 16, 32], strides = [1, 1, 1]} : vector<8x16x384xf32> to vector<8x16x32xf32>
    %68 = arith.truncf %67 : vector<8x16x32xf32> to vector<8x16x32xbf16>
    %69 = vector.extract_strided_slice %7 {offsets = [0, 0, 352], sizes = [8, 16, 32], strides = [1, 1, 1]} : vector<8x16x384xf32> to vector<8x16x32xf32>
    %70 = arith.truncf %69 : vector<8x16x32xf32> to vector<8x16x32xbf16>
    %cst_19 = arith.constant dense<0.000000e+00> : vector<8x16x16xf32>
    %71 = tpu.matmul %66, %68, %cst_19 {dimension_numbers = #tpu.dot_dimension_numbers<[2], [2], [1], [1], [0, 0, 0, 1, 1, 1], [0], [0]>} : vector<8x16x32xbf16>, vector<8x16x32xbf16>, vector<8x16x16xf32> -> vector<8x16x16xf32>
    %cst_20 = arith.constant dense<0xFF800000> : vector<8x16xf32>
    %72 = vector.multi_reduction <maximumf>, %71, %cst_20 [2] : vector<8x16x16xf32> to vector<8x16xf32>
    %73 = vector.shape_cast %72 : vector<8x16xf32> to vector<8x16x1xf32>
    %74 = vector.broadcast %73 : vector<8x16x1xf32> to vector<8x16x16xf32>
    %75 = arith.subf %71, %74 : vector<8x16x16xf32>
    %76 = math.exp %75 : vector<8x16x16xf32>
    %cst_21 = arith.constant dense<0.000000e+00> : vector<8x16xf32>
    %77 = vector.multi_reduction <add>, %76, %cst_21 [2] : vector<8x16x16xf32> to vector<8x16xf32>
    %78 = vector.shape_cast %77 : vector<8x16xf32> to vector<8x16x1xf32>
    %79 = tpu.reciprocal %78 {approx = true} : vector<8x16x1xf32> -> vector<8x16x1xf32>
    %80 = vector.broadcast %79 : vector<8x16x1xf32> to vector<8x16x16xf32>
    %81 = arith.mulf %76, %80 : vector<8x16x16xf32>
    %82 = arith.truncf %81 : vector<8x16x16xf32> to vector<8x16x16xbf16>
    %cst_22 = arith.constant dense<0.000000e+00> : vector<8x16x32xf32>
    %83 = tpu.matmul %82, %70, %cst_22 {dimension_numbers = #tpu.dot_dimension_numbers<[2], [1], [1], [2], [0, 0, 0, 1, 1, 2], [0], [0]>} : vector<8x16x16xbf16>, vector<8x16x32xbf16>, vector<8x16x32xf32> -> vector<8x16x32xf32>
    %84 = tpu.concatenate %26, %45, %64, %83 in 2 : vector<8x16x32xf32>, vector<8x16x32xf32>, vector<8x16x32xf32>, vector<8x16x32xf32> -> vector<8x16x128xf32>
    %85 = vector.shape_cast %84 : vector<8x16x128xf32> to vector<128x128xf32>
    %86 = arith.truncf %85 : vector<128x128xf32> to vector<128x128xbf16>
    %c0_23 = arith.constant 0 : index
    %c0_24 = arith.constant 0 : index
    %87 = vector.load %arg4[%c0_23, %c0_24] : memref<128x128xbf16, #tpu.memory_space<vmem>>, vector<128x128xbf16>
    %cst_25 = arith.constant dense<0.000000e+00> : vector<128x128xf32>
    %88 = tpu.matmul %86, %87, %cst_25 {dimension_numbers = #tpu.dot_dimension_numbers<[1], [0], [0], [1], [0, 0, 1, 1], [], []>} : vector<128x128xbf16>, vector<128x128xbf16>, vector<128x128xf32> -> vector<128x128xf32>
    %89 = vector.shape_cast %88 : vector<128x128xf32> to vector<8x16x128xf32>
    %90 = arith.addf %2, %89 : vector<8x16x128xf32>
    %91 = arith.mulf %90, %90 : vector<8x16x128xf32>
    %cst_26 = arith.constant dense<0.000000e+00> : vector<8x128xf32>
    %92 = vector.multi_reduction <add>, %91, %cst_26 [1] : vector<8x16x128xf32> to vector<8x128xf32>
    %93 = vector.shape_cast %92 : vector<8x128xf32> to vector<8x1x128xf32>
    %94 = math.sqrt %93 : vector<8x1x128xf32>
    %cst_27 = arith.constant 9.99999996E-13 : f32
    %95 = vector.broadcast %cst_27 : f32 to vector<8x1x128xf32>
    %96 = arith.maximumf %94, %95 : vector<8x1x128xf32>
    %97 = vector.broadcast %96 : vector<8x1x128xf32> to vector<8x16x128xf32>
    %98 = arith.divf %90, %97 : vector<8x16x128xf32>
    %99 = vector.shape_cast %98 : vector<8x16x128xf32> to vector<128x128xf32>
    %100 = arith.truncf %99 : vector<128x128xf32> to vector<128x128xbf16>
    %c0_28 = arith.constant 0 : index
    %c0_29 = arith.constant 0 : index
    %101 = vector.load %arg5[%c0_28, %c0_29] : memref<128x512xbf16, #tpu.memory_space<vmem>>, vector<128x512xbf16>
    %cst_30 = arith.constant dense<0.000000e+00> : vector<128x512xf32>
    %102 = tpu.matmul %100, %101, %cst_30 {dimension_numbers = #tpu.dot_dimension_numbers<[1], [0], [0], [1], [0, 0, 1, 1], [], []>} : vector<128x128xbf16>, vector<128x512xbf16>, vector<128x512xf32> -> vector<128x512xf32>
    %c0_31 = arith.constant 0 : index
    %c0_32 = arith.constant 0 : index
    %103 = vector.load %arg6[%c0_31, %c0_32] : memref<1x512xf32, #tpu.memory_space<vmem>>, vector<1x512xf32>
    %104 = vector.broadcast %103 : vector<1x512xf32> to vector<128x512xf32>
    %105 = arith.addf %102, %104 : vector<128x512xf32>
    %106 = arith.truncf %105 : vector<128x512xf32> to vector<128x512xbf16>
    %c0_33 = arith.constant 0 : index
    %c0_34 = arith.constant 0 : index
    %107 = vector.load %arg7[%c0_33, %c0_34] : memref<512x128xbf16, #tpu.memory_space<vmem>>, vector<512x128xbf16>
    %cst_35 = arith.constant dense<0.000000e+00> : vector<128x128xf32>
    %108 = tpu.matmul %106, %107, %cst_35 {dimension_numbers = #tpu.dot_dimension_numbers<[1], [0], [0], [1], [0, 0, 1, 1], [], []>} : vector<128x512xbf16>, vector<512x128xbf16>, vector<128x128xf32> -> vector<128x128xf32>
    %c0_36 = arith.constant 0 : index
    %c0_37 = arith.constant 0 : index
    %109 = vector.load %arg8[%c0_36, %c0_37] : memref<1x128xf32, #tpu.memory_space<vmem>>, vector<1x128xf32>
    %110 = vector.broadcast %109 : vector<1x128xf32> to vector<128x128xf32>
    %111 = arith.addf %108, %110 : vector<128x128xf32>
    %cst_38 = arith.constant 0.000000e+00 : f32
    %112 = vector.broadcast %cst_38 : f32 to vector<128x128xf32>
    %113 = arith.maximumf %111, %112 : vector<128x128xf32>
    %114 = arith.addf %99, %113 : vector<128x128xf32>
    %cst_39 = arith.constant dense<0.000000e+00> : vector<128xf32>
    %115 = vector.multi_reduction <add>, %114, %cst_39 [1] : vector<128x128xf32> to vector<128xf32>
    %116 = vector.shape_cast %115 : vector<128xf32> to vector<128x1xf32>
    %cst_40 = arith.constant 1.280000e+02 : f32
    %117 = vector.broadcast %cst_40 : f32 to vector<128x1xf32>
    %118 = arith.divf %116, %117 : vector<128x1xf32>
    %119 = vector.broadcast %118 : vector<128x1xf32> to vector<128x128xf32>
    %120 = arith.subf %114, %119 : vector<128x128xf32>
    %121 = vector.broadcast %118 : vector<128x1xf32> to vector<128x128xf32>
    %122 = arith.subf %114, %121 : vector<128x128xf32>
    %123 = arith.mulf %120, %122 : vector<128x128xf32>
    %cst_41 = arith.constant dense<0.000000e+00> : vector<128xf32>
    %124 = vector.multi_reduction <add>, %123, %cst_41 [1] : vector<128x128xf32> to vector<128xf32>
    %125 = vector.shape_cast %124 : vector<128xf32> to vector<128x1xf32>
    %cst_42 = arith.constant 1.280000e+02 : f32
    %126 = vector.broadcast %cst_42 : f32 to vector<128x1xf32>
    %127 = arith.divf %125, %126 : vector<128x1xf32>
    %128 = vector.broadcast %118 : vector<128x1xf32> to vector<128x128xf32>
    %129 = arith.subf %114, %128 : vector<128x128xf32>
    %cst_43 = arith.constant 9.99999974E-6 : f32
    %130 = vector.broadcast %cst_43 : f32 to vector<128x1xf32>
    %131 = arith.addf %127, %130 : vector<128x1xf32>
    %132 = math.rsqrt %131 : vector<128x1xf32>
    %133 = vector.broadcast %132 : vector<128x1xf32> to vector<128x128xf32>
    %134 = arith.mulf %129, %133 : vector<128x128xf32>
    %c0_44 = arith.constant 0 : index
    %c0_45 = arith.constant 0 : index
    %135 = vector.load %arg9[%c0_44, %c0_45] : memref<1x128xf32, #tpu.memory_space<vmem>>, vector<1x128xf32>
    %136 = vector.broadcast %135 : vector<1x128xf32> to vector<128x128xf32>
    %137 = arith.mulf %134, %136 : vector<128x128xf32>
    %c0_46 = arith.constant 0 : index
    %c0_47 = arith.constant 0 : index
    %138 = vector.load %arg10[%c0_46, %c0_47] : memref<1x128xf32, #tpu.memory_space<vmem>>, vector<1x128xf32>
    %139 = vector.broadcast %138 : vector<1x128xf32> to vector<128x128xf32>
    %140 = arith.addf %137, %139 : vector<128x128xf32>
    %141 = arith.addf %99, %140 : vector<128x128xf32>
    %142 = vector.shape_cast %141 : vector<128x128xf32> to vector<8x16x128xf32>
    %143 = arith.mulf %142, %142 : vector<8x16x128xf32>
    %cst_48 = arith.constant dense<0.000000e+00> : vector<8x128xf32>
    %144 = vector.multi_reduction <add>, %143, %cst_48 [1] : vector<8x16x128xf32> to vector<8x128xf32>
    %145 = vector.shape_cast %144 : vector<8x128xf32> to vector<8x1x128xf32>
    %146 = math.sqrt %145 : vector<8x1x128xf32>
    %cst_49 = arith.constant 9.99999996E-13 : f32
    %147 = vector.broadcast %cst_49 : f32 to vector<8x1x128xf32>
    %148 = arith.maximumf %146, %147 : vector<8x1x128xf32>
    %149 = vector.broadcast %148 : vector<8x1x128xf32> to vector<8x16x128xf32>
    %150 = arith.divf %142, %149 : vector<8x16x128xf32>
    %c0_50 = arith.constant 0 : index
    %c0_51 = arith.constant 0 : index
    %c0_52 = arith.constant 0 : index
    %151 = vector.load %arg11[%c0_50, %c0_51, %c0_52] : memref<8x16x128xf32, #tpu.memory_space<vmem>>, vector<8x16x128xf32>
    tpu.vector_store %arg11[%c0_50, %c0_51, %c0_52], %150 {strides = array<i32>} : memref<8x16x128xf32, #tpu.memory_space<vmem>>, vector<8x16x128xf32>,
    return
  }
  func.func @transform_0(%arg0: i32) -> (i32, i32, i32) {
    %c0_i32 = arith.constant 0 : i32
    %c0_i32_0 = arith.constant 0 : i32
    %c0_i32_1 = arith.constant 0 : i32
    return %arg0, %c0_i32, %c0_i32_0 : i32, i32, i32
  }
  func.func @transform_1(%arg0: i32) -> (i32, i32, i32) {
    %c0_i32 = arith.constant 0 : i32
    %c0_i32_0 = arith.constant 0 : i32
    %c0_i32_1 = arith.constant 0 : i32
    return %arg0, %c0_i32, %c0_i32_0 : i32, i32, i32
  }
  func.func @transform_2(%arg0: i32) -> (i32, i32) {
    %c0_i32 = arith.constant 0 : i32
    %c0_i32_0 = arith.constant 0 : i32
    %c0_i32_1 = arith.constant 0 : i32
    return %c0_i32, %c0_i32_0 : i32, i32
  }
  func.func @transform_3(%arg0: i32) -> (i32, i32) {
    %c0_i32 = arith.constant 0 : i32
    %c0_i32_0 = arith.constant 0 : i32
    %c0_i32_1 = arith.constant 0 : i32
    return %c0_i32, %c0_i32_0 : i32, i32
  }
  func.func @transform_4(%arg0: i32) -> (i32, i32) {
    %c0_i32 = arith.constant 0 : i32
    %c0_i32_0 = arith.constant 0 : i32
    %c0_i32_1 = arith.constant 0 : i32
    return %c0_i32, %c0_i32_0 : i32, i32
  }
  func.func @transform_5(%arg0: i32) -> (i32, i32) {
    %c0_i32 = arith.constant 0 : i32
    %c0_i32_0 = arith.constant 0 : i32
    %c0_i32_1 = arith.constant 0 : i32
    return %c0_i32, %c0_i32_0 : i32, i32
  }
  func.func @transform_6(%arg0: i32) -> (i32, i32) {
    %c0_i32 = arith.constant 0 : i32
    %c0_i32_0 = arith.constant 0 : i32
    %c0_i32_1 = arith.constant 0 : i32
    return %c0_i32, %c0_i32_0 : i32, i32
  }
  func.func @transform_7(%arg0: i32) -> (i32, i32) {
    %c0_i32 = arith.constant 0 : i32
    %c0_i32_0 = arith.constant 0 : i32
    %c0_i32_1 = arith.constant 0 : i32
    return %c0_i32, %c0_i32_0 : i32, i32
  }
  func.func @transform_8(%arg0: i32) -> (i32, i32) {
    %c0_i32 = arith.constant 0 : i32
    %c0_i32_0 = arith.constant 0 : i32
    %c0_i32_1 = arith.constant 0 : i32
    return %c0_i32, %c0_i32_0 : i32, i32
  }
  func.func @transform_9(%arg0: i32) -> (i32, i32) {
    %c0_i32 = arith.constant 0 : i32
    %c0_i32_0 = arith.constant 0 : i32
    %c0_i32_1 = arith.constant 0 : i32
    return %c0_i32, %c0_i32_0 : i32, i32
  }
  func.func @transform_10(%arg0: i32) -> (i32, i32, i32) {
    %c0_i32 = arith.constant 0 : i32
    %c0_i32_0 = arith.constant 0 : i32
    %c0_i32_1 = arith.constant 0 : i32
    return %arg0, %c0_i32, %c0_i32_0 : i32, i32, i32
  }
}

</mosaic_0001>

<llo_original>
// kernel: tpu_custom_call.1
$region0: #{tpu_custom_call.1}
  #allocation0 [shape = 'u32[]', space=smem, size = 0x4, offset = 0x4, fixed_abs, tag = 'smem constant byte address 0x4 - core index']
  #allocation1 [shape = 'u32[72,128]{1,0:T(1,128)}', space=vmem, size = 0x9000, scoped, tag = 'internal scratch']
  %s0 = inlined_call_operand.hbm [shape: f32[16,16,128], index: 0, kind: input, shape index: {}]
  %s1 = inlined_call_operand.hbm [shape: f32[16,16,128], index: 1, kind: input, shape index: {}]
  %s2 = inlined_call_operand.hbm [shape: bf16[128,384], index: 2, kind: input, shape index: {}]
  %s3 = inlined_call_operand.hbm [shape: bf16[128,128], index: 3, kind: input, shape index: {}]
  %s4 = inlined_call_operand.hbm [shape: bf16[128,512], index: 4, kind: input, shape index: {}]
  %s5 = inlined_call_operand.vmem [shape: f32[1,512], index: 5, kind: input, shape index: {}]
  %s6 = inlined_call_operand.hbm [shape: bf16[512,128], index: 6, kind: input, shape index: {}]
  %s7 = inlined_call_operand.vmem [shape: f32[1,128], index: 7, kind: input, shape index: {}]
  %s8 = inlined_call_operand.vmem [shape: f32[1,128], index: 8, kind: input, shape index: {}]
  %s9 = inlined_call_operand.vmem [shape: f32[1,128], index: 9, kind: input, shape index: {}]
  %s10 = inlined_call_operand.hbm [shape: f32[16,16,128], index: 10, kind: output, shape index: {}]
  %s11 = sld [smem:[#allocation0]]
  $region97: #{tpu_custom_call.1} parent=0
    _
  %s13 = ssub.s32 1, %s11
  %s14 = scalar_select 0, %s13, %s11
  $region1: #{tpu_custom_call.1} parent=0
    #allocation2 [shape = 'u8[131072]{0}', space=vmem, size = 0x20000, scoped, tag = 'input window, operand 0']
    #allocation3 [shape = 's32[2]{0}', space=sflag, size = 0x8, scoped, tag = 'scoped memory for tpu_custom_call.1']
    #allocation4 [shape = 's32[2]{0}', space=sflag, size = 0x8, scoped, tag = 'scoped memory for tpu_custom_call.1']
    #allocation5 [shape = 'u8[131072]{0}', space=vmem, size = 0x20000, scoped, tag = 'input window, operand 1']
    #allocation6 [shape = 's32[2]{0}', space=sflag, size = 0x8, scoped, tag = 'scoped memory for tpu_custom_call.1']
    #allocation7 [shape = 'u8[98304]{0}', space=vmem, size = 0x18000, scoped, tag = 'input window, operand 2, single buffered']
    #allocation8 [shape = 'u8[32768]{0}', space=vmem, size = 0x8000, scoped, tag = 'input window, operand 3, single buffered']
    #allocation9 [shape = 's32[1]{0}', space=sflag, size = 0x4, scoped, tag = 'scoped memory for tpu_custom_call.1']
    #allocation10 [shape = 'u8[131072]{0}', space=vmem, size = 0x20000, scoped, tag = 'input window, operand 4, single buffered']
    #allocation11 [shape = 'u8[131072]{0}', space=vmem, size = 0x20000, scoped, tag = 'input window, operand 6, single buffered']
    #allocation12 [shape = 's32[1]{0}', space=sflag, size = 0x4, scoped, tag = 'scoped memory for tpu_custom_call.1']
    #allocation13 [shape = 'u8[131072]{0}', space=vmem, size = 0x20000, scoped, tag = 'output window, operand 0']
    %15 = vsyncpa [#allocation3], 0
    %s16 = scalar_lea.sflag [#allocation3], 1
    %17 = vsyncpa %s16, 0
    %18 = vsyncpa [#allocation6], 0
    %s19 = scalar_lea.sflag [#allocation6], 1
    %20 = vsyncpa %s19, 0
    %21 = vsyncpa [#allocation9], 0
    %22 = vsyncpa [#allocation12], 0
    %23 = vsyncpa [#allocation4], 0
    %s24 = scalar_lea.sflag [#allocation4], 1
    %25 = vsyncpa %s24, 0
    loop: start=0, step=1, limit=4
    $region2: #{tpu_custom_call.1} parent=1 // loop_pre_header
      _
    $region3: #{tpu_custom_call.1} parent=1 // loop_header
      %s27 = sphi 0, %s31
      %p28 = scmp.ge.s32.totalorder %s27, 4
      %s37 = sphi 0, %s39
      %s40 = sphi 0, %s37
      %s41 = sphi 0, %s40
      %s57 = sphi 0, %s41
      %s63 = sphi 0, %s65
      %s66 = sphi 0, %s63
      %s67 = sphi 0, %s66
      %s83 = sphi 0, %s67
      %s87 = sphi 0, %s87
      %s89 = sphi 0, %s87
      %s90 = sphi 0, %s89
      %s104 = sphi 0, %s90
      %s108 = sphi 0, %s108
      %s110 = sphi 0, %s108
      %s111 = sphi 0, %s110
      %s125 = sphi 0, %s111
      %s129 = sphi 0, %s129
      %s131 = sphi 0, %s129
      %s132 = sphi 0, %s131
      %s146 = sphi 0, %s132
      %s150 = sphi 0, %s150
      %s152 = sphi 0, %s150
      %s153 = sphi 0, %s152
      %s167 = sphi 0, %s153
      %s171 = sphi 0, %s171
      %s173 = sphi 0, %s171
      %s174 = sphi 0, %s173
      %s188 = sphi 0, %s174
      %s192 = sphi 0, %s192
      %s194 = sphi 0, %s192
      %s195 = sphi 0, %s194
      %s209 = sphi 0, %s195
      %s213 = sphi 0, %s213
      %s215 = sphi 0, %s213
      %s216 = sphi 0, %s215
      %s230 = sphi 0, %s216
      %s234 = sphi 0, %s234
      %s236 = sphi 0, %s234
      %s237 = sphi 0, %s236
      %s251 = sphi 0, %s237
      %s257 = sphi 0, %s259
      %s260 = sphi 0, %s257
      %s261 = sphi 0, %s260
      %s277 = sphi 0, %s261
    $region4: #{tpu_custom_call.1} parent=1 // loop_header_branch
      %30 = sbr.rel (%p28) target = $region8
    $region5: #{tpu_custom_call.1} parent=1 // loop_body
      %s32 = ssub.s32 %s27, 1
      %s33 = ssub.s32 %s27, 2
      %s34 = sadd.s32 %s27, 1
      %s35 = ssub.s32 %s27, %s34
      %p36 = scmp.eq.s32.totalorder %s35, 0
      %s38 = sadd.s32 %s37, 1
      %s39 = scalar_select %p36, %s37, %s38
      %p42 = pneg %p36
      %p43 = scmp.eq.s32.totalorder %s27, 1
      %p44 = por %p42, %p43
      %p45 = scmp.ne.s32.totalorder %s37, %s40
      %p46 = scmp.eq.s32.totalorder %s27, 0
      %p47 = por %p45, %p46
      %p48 = scmp.ne.s32.totalorder %s37, %s40
      %p49 = scmp.eq.s32.totalorder %s32, 1
      %p50 = por %p48, %p49
      %p51 = scmp.ne.s32.totalorder %s40, %s41
      %p52 = scmp.eq.s32.totalorder %s32, 0
      %p53 = por %p51, %p52
      %p54 = scmp.ne.s32.totalorder %s40, %s41
      %p55 = scmp.eq.s32.totalorder %s33, 1
      %p56 = por %p54, %p55
      %p58 = scmp.ne.s32.totalorder %s41, %s57
      %p59 = scmp.eq.s32.totalorder %s33, 0
      %p60 = por %p58, %p59
      %s61 = ssub.s32 %s27, %s34
      %p62 = scmp.eq.s32.totalorder %s61, 0
      %s64 = sadd.s32 %s63, 1
      %s65 = scalar_select %p62, %s63, %s64
      %p68 = pneg %p62
      %p69 = scmp.eq.s32.totalorder %s27, 1
      %p70 = por %p68, %p69
      %p71 = scmp.ne.s32.totalorder %s63, %s66
      %p72 = scmp.eq.s32.totalorder %s27, 0
      %p73 = por %p71, %p72
      %p74 = scmp.ne.s32.totalorder %s63, %s66
      %p75 = scmp.eq.s32.totalorder %s32, 1
      %p76 = por %p74, %p75
      %p77 = scmp.ne.s32.totalorder %s66, %s67
      %p78 = scmp.eq.s32.totalorder %s32, 0
      %p79 = por %p77, %p78
      %p80 = scmp.ne.s32.totalorder %s66, %s67
      %p81 = scmp.eq.s32.totalorder %s33, 1
      %p82 = por %p80, %p81
      %p84 = scmp.ne.s32.totalorder %s67, %s83
      %p85 = scmp.eq.s32.totalorder %s33, 0
      %p86 = por %p84, %p85
      %s88 = sadd.s32 %s87, 1
      %p91 = scmp.eq.s32.totalorder %s27, 1
      %p92 = scmp.ne.s32.totalorder %s87, %s89
      %p93 = scmp.eq.s32.totalorder %s27, 0
      %p94 = por %p92, %p93
      %p95 = scmp.ne.s32.totalorder %s87, %s89
      %p96 = scmp.eq.s32.totalorder %s32, 1
      %p97 = por %p95, %p96
      %p98 = scmp.ne.s32.totalorder %s89, %s90
      %p99 = scmp.eq.s32.totalorder %s32, 0
      %p100 = por %p98, %p99
      %p101 = scmp.ne.s32.totalorder %s89, %s90
      %p102 = scmp.eq.s32.totalorder %s33, 1
      %p103 = por %p101, %p102
      %p105 = scmp.ne.s32.totalorder %s90, %s104
      %p106 = scmp.eq.s32.totalorder %s33, 0
      %p107 = por %p105, %p106
      %s109 = sadd.s32 %s108, 1
      %p112 = scmp.eq.s32.totalorder %s27, 1
      %p113 = scmp.ne.s32.totalorder %s108, %s110
      %p114 = scmp.eq.s32.totalorder %s27, 0
      %p115 = por %p113, %p114
      %p116 = scmp.ne.s32.totalorder %s108, %s110
      %p117 = scmp.eq.s32.totalorder %s32, 1
      %p118 = por %p116, %p117
      %p119 = scmp.ne.s32.totalorder %s110, %s111
      %p120 = scmp.eq.s32.totalorder %s32, 0
      %p121 = por %p119, %p120
      %p122 = scmp.ne.s32.totalorder %s110, %s111
      %p123 = scmp.eq.s32.totalorder %s33, 1
      %p124 = por %p122, %p123
      %p126 = scmp.ne.s32.totalorder %s111, %s125
      %p127 = scmp.eq.s32.totalorder %s33, 0
      %p128 = por %p126, %p127
      %s130 = sadd.s32 %s129, 1
      %p133 = scmp.eq.s32.totalorder %s27, 1
      %p134 = scmp.ne.s32.totalorder %s129, %s131
      %p135 = scmp.eq.s32.totalorder %s27, 0
      %p136 = por %p134, %p135
      %p137 = scmp.ne.s32.totalorder %s129, %s131
      %p138 = scmp.eq.s32.totalorder %s32, 1
      %p139 = por %p137, %p138
      %p140 = scmp.ne.s32.totalorder %s131, %s132
      %p141 = scmp.eq.s32.totalorder %s32, 0
      %p142 = por %p140, %p141
      %p143 = scmp.ne.s32.totalorder %s131, %s132
      %p144 = scmp.eq.s32.totalorder %s33, 1
      %p145 = por %p143, %p144
      %p147 = scmp.ne.s32.totalorder %s132, %s146
      %p148 = scmp.eq.s32.totalorder %s33, 0
      %p149 = por %p147, %p148
      %s151 = sadd.s32 %s150, 1
      %p154 = scmp.eq.s32.totalorder %s27, 1
      %p155 = scmp.ne.s32.totalorder %s150, %s152
      %p156 = scmp.eq.s32.totalorder %s27, 0
      %p157 = por %p155, %p156
      %p158 = scmp.ne.s32.totalorder %s150, %s152
      %p159 = scmp.eq.s32.totalorder %s32, 1
      %p160 = por %p158, %p159
      %p161 = scmp.ne.s32.totalorder %s152, %s153
      %p162 = scmp.eq.s32.totalorder %s32, 0
      %p163 = por %p161, %p162
      %p164 = scmp.ne.s32.totalorder %s152, %s153
      %p165 = scmp.eq.s32.totalorder %s33, 1
      %p166 = por %p164, %p165
      %p168 = scmp.ne.s32.totalorder %s153, %s167
      %p169 = scmp.eq.s32.totalorder %s33, 0
      %p170 = por %p168, %p169
      %s172 = sadd.s32 %s171, 1
      %p175 = scmp.eq.s32.totalorder %s27, 1
      %p176 = scmp.ne.s32.totalorder %s171, %s173
      %p177 = scmp.eq.s32.totalorder %s27, 0
      %p178 = por %p176, %p177
      %p179 = scmp.ne.s32.totalorder %s171, %s173
      %p180 = scmp.eq.s32.totalorder %s32, 1
      %p181 = por %p179, %p180
      %p182 = scmp.ne.s32.totalorder %s173, %s174
      %p183 = scmp.eq.s32.totalorder %s32, 0
      %p184 = por %p182, %p183
      %p185 = scmp.ne.s32.totalorder %s173, %s174
      %p186 = scmp.eq.s32.totalorder %s33, 1
      %p187 = por %p185, %p186
      %p189 = scmp.ne.s32.totalorder %s174, %s188
      %p190 = scmp.eq.s32.totalorder %s33, 0
      %p191 = por %p189, %p190
      %s193 = sadd.s32 %s192, 1
      %p196 = scmp.eq.s32.totalorder %s27, 1
      %p197 = scmp.ne.s32.totalorder %s192, %s194
      %p198 = scmp.eq.s32.totalorder %s27, 0
      %p199 = por %p197, %p198
      %p200 = scmp.ne.s32.totalorder %s192, %s194
      %p201 = scmp.eq.s32.totalorder %s32, 1
      %p202 = por %p200, %p201
      %p203 = scmp.ne.s32.totalorder %s194, %s195
      %p204 = scmp.eq.s32.totalorder %s32, 0
      %p205 = por %p203, %p204
      %p206 = scmp.ne.s32.totalorder %s194, %s195
      %p207 = scmp.eq.s32.totalorder %s33, 1
      %p208 = por %p206, %p207
      %p210 = scmp.ne.s32.totalorder %s195, %s209
      %p211 = scmp.eq.s32.totalorder %s33, 0
      %p212 = por %p210, %p211
      %s214 = sadd.s32 %s213, 1
      %p217 = scmp.eq.s32.totalorder %s27, 1
      %p218 = scmp.ne.s32.totalorder %s213, %s215
      %p219 = scmp.eq.s32.totalorder %s27, 0
      %p220 = por %p218, %p219
      %p221 = scmp.ne.s32.totalorder %s213, %s215
      %p222 = scmp.eq.s32.totalorder %s32, 1
      %p223 = por %p221, %p222
      %p224 = scmp.ne.s32.totalorder %s215, %s216
      %p225 = scmp.eq.s32.totalorder %s32, 0
      %p226 = por %p224, %p225
      %p227 = scmp.ne.s32.totalorder %s215, %s216
      %p228 = scmp.eq.s32.totalorder %s33, 1
      %p229 = por %p227, %p228
      %p231 = scmp.ne.s32.totalorder %s216, %s230
      %p232 = scmp.eq.s32.totalorder %s33, 0
      %p233 = por %p231, %p232
      %s235 = sadd.s32 %s234, 1
      %p238 = scmp.eq.s32.totalorder %s27, 1
      %p239 = scmp.ne.s32.totalorder %s234, %s236
      %p240 = scmp.eq.s32.totalorder %s27, 0
      %p241 = por %p239, %p240
      %p242 = scmp.ne.s32.totalorder %s234, %s236
      %p243 = scmp.eq.s32.totalorder %s32, 1
      %p244 = por %p242, %p243
      %p245 = scmp.ne.s32.totalorder %s236, %s237
      %p246 = scmp.eq.s32.totalorder %s32, 0
      %p247 = por %p245, %p246
      %p248 = scmp.ne.s32.totalorder %s236, %s237
      %p249 = scmp.eq.s32.totalorder %s33, 1
      %p250 = por %p248, %p249
      %p252 = scmp.ne.s32.totalorder %s237, %s251
      %p253 = scmp.eq.s32.totalorder %s33, 0
      %p254 = por %p252, %p253
      %s255 = ssub.s32 %s27, %s34
      %p256 = scmp.eq.s32.totalorder %s255, 0
      %s258 = sadd.s32 %s257, 1
      %s259 = scalar_select %p256, %s257, %s258
      %p262 = pneg %p256
      %p263 = scmp.eq.s32.totalorder %s27, 1
      %p264 = por %p262, %p263
      %p265 = scmp.ne.s32.totalorder %s257, %s260
      %p266 = scmp.eq.s32.totalorder %s27, 0
      %p267 = por %p265, %p266
      %p268 = scmp.ne.s32.totalorder %s257, %s260
      %p269 = scmp.eq.s32.totalorder %s32, 1
      %p270 = por %p268, %p269
      %p271 = scmp.ne.s32.totalorder %s260, %s261
      %p272 = scmp.eq.s32.totalorder %s32, 0
      %p273 = por %p271, %p272
      %p274 = scmp.ne.s32.totalorder %s260, %s261
      %p275 = scmp.eq.s32.totalorder %s33, 1
      %p276 = por %p274, %p275
      %p278 = scmp.ne.s32.totalorder %s261, %s277
      %p279 = scmp.eq.s32.totalorder %s33, 0
      %p280 = por %p278, %p279
      %p281 = scmp.le.s32.totalorder 1, %s27
      %p282 = scmp.lt.s32.totalorder %s27, 3
      %p283 = pnand %p281, %p282
      %p284 = pneg %p283
      // Predicated region
      $region9: #{tpu_custom_call.1} parent=5 // pred_check
        _
      $region10: #{tpu_custom_call.1} parent=5 // pred_check_branch
        %286 = sbr.rel (%p283) target = $region12
      $region11: #{tpu_custom_call.1} parent=5 // pred_region
        %s287 = ssub.s32 %s27, 1
        // Predicated region
        $region13: #{tpu_custom_call.1} parent=11 // pred_check
          %p288 = pneg %p100
        $region14: #{tpu_custom_call.1} parent=11 // pred_check_branch
          %290 = sbr.rel (%p288) target = $region16
        $region15: #{tpu_custom_call.1} parent=11 // pred_region
          %292 = vsyncadd [#allocation6], 0
          %s293 = sshll.u32 %s2, 4
          %s294 = int_to_ptr.hbm [resolvable:$true] %s293
          %s295 = sshll.u32 [#allocation7], 4
          %s296 = int_to_ptr.vmem [resolvable:$true] %s295
          %301 = dma.hbm_to_vmem [thread:$0]  %s294, 3072, %s296, [#allocation6], 192, 192, 12
        $region16: #{tpu_custom_call.1} parent=11 // pred_fallthru
          _
        // Predicated region
        $region17: #{tpu_custom_call.1} parent=11 // pred_check
          %p302 = pneg %p121
        $region18: #{tpu_custom_call.1} parent=11 // pred_check_branch
          %304 = sbr.rel (%p302) target = $region20
        $region19: #{tpu_custom_call.1} parent=11 // pred_region
          %306 = vsyncadd [#allocation9], 0
          %s307 = sshll.u32 %s3, 4
          %s308 = int_to_ptr.hbm [resolvable:$true] %s307
          %s309 = sshll.u32 [#allocation8], 4
          %s310 = int_to_ptr.vmem [resolvable:$true] %s309
          %315 = dma.hbm_to_vmem [thread:$0]  %s308, 1024, %s310, [#allocation9], 64, 64, 4
        $region20: #{tpu_custom_call.1} parent=11 // pred_fallthru
          _
        // Predicated region
        $region21: #{tpu_custom_call.1} parent=11 // pred_check
          %p316 = pneg %p142
        $region22: #{tpu_custom_call.1} parent=11 // pred_check_branch
          %318 = sbr.rel (%p316) target = $region24
        $region23: #{tpu_custom_call.1} parent=11 // pred_region
          %320 = vsyncadd [#allocation9], 0
          %s321 = sshll.u32 %s4, 4
          %s322 = int_to_ptr.hbm [resolvable:$true] %s321
          %s323 = sshll.u32 [#allocation10], 4
          %s324 = int_to_ptr.vmem [resolvable:$true] %s323
          %329 = dma.hbm_to_vmem [thread:$0]  %s322, 4096, %s324, [#allocation9], 256, 256, 16
        $region24: #{tpu_custom_call.1} parent=11 // pred_fallthru
          _
        // Predicated region
        $region25: #{tpu_custom_call.1} parent=11 // pred_check
          %p330 = pneg %p163
        $region26: #{tpu_custom_call.1} parent=11 // pred_check_branch
          %332 = sbr.rel (%p330) target = $region28
        $region27: #{tpu_custom_call.1} parent=11 // pred_region
          _
        $region28: #{tpu_custom_call.1} parent=11 // pred_fallthru
          _
        // Predicated region
        $region29: #{tpu_custom_call.1} parent=11 // pred_check
          %p333 = pneg %p184
        $region30: #{tpu_custom_call.1} parent=11 // pred_check_branch
          %335 = sbr.rel (%p333) target = $region32
        $region31: #{tpu_custom_call.1} parent=11 // pred_region
          %337 = vsyncadd [#allocation12], 0
          %s338 = sshll.u32 %s6, 4
          %s339 = int_to_ptr.hbm [resolvable:$true] %s338
          %s340 = sshll.u32 [#allocation11], 4
          %s341 = int_to_ptr.vmem [resolvable:$true] %s340
          %346 = dma.hbm_to_vmem [thread:$0]  %s339, 4096, %s341, [#allocation12], 64, 64, 4
        $region32: #{tpu_custom_call.1} parent=11 // pred_fallthru
          _
        // Predicated region
        $region33: #{tpu_custom_call.1} parent=11 // pred_check
          %p347 = pneg %p205
        $region34: #{tpu_custom_call.1} parent=11 // pred_check_branch
          %349 = sbr.rel (%p347) target = $region36
        $region35: #{tpu_custom_call.1} parent=11 // pred_region
          _
        $region36: #{tpu_custom_call.1} parent=11 // pred_fallthru
          _
        // Predicated region
        $region37: #{tpu_custom_call.1} parent=11 // pred_check
          %p350 = pneg %p226
        $region38: #{tpu_custom_call.1} parent=11 // pred_check_branch
          %352 = sbr.rel (%p350) target = $region40
        $region39: #{tpu_custom_call.1} parent=11 // pred_region
          _
        $region40: #{tpu_custom_call.1} parent=11 // pred_fallthru
          _
        // Predicated region
        $region41: #{tpu_custom_call.1} parent=11 // pred_check
          %p353 = pneg %p247
        $region42: #{tpu_custom_call.1} parent=11 // pred_check_branch
          %355 = sbr.rel (%p353) target = $region44
        $region43: #{tpu_custom_call.1} parent=11 // pred_region
          _
        $region44: #{tpu_custom_call.1} parent=11 // pred_fallthru
          _
      $region12: #{tpu_custom_call.1} parent=5 // pred_fallthru
        _
      %p356 = scmp.lt.s32.totalorder %s27, 2
      // Predicated region
      $region45: #{tpu_custom_call.1} parent=5 // pred_check
        %p357 = pneg %p356
      $region46: #{tpu_custom_call.1} parent=5 // pred_check_branch
        %359 = sbr.rel (%p357) target = $region48
      $region47: #{tpu_custom_call.1} parent=5 // pred_region
        // Predicated region
        $region49: #{tpu_custom_call.1} parent=47 // pred_check
          %p360 = pneg %p47
        $region50: #{tpu_custom_call.1} parent=47 // pred_check_branch
          %362 = sbr.rel (%p360) target = $region52
        $region51: #{tpu_custom_call.1} parent=47 // pred_region
          %s363 = sand.u32 %s37, 1
          %s364 = scalar_lea.sflag [#allocation3], %s363
          %s365 = sand.u32 %s37, 1
          %s366 = smul.addr %s365, 128
          %s367 = scalar_lea.vmem [#allocation2], %s366
          %s368 = smul.u32 8, %s27
          %370 = vsyncadd %s364, 0
          %s371 = smul.addr %s368, 2
          %s372 = smul.addr %s371, 8
          %s373 = scalar_lea.hbm %s0, %s372
          %s374 = sshll.u32 %s373, 4
          %s375 = int_to_ptr.hbm [resolvable:$true] %s374
          %s376 = sshll.u32 %s367, 4
          %s377 = int_to_ptr.vmem [resolvable:$true] %s376
          %382 = dma.hbm_to_vmem [thread:$0]  %s375, 2048, %s377, %s364, 128, 128, 8
        $region52: #{tpu_custom_call.1} parent=47 // pred_fallthru
          _
        // Predicated region
        $region53: #{tpu_custom_call.1} parent=47 // pred_check
          %p383 = pneg %p73
        $region54: #{tpu_custom_call.1} parent=47 // pred_check_branch
          %385 = sbr.rel (%p383) target = $region56
        $region55: #{tpu_custom_call.1} parent=47 // pred_region
          %s386 = sand.u32 %s27, 1
          %s387 = scalar_lea.sflag [#allocation6], %s386
          %s388 = sand.u32 %s63, 1
          %s389 = smul.addr %s388, 128
          %s390 = scalar_lea.vmem [#allocation5], %s389
          %s391 = smul.u32 8, %s27
          %393 = vsyncadd %s387, 0
          %s394 = smul.addr %s391, 2
          %s395 = smul.addr %s394, 8
          %s396 = scalar_lea.hbm %s1, %s395
          %s397 = sshll.u32 %s396, 4
          %s398 = int_to_ptr.hbm [resolvable:$true] %s397
          %s399 = sshll.u32 %s390, 4
          %s400 = int_to_ptr.vmem [resolvable:$true] %s399
          %405 = dma.hbm_to_vmem [thread:$0]  %s398, 2048, %s400, %s387, 128, 128, 8
        $region56: #{tpu_custom_call.1} parent=47 // pred_fallthru
          _
      $region48: #{tpu_custom_call.1} parent=5 // pred_fallthru
        _
      %p406 = scmp.le.s32.totalorder 1, %s27
      %p407 = scmp.lt.s32.totalorder %s27, 3
      %p408 = pnand %p406, %p407
      %p409 = pneg %p408
      // Predicated region
      $region57: #{tpu_custom_call.1} parent=5 // pred_check
        _
      $region58: #{tpu_custom_call.1} parent=5 // pred_check_branch
        %411 = sbr.rel (%p408) target = $region60
      $region59: #{tpu_custom_call.1} parent=5 // pred_region
        %s412 = ssub.s32 %s27, 1
        %s413 = sand.u32 %s40, 1
        %s414 = scalar_lea.sflag [#allocation3], %s413
        %s415 = sand.u32 %s40, 1
        %s416 = smul.addr %s415, 128
        %s417 = scalar_lea.vmem [#allocation2], %s416
        // Predicated region
        $region61: #{tpu_custom_call.1} parent=59 // pred_check
          %p418 = pneg %p53
        $region62: #{tpu_custom_call.1} parent=59 // pred_check_branch
          %420 = sbr.rel (%p418) target = $region64
        $region63: #{tpu_custom_call.1} parent=59 // pred_region
          %422 = dma.done %s414, 2048
        $region64: #{tpu_custom_call.1} parent=59 // pred_fallthru
          _
        %s423 = sand.u32 %s32, 1
        %s424 = scalar_lea.sflag [#allocation6], %s423
        %s425 = sand.u32 %s66, 1
        %s426 = smul.addr %s425, 128
        %s427 = scalar_lea.vmem [#allocation5], %s426
        // Predicated region
        $region65: #{tpu_custom_call.1} parent=59 // pred_check
          %p428 = pneg %p79
        $region66: #{tpu_custom_call.1} parent=59 // pred_check_branch
          %430 = sbr.rel (%p428) target = $region68
        $region67: #{tpu_custom_call.1} parent=59 // pred_region
          %432 = dma.done %s424, 2048
        $region68: #{tpu_custom_call.1} parent=59 // pred_fallthru
          _
        // Predicated region
        $region69: #{tpu_custom_call.1} parent=59 // pred_check
          %p433 = pneg %p100
        $region70: #{tpu_custom_call.1} parent=59 // pred_check_branch
          %435 = sbr.rel (%p433) target = $region72
        $region71: #{tpu_custom_call.1} parent=59 // pred_region
          %437 = dma.done [#allocation6], 3072
        $region72: #{tpu_custom_call.1} parent=59 // pred_fallthru
          _
        // Predicated region
        $region73: #{tpu_custom_call.1} parent=59 // pred_check
          %p438 = pneg %p121
        $region74: #{tpu_custom_call.1} parent=59 // pred_check_branch
          %440 = sbr.rel (%p438) target = $region76
        $region75: #{tpu_custom_call.1} parent=59 // pred_region
          %442 = dma.done [#allocation9], 1024
        $region76: #{tpu_custom_call.1} parent=59 // pred_fallthru
          _
        // Predicated region
        $region77: #{tpu_custom_call.1} parent=59 // pred_check
          %p443 = pneg %p142
        $region78: #{tpu_custom_call.1} parent=59 // pred_check_branch
          %445 = sbr.rel (%p443) target = $region80
        $region79: #{tpu_custom_call.1} parent=59 // pred_region
          %447 = dma.done [#allocation9], 4096
        $region80: #{tpu_custom_call.1} parent=59 // pred_fallthru
          _
        // Predicated region
        $region81: #{tpu_custom_call.1} parent=59 // pred_check
          %p448 = pneg %p184
        $region82: #{tpu_custom_call.1} parent=59 // pred_check_branch
          %450 = sbr.rel (%p448) target = $region84
        $region83: #{tpu_custom_call.1} parent=59 // pred_region
          %452 = dma.done [#allocation12], 4096
        $region84: #{tpu_custom_call.1} parent=59 // pred_fallthru
          _
        %s453 = sand.u32 %s40, 1
        %s454 = scalar_lea.sflag [#allocation3], %s453
        %s455 = sand.u32 %s40, 1
        %s456 = smul.addr %s455, 128
        %s457 = scalar_lea.vmem [#allocation2], %s456
        %p458 = pneg %p53
        %p459 = pneg %p50
        %s460 = sand.u32 %s32, 1
        %s461 = scalar_lea.sflag [#allocation6], %s460
        %s462 = sand.u32 %s66, 1
        %s463 = smul.addr %s462, 128
        %s464 = scalar_lea.vmem [#allocation5], %s463
        %p465 = pneg %p79
        %p466 = pneg %p76
        %p467 = pneg %p100
        %p468 = pneg %p97
        %p469 = pneg %p121
        %p470 = pneg %p118
        %p471 = pneg %p142
        %p472 = pneg %p139
        %p473 = pneg %p163
        %p474 = pneg %p160
        %p475 = pneg %p184
        %p476 = pneg %p181
        %p477 = pneg %p205
        %p478 = pneg %p202
        %p479 = pneg %p226
        %p480 = pneg %p223
        %p481 = pneg %p247
        %p482 = pneg %p244
        %p483 = pneg %p273
        %p484 = pneg %p270
        %s485 = sand.u32 %s260, 1
        %s486 = scalar_lea.sflag [#allocation4], %s485
        %s487 = sand.u32 %s260, 1
        %s488 = smul.addr %s487, 128
        %s489 = scalar_lea.vmem [#allocation13], %s488
        %s490 = smul.u32 8, %s32
        %s491 = smul.u32 8, %s32
        %s492 = smul.u32 8, %s32
        %v494 = vld [vmem:[%s417] sm:$0xff]
        %v495 = vld [vmem:[%s417 + $0x8] sm:$0xff]
        %v496 = vld [vmem:[%s417 + $0x10] sm:$0xff]
        %v497 = vld [vmem:[%s417 + $0x18] sm:$0xff]
        %v498 = vld [vmem:[%s417 + $0x20] sm:$0xff]
        %v499 = vld [vmem:[%s417 + $0x28] sm:$0xff]
        %v500 = vld [vmem:[%s417 + $0x30] sm:$0xff]
        %v501 = vld [vmem:[%s417 + $0x38] sm:$0xff]
        %v502 = vld [vmem:[%s417 + $0x40] sm:$0xff]
        %v503 = vld [vmem:[%s417 + $0x48] sm:$0xff]
        %v504 = vld [vmem:[%s417 + $0x50] sm:$0xff]
        %v505 = vld [vmem:[%s417 + $0x58] sm:$0xff]
        %v506 = vld [vmem:[%s417 + $0x60] sm:$0xff]
        %v507 = vld [vmem:[%s417 + $0x68] sm:$0xff]
        %v508 = vld [vmem:[%s417 + $0x70] sm:$0xff]
        %v509 = vld [vmem:[%s417 + $0x78] sm:$0xff]
        %v510 = vld [vmem:[%s427] sm:$0xff]
        %v511 = vld [vmem:[%s427 + $0x8] sm:$0xff]
        %v512 = vld [vmem:[%s427 + $0x10] sm:$0xff]
        %v513 = vld [vmem:[%s427 + $0x18] sm:$0xff]
        %v514 = vld [vmem:[%s427 + $0x20] sm:$0xff]
        %v515 = vld [vmem:[%s427 + $0x28] sm:$0xff]
        %v516 = vld [vmem:[%s427 + $0x30] sm:$0xff]
        %v517 = vld [vmem:[%s427 + $0x38] sm:$0xff]
        %v518 = vld [vmem:[%s427 + $0x40] sm:$0xff]
        %v519 = vld [vmem:[%s427 + $0x48] sm:$0xff]
        %v520 = vld [vmem:[%s427 + $0x50] sm:$0xff]
        %v521 = vld [vmem:[%s427 + $0x58] sm:$0xff]
        %v522 = vld [vmem:[%s427 + $0x60] sm:$0xff]
        %v523 = vld [vmem:[%s427 + $0x68] sm:$0xff]
        %v524 = vld [vmem:[%s427 + $0x70] sm:$0xff]
        %v525 = vld [vmem:[%s427 + $0x78] sm:$0xff]
        %v526 = vadd.f32 %v494, %v510
        %v527 = vadd.f32 %v495, %v511
        %v528 = vadd.f32 %v496, %v512
        %v529 = vadd.f32 %v497, %v513
        %v530 = vadd.f32 %v498, %v514
        %v531 = vadd.f32 %v499, %v515
        %v532 = vadd.f32 %v500, %v516
        %v533 = vadd.f32 %v501, %v517
        %v534 = vadd.f32 %v502, %v518
        %v535 = vadd.f32 %v503, %v519
        %v536 = vadd.f32 %v504, %v520
        %v537 = vadd.f32 %v505, %v521
        %v538 = vadd.f32 %v506, %v522
        %v539 = vadd.f32 %v507, %v523
        %v540 = vadd.f32 %v508, %v524
        %v541 = vadd.f32 %v509, %v525
        %v542 = vpack.c.bf16 %v527, %v526
        %v543 = vpack.c.bf16 %v529, %v528
        %v544 = vpack.c.bf16 %v531, %v530
        %v545 = vpack.c.bf16 %v533, %v532
        %v546 = vpack.c.bf16 %v535, %v534
        %v547 = vpack.c.bf16 %v537, %v536
        %v548 = vpack.c.bf16 %v539, %v538
        %v549 = vpack.c.bf16 %v541, %v540
        %v550 = vld [vmem:[#allocation7] sm:$0xff]
        %v551 = vld [vmem:[#allocation7 + $0x8] sm:$0xf]
        %v552 = vld [vmem:[#allocation7 + $0xc] sm:$0xff]
        %v553 = vld [vmem:[#allocation7 + $0x14] sm:$0xf]
        %v554 = vld [vmem:[#allocation7 + $0x18] sm:$0xff]
        %v555 = vld [vmem:[#allocation7 + $0x20] sm:$0xf]
        %v556 = vld [vmem:[#allocation7 + $0x24] sm:$0xff]
        %v557 = vld [vmem:[#allocation7 + $0x2c] sm:$0xf]
        %v558 = vld [vmem:[#allocation7 + $0x30] sm:$0xff]
        %v559 = vld [vmem:[#allocation7 + $0x38] sm:$0xf]
        %v560 = vld [vmem:[#allocation7 + $0x3c] sm:$0xff]
        %v561 = vld [vmem:[#allocation7 + $0x44] sm:$0xf]
        %v562 = vld [vmem:[#allocation7 + $0x48] sm:$0xff]
        %v563 = vld [vmem:[#allocation7 + $0x50] sm:$0xf]
        %v564 = vld [vmem:[#allocation7 + $0x54] sm:$0xff]
        %v565 = vld [vmem:[#allocation7 + $0x5c] sm:$0xf]
        %v566 = vld [vmem:[#allocation7 + $0x60] sm:$0xff]
        %v567 = vld [vmem:[#allocation7 + $0x68] sm:$0xf]
        %v568 = vld [vmem:[#allocation7 + $0x6c] sm:$0xff]
        %v569 = vld [vmem:[#allocation7 + $0x74] sm:$0xf]
        %v570 = vld [vmem:[#allocation7 + $0x78] sm:$0xff]
        %v571 = vld [vmem:[#allocation7 + $0x80] sm:$0xf]
        %v572 = vld [vmem:[#allocation7 + $0x84] sm:$0xff]
        %v573 = vld [vmem:[#allocation7 + $0x8c] sm:$0xf]
        %v574 = vld [vmem:[#allocation7 + $0x90] sm:$0xff]
        %v575 = vld [vmem:[#allocation7 + $0x98] sm:$0xf]
        %v576 = vld [vmem:[#allocation7 + $0x9c] sm:$0xff]
        %v577 = vld [vmem:[#allocation7 + $0xa4] sm:$0xf]
        %v578 = vld [vmem:[#allocation7 + $0xa8] sm:$0xff]
        %v579 = vld [vmem:[#allocation7 + $0xb0] sm:$0xf]
        %v580 = vld [vmem:[#allocation7 + $0xb4] sm:$0xff]
        %v581 = vld [vmem:[#allocation7 + $0xbc] sm:$0xf]
        %v614 = vunpack.c.l.b16 %v550
        %v615 = vunpack.c.h.b16 %v550
        %v616 = vunpack.c.l.b16 %v551
        %v617 = vunpack.c.l.b16 %v552
        %v618 = vunpack.c.h.b16 %v552
        %v619 = vunpack.c.l.b16 %v553
        %v620 = vunpack.c.l.b16 %v554
        %v621 = vunpack.c.h.b16 %v554
        %v622 = vunpack.c.l.b16 %v555
        %v623 = vunpack.c.l.b16 %v556
        %v624 = vunpack.c.h.b16 %v556
        %v625 = vunpack.c.l.b16 %v557
        %v626 = vunpack.c.l.b16 %v558
        %v627 = vunpack.c.h.b16 %v558
        %v628 = vunpack.c.l.b16 %v559
        %v629 = vunpack.c.l.b16 %v560
        %v630 = vunpack.c.h.b16 %v560
        %v631 = vunpack.c.l.b16 %v561
        %v632 = vunpack.c.l.b16 %v562
        %v633 = vunpack.c.h.b16 %v562
        %v634 = vunpack.c.l.b16 %v563
        %v635 = vunpack.c.l.b16 %v564
        %v636 = vunpack.c.h.b16 %v564
        %v637 = vunpack.c.l.b16 %v565
        %v638 = vunpack.c.l.b16 %v566
        %v639 = vunpack.c.h.b16 %v566
        %v640 = vunpack.c.l.b16 %v567
        %v641 = vunpack.c.l.b16 %v568
        %v642 = vunpack.c.h.b16 %v568
        %v643 = vunpack.c.l.b16 %v569
        %v644 = vunpack.c.l.b16 %v570
        %v645 = vunpack.c.h.b16 %v570
        %v646 = vunpack.c.l.b16 %v571
        %v647 = vunpack.c.l.b16 %v572
        %v648 = vunpack.c.h.b16 %v572
        %v649 = vunpack.c.l.b16 %v573
        %v650 = vunpack.c.l.b16 %v574
        %v651 = vunpack.c.h.b16 %v574
        %v652 = vunpack.c.l.b16 %v575
        %v653 = vunpack.c.l.b16 %v576
        %v654 = vunpack.c.h.b16 %v576
        %v655 = vunpack.c.l.b16 %v577
        %v656 = vunpack.c.l.b16 %v578
        %v657 = vunpack.c.h.b16 %v578
        %v658 = vunpack.c.l.b16 %v579
        %v659 = vunpack.c.l.b16 %v580
        %v660 = vunpack.c.h.b16 %v580
        %v661 = vunpack.c.l.b16 %v581
        %v662 = vpack.c.b16 %v617, %v614
        %v663 = vpack.c.b16 %v618, %v615
        %v664 = vpack.c.b16 %v619, %v616
        %v665 = vpack.c.b16 %v623, %v620
        %v666 = vpack.c.b16 %v624, %v621
        %v667 = vpack.c.b16 %v625, %v622
        %v668 = vpack.c.b16 %v629, %v626
        %v669 = vpack.c.b16 %v630, %v627
        %v670 = vpack.c.b16 %v631, %v628
        %v671 = vpack.c.b16 %v635, %v632
        %v672 = vpack.c.b16 %v636, %v633
        %v673 = vpack.c.b16 %v637, %v634
        %v674 = vpack.c.b16 %v641, %v638
        %v675 = vpack.c.b16 %v642, %v639
        %v676 = vpack.c.b16 %v643, %v640
        %v677 = vpack.c.b16 %v647, %v644
        %v678 = vpack.c.b16 %v648, %v645
        %v679 = vpack.c.b16 %v649, %v646
        %v680 = vpack.c.b16 %v653, %v650
        %v681 = vpack.c.b16 %v654, %v651
        %v682 = vpack.c.b16 %v655, %v652
        %v683 = vpack.c.b16 %v659, %v656
        %v684 = vpack.c.b16 %v660, %v657
        %v685 = vpack.c.b16 %v661, %v658
        %710 = vmatpush.bf16.msra.mxu0 %v683
        %711 = vmatpush.bf16.msra.mxu0 %v680
        %712 = vmatpush.bf16.msra.mxu0 %v677
        %713 = vmatpush.bf16.msra.mxu0 %v674
        %714 = vmatpush.bf16.msra.mxu0 %v671
        %715 = vmatpush.bf16.msra.mxu0 %v668
        %716 = vmatpush.bf16.msra.mxu0 %v665
        %717 = vmatpush.bf16.msra.mxu0 %v662
        %718 = vmatmul.bf16.gmra.mxu0 %v542
        %v719 = vpop.f32.mrf.mxu0
        %v720 = vadd.f32 0.0, %v719
        %v721 = vpop.f32.mrf.mxu0
        %v722 = vadd.f32 0.0, %v721
        %723 = vmatmul.bf16.gmra.mxu0 %v543
        %v724 = vpop.f32.mrf.mxu0
        %v725 = vadd.f32 0.0, %v724
        %v726 = vpop.f32.mrf.mxu0
        %v727 = vadd.f32 0.0, %v726
        %728 = vmatmul.bf16.gmra.mxu0 %v544
        %v729 = vpop.f32.mrf.mxu0
        %v730 = vadd.f32 0.0, %v729
        %v731 = vpop.f32.mrf.mxu0
        %v732 = vadd.f32 0.0, %v731
        %733 = vmatmul.bf16.gmra.mxu0 %v545
        %v734 = vpop.f32.mrf.mxu0
        %v735 = vadd.f32 0.0, %v734
        %v736 = vpop.f32.mrf.mxu0
        %v737 = vadd.f32 0.0, %v736
        %738 = vmatmul.bf16.gmra.mxu0 %v546
        %v739 = vpop.f32.mrf.mxu0
        %v740 = vadd.f32 0.0, %v739
        %v741 = vpop.f32.mrf.mxu0
        %v742 = vadd.f32 0.0, %v741
        %743 = vmatmul.bf16.gmra.mxu0 %v547
        %v744 = vpop.f32.mrf.mxu0
        %v745 = vadd.f32 0.0, %v744
        %v746 = vpop.f32.mrf.mxu0
        %v747 = vadd.f32 0.0, %v746
        %748 = vmatmul.bf16.gmra.mxu0 %v548
        %v749 = vpop.f32.mrf.mxu0
        %v750 = vadd.f32 0.0, %v749
        %v751 = vpop.f32.mrf.mxu0
        %v752 = vadd.f32 0.0, %v751
        %753 = vmatmul.bf16.gmra.mxu0 %v549
        %v754 = vpop.f32.mrf.mxu0
        %v755 = vadd.f32 0.0, %v754
        %v756 = vpop.f32.mrf.mxu0
        %v757 = vadd.f32 0.0, %v756
        %758 = vdwg.mxu0
        %759 = vmatpush.bf16.msra.mxu0 %v684
        %760 = vmatpush.bf16.msra.mxu0 %v681
        %761 = vmatpush.bf16.msra.mxu0 %v678
        %762 = vmatpush.bf16.msra.mxu0 %v675
        %763 = vmatpush.bf16.msra.mxu0 %v672
        %764 = vmatpush.bf16.msra.mxu0 %v669
        %765 = vmatpush.bf16.msra.mxu0 %v666
        %766 = vmatpush.bf16.msra.mxu0 %v663
        %767 = vmatmul.bf16.gmra.mxu0 %v542
        %v768 = vpop.f32.mrf.mxu0
        %v769 = vadd.f32 0.0, %v768
        %v770 = vpop.f32.mrf.mxu0
        %v771 = vadd.f32 0.0, %v770
        %772 = vmatmul.bf16.gmra.mxu0 %v543
        %v773 = vpop.f32.mrf.mxu0
        %v774 = vadd.f32 0.0, %v773
        %v775 = vpop.f32.mrf.mxu0
        %v776 = vadd.f32 0.0, %v775
        %777 = vmatmul.bf16.gmra.mxu0 %v544
        %v778 = vpop.f32.mrf.mxu0
        %v779 = vadd.f32 0.0, %v778
        %v780 = vpop.f32.mrf.mxu0
        %v781 = vadd.f32 0.0, %v780
        %782 = vmatmul.bf16.gmra.mxu0 %v545
        %v783 = vpop.f32.mrf.mxu0
        %v784 = vadd.f32 0.0, %v783
        %v785 = vpop.f32.mrf.mxu0
        %v786 = vadd.f32 0.0, %v785
        %787 = vmatmul.bf16.gmra.mxu0 %v546
        %v788 = vpop.f32.mrf.mxu0
        %v789 = vadd.f32 0.0, %v788
        %v790 = vpop.f32.mrf.mxu0
        %v791 = vadd.f32 0.0, %v790
        %792 = vmatmul.bf16.gmra.mxu0 %v547
        %v793 = vpop.f32.mrf.mxu0
        %v794 = vadd.f32 0.0, %v793
        %v795 = vpop.f32.mrf.mxu0
        %v796 = vadd.f32 0.0, %v795
        %797 = vmatmul.bf16.gmra.mxu0 %v548
        %v798 = vpop.f32.mrf.mxu0
        %v799 = vadd.f32 0.0, %v798
        %v800 = vpop.f32.mrf.mxu0
        %v801 = vadd.f32 0.0, %v800
        %802 = vmatmul.bf16.gmra.mxu0 %v549
        %v803 = vpop.f32.mrf.mxu0
        %v804 = vadd.f32 0.0, %v803
        %v805 = vpop.f32.mrf.mxu0
        %v806 = vadd.f32 0.0, %v805
        %807 = vdwg.mxu0
        %808 = vmatpush.bf16.msra.mxu0 %v685
        %809 = vmatpush.bf16.msra.mxu0 %v682
        %810 = vmatpush.bf16.msra.mxu0 %v679
        %811 = vmatpush.bf16.msra.mxu0 %v676
        %812 = vmatpush.bf16.msra.mxu0 %v673
        %813 = vmatpush.bf16.msra.mxu0 %v670
        %814 = vmatpush.bf16.msra.mxu0 %v667
        %815 = vmatpush.bf16.msra.mxu0 %v664
        %816 = vmatmul.bf16.gmra.mxu0 %v542
        %v817 = vpop.f32.mrf.mxu0
        %v818 = vadd.f32 0.0, %v817
        %v819 = vpop.f32.mrf.mxu0
        %v820 = vadd.f32 0.0, %v819
        %821 = vmatmul.bf16.gmra.mxu0 %v543
        %v822 = vpop.f32.mrf.mxu0
        %v823 = vadd.f32 0.0, %v822
        %v824 = vpop.f32.mrf.mxu0
        %v825 = vadd.f32 0.0, %v824
        %826 = vmatmul.bf16.gmra.mxu0 %v544
        %v827 = vpop.f32.mrf.mxu0
        %v828 = vadd.f32 0.0, %v827
        %v829 = vpop.f32.mrf.mxu0
        %v830 = vadd.f32 0.0, %v829
        %831 = vmatmul.bf16.gmra.mxu0 %v545
        %v832 = vpop.f32.mrf.mxu0
        %v833 = vadd.f32 0.0, %v832
        %v834 = vpop.f32.mrf.mxu0
        %v835 = vadd.f32 0.0, %v834
        %836 = vmatmul.bf16.gmra.mxu0 %v546
        %v837 = vpop.f32.mrf.mxu0
        %v838 = vadd.f32 0.0, %v837
        %v839 = vpop.f32.mrf.mxu0
        %v840 = vadd.f32 0.0, %v839
        %841 = vmatmul.bf16.gmra.mxu0 %v547
        %v842 = vpop.f32.mrf.mxu0
        %v843 = vadd.f32 0.0, %v842
        %v844 = vpop.f32.mrf.mxu0
        %v845 = vadd.f32 0.0, %v844
        %846 = vmatmul.bf16.gmra.mxu0 %v548
        %v847 = vpop.f32.mrf.mxu0
        %v848 = vadd.f32 0.0, %v847
        %v849 = vpop.f32.mrf.mxu0
        %v850 = vadd.f32 0.0, %v849
        %851 = vmatmul.bf16.gmra.mxu0 %v549
        %v852 = vpop.f32.mrf.mxu0
        %v853 = vadd.f32 0.0, %v852
        %v854 = vpop.f32.mrf.mxu0
        %v855 = vadd.f32 0.0, %v854
        %856 = vdwg.mxu0
        %v857 = vpack.c.bf16 %v720, %v720
        %v858 = vpack.c.bf16 %v722, %v722
        %v859 = vpack.c.bf16 %v725, %v725
        %v860 = vpack.c.bf16 %v727, %v727
        %v861 = vpack.c.bf16 %v730, %v730
        %v862 = vpack.c.bf16 %v732, %v732
        %v863 = vpack.c.bf16 %v735, %v735
        %v864 = vpack.c.bf16 %v737, %v737
        %v865 = vpack.c.bf16 %v740, %v740
        %v866 = vpack.c.bf16 %v742, %v742
        %v867 = vpack.c.bf16 %v745, %v745
        %v868 = vpack.c.bf16 %v747, %v747
        %v869 = vpack.c.bf16 %v750, %v750
        %v870 = vpack.c.bf16 %v752, %v752
        %v871 = vpack.c.bf16 %v755, %v755
        %v872 = vpack.c.bf16 %v757, %v757
        %v873 = vpack.c.bf16 %v769, %v769
        %v874 = vpack.c.bf16 %v771, %v771
        %v875 = vpack.c.bf16 %v774, %v774
        %v876 = vpack.c.bf16 %v776, %v776
        %v877 = vpack.c.bf16 %v779, %v779
        %v878 = vpack.c.bf16 %v781, %v781
        %v879 = vpack.c.bf16 %v784, %v784
        %v880 = vpack.c.bf16 %v786, %v786
        %v881 = vpack.c.bf16 %v789, %v789
        %v882 = vpack.c.bf16 %v791, %v791
        %v883 = vpack.c.bf16 %v794, %v794
        %v884 = vpack.c.bf16 %v796, %v796
        %v885 = vpack.c.bf16 %v799, %v799
        %v886 = vpack.c.bf16 %v801, %v801
        %v887 = vpack.c.bf16 %v804, %v804
        %v888 = vpack.c.bf16 %v806, %v806
        %v889 = vpack.c.bf16 %v818, %v818
        %v890 = vpack.c.bf16 %v820, %v820
        %v891 = vpack.c.bf16 %v823, %v823
        %v892 = vpack.c.bf16 %v825, %v825
        %v893 = vpack.c.bf16 %v828, %v828
        %v894 = vpack.c.bf16 %v830, %v830
        %v895 = vpack.c.bf16 %v833, %v833
        %v896 = vpack.c.bf16 %v835, %v835
        %v897 = vpack.c.bf16 %v838, %v838
        %v898 = vpack.c.bf16 %v840, %v840
        %v899 = vpack.c.bf16 %v843, %v843
        %v900 = vpack.c.bf16 %v845, %v845
        %v901 = vpack.c.bf16 %v848, %v848
        %v902 = vpack.c.bf16 %v850, %v850
        %v903 = vpack.c.bf16 %v853, %v853
        %v904 = vpack.c.bf16 %v855, %v855
        %v907 = vunpack.c.l.b16 %v857
        %v908 = vunpack.c.l.b16 %v858
        %v909 = vpack.c.b16 %v908, %v907
        %v912 = vunpack.c.l.b16 %v873
        %v913 = vunpack.c.l.b16 %v874
        %v914 = vpack.c.b16 %v913, %v912
        %vm915 = vcmask 261120
        %v917 = vsel %vm915, %v909, 0
        %v920 = vsel %vm915, %v914, 0
        %922 = vmatpush.bf16.xpose.msra.mxu0 0
        %923 = vmatpush.bf16.xpose.msra.mxu0 0
        %924 = vmatpush.bf16.xpose.msra.mxu0 0
        %925 = vmatpush.bf16.xpose.msra.mxu0 0
        %926 = vmatpush.bf16.xpose.msra.mxu0 0
        %927 = vmatpush.bf16.xpose.msra.mxu0 0
        %928 = vmatpush.bf16.xpose.msra.mxu0 0
        %929 = vmatpush.bf16.xpose.msra.mxu0 %v920
        %930 = vmatmul.bf16.gmra.mxu0 %v917
        %v931 = vpop.f32.mrf.mxu0
        %v932 = vadd.f32 0.0, %v931
        %v933 = vpop.f32.mrf.mxu0
        %v934 = vadd.f32 0.0, %v933
        %935 = vdwg.mxu0
        %v938 = vunpack.c.l.b16 %v859
        %v939 = vunpack.c.l.b16 %v860
        %v940 = vpack.c.b16 %v939, %v938
        %v943 = vunpack.c.l.b16 %v875
        %v944 = vunpack.c.l.b16 %v876
        %v945 = vpack.c.b16 %v944, %v943
        %v947 = vsel %vm915, %v940, 0
        %v950 = vsel %vm915, %v945, 0
        %952 = vmatpush.bf16.xpose.msra.mxu0 0
        %953 = vmatpush.bf16.xpose.msra.mxu0 0
        %954 = vmatpush.bf16.xpose.msra.mxu0 0
        %955 = vmatpush.bf16.xpose.msra.mxu0 0
        %956 = vmatpush.bf16.xpose.msra.mxu0 0
        %957 = vmatpush.bf16.xpose.msra.mxu0 0
        %958 = vmatpush.bf16.xpose.msra.mxu0 0
        %959 = vmatpush.bf16.xpose.msra.mxu0 %v950
        %960 = vmatmul.bf16.gmra.mxu0 %v947
        %v961 = vpop.f32.mrf.mxu0
        %v962 = vadd.f32 0.0, %v961
        %v963 = vpop.f32.mrf.mxu0
        %v964 = vadd.f32 0.0, %v963
        %965 = vdwg.mxu0
        %v968 = vunpack.c.l.b16 %v861
        %v969 = vunpack.c.l.b16 %v862
        %v970 = vpack.c.b16 %v969, %v968
        %v973 = vunpack.c.l.b16 %v877
        %v974 = vunpack.c.l.b16 %v878
        %v975 = vpack.c.b16 %v974, %v973
        %v977 = vsel %vm915, %v970, 0
        %v980 = vsel %vm915, %v975, 0
        %982 = vmatpush.bf16.xpose.msra.mxu0 0
        %983 = vmatpush.bf16.xpose.msra.mxu0 0
        %984 = vmatpush.bf16.xpose.msra.mxu0 0
        %985 = vmatpush.bf16.xpose.msra.mxu0 0
        %986 = vmatpush.bf16.xpose.msra.mxu0 0
        %987 = vmatpush.bf16.xpose.msra.mxu0 0
        %988 = vmatpush.bf16.xpose.msra.mxu0 0
        %989 = vmatpush.bf16.xpose.msra.mxu0 %v980
        %990 = vmatmul.bf16.gmra.mxu0 %v977
        %v991 = vpop.f32.mrf.mxu0
        %v992 = vadd.f32 0.0, %v991
        %v993 = vpop.f32.mrf.mxu0
        %v994 = vadd.f32 0.0, %v993
        %995 = vdwg.mxu0
        %v998 = vunpack.c.l.b16 %v863
        %v999 = vunpack.c.l.b16 %v864
        %v1000 = vpack.c.b16 %v999, %v998
        %v1003 = vunpack.c.l.b16 %v879
        %v1004 = vunpack.c.l.b16 %v880
        %v1005 = vpack.c.b16 %v1004, %v1003
        %v1007 = vsel %vm915, %v1000, 0
        %v1010 = vsel %vm915, %v1005, 0
        %1012 = vmatpush.bf16.xpose.msra.mxu0 0
        %1013 = vmatpush.bf16.xpose.msra.mxu0 0
        %1014 = vmatpush.bf16.xpose.msra.mxu0 0
        %1015 = vmatpush.bf16.xpose.msra.mxu0 0
        %1016 = vmatpush.bf16.xpose.msra.mxu0 0
        %1017 = vmatpush.bf16.xpose.msra.mxu0 0
        %1018 = vmatpush.bf16.xpose.msra.mxu0 0
        %1019 = vmatpush.bf16.xpose.msra.mxu0 %v1010
        %1020 = vmatmul.bf16.gmra.mxu0 %v1007
        %v1021 = vpop.f32.mrf.mxu0
        %v1022 = vadd.f32 0.0, %v1021
        %v1023 = vpop.f32.mrf.mxu0
        %v1024 = vadd.f32 0.0, %v1023
        %1025 = vdwg.mxu0
        %v1028 = vunpack.c.l.b16 %v865
        %v1029 = vunpack.c.l.b16 %v866
        %v1030 = vpack.c.b16 %v1029, %v1028
        %v1033 = vunpack.c.l.b16 %v881
        %v1034 = vunpack.c.l.b16 %v882
        %v1035 = vpack.c.b16 %v1034, %v1033
        %v1037 = vsel %vm915, %v1030, 0
        %v1040 = vsel %vm915, %v1035, 0
        %1042 = vmatpush.bf16.xpose.msra.mxu0 0
        %1043 = vmatpush.bf16.xpose.msra.mxu0 0
        %1044 = vmatpush.bf16.xpose.msra.mxu0 0
        %1045 = vmatpush.bf16.xpose.msra.mxu0 0
        %1046 = vmatpush.bf16.xpose.msra.mxu0 0
        %1047 = vmatpush.bf16.xpose.msra.mxu0 0
        %1048 = vmatpush.bf16.xpose.msra.mxu0 0
        %1049 = vmatpush.bf16.xpose.msra.mxu0 %v1040
        %1050 = vmatmul.bf16.gmra.mxu0 %v1037
        %v1051 = vpop.f32.mrf.mxu0
        %v1052 = vadd.f32 0.0, %v1051
        %v1053 = vpop.f32.mrf.mxu0
        %v1054 = vadd.f32 0.0, %v1053
        %1055 = vdwg.mxu0
        %v1058 = vunpack.c.l.b16 %v867
        %v1059 = vunpack.c.l.b16 %v868
        %v1060 = vpack.c.b16 %v1059, %v1058
        %v1063 = vunpack.c.l.b16 %v883
        %v1064 = vunpack.c.l.b16 %v884
        %v1065 = vpack.c.b16 %v1064, %v1063
        %v1067 = vsel %vm915, %v1060, 0
        %v1070 = vsel %vm915, %v1065, 0
        %1072 = vmatpush.bf16.xpose.msra.mxu0 0
        %1073 = vmatpush.bf16.xpose.msra.mxu0 0
        %1074 = vmatpush.bf16.xpose.msra.mxu0 0
        %1075 = vmatpush.bf16.xpose.msra.mxu0 0
        %1076 = vmatpush.bf16.xpose.msra.mxu0 0
        %1077 = vmatpush.bf16.xpose.msra.mxu0 0
        %1078 = vmatpush.bf16.xpose.msra.mxu0 0
        %1079 = vmatpush.bf16.xpose.msra.mxu0 %v1070
        %1080 = vmatmul.bf16.gmra.mxu0 %v1067
        %v1081 = vpop.f32.mrf.mxu0
        %v1082 = vadd.f32 0.0, %v1081
        %v1083 = vpop.f32.mrf.mxu0
        %v1084 = vadd.f32 0.0, %v1083
        %1085 = vdwg.mxu0
        %v1088 = vunpack.c.l.b16 %v869
        %v1089 = vunpack.c.l.b16 %v870
        %v1090 = vpack.c.b16 %v1089, %v1088
        %v1093 = vunpack.c.l.b16 %v885
        %v1094 = vunpack.c.l.b16 %v886
        %v1095 = vpack.c.b16 %v1094, %v1093
        %v1097 = vsel %vm915, %v1090, 0
        %v1100 = vsel %vm915, %v1095, 0
        %1102 = vmatpush.bf16.xpose.msra.mxu0 0
        %1103 = vmatpush.bf16.xpose.msra.mxu0 0
        %1104 = vmatpush.bf16.xpose.msra.mxu0 0
        %1105 = vmatpush.bf16.xpose.msra.mxu0 0
        %1106 = vmatpush.bf16.xpose.msra.mxu0 0
        %1107 = vmatpush.bf16.xpose.msra.mxu0 0
        %1108 = vmatpush.bf16.xpose.msra.mxu0 0
        %1109 = vmatpush.bf16.xpose.msra.mxu0 %v1100
        %1110 = vmatmul.bf16.gmra.mxu0 %v1097
        %v1111 = vpop.f32.mrf.mxu0
        %v1112 = vadd.f32 0.0, %v1111
        %v1113 = vpop.f32.mrf.mxu0
        %v1114 = vadd.f32 0.0, %v1113
        %1115 = vdwg.mxu0
        %v1118 = vunpack.c.l.b16 %v871
        %v1119 = vunpack.c.l.b16 %v872
        %v1120 = vpack.c.b16 %v1119, %v1118
        %v1123 = vunpack.c.l.b16 %v887
        %v1124 = vunpack.c.l.b16 %v888
        %v1125 = vpack.c.b16 %v1124, %v1123
        %v1127 = vsel %vm915, %v1120, 0
        %v1130 = vsel %vm915, %v1125, 0
        %1132 = vmatpush.bf16.xpose.msra.mxu0 0
        %1133 = vmatpush.bf16.xpose.msra.mxu0 0
        %1134 = vmatpush.bf16.xpose.msra.mxu0 0
        %1135 = vmatpush.bf16.xpose.msra.mxu0 0
        %1136 = vmatpush.bf16.xpose.msra.mxu0 0
        %1137 = vmatpush.bf16.xpose.msra.mxu0 0
        %1138 = vmatpush.bf16.xpose.msra.mxu0 0
        %1139 = vmatpush.bf16.xpose.msra.mxu0 %v1130
        %1140 = vmatmul.bf16.gmra.mxu0 %v1127
        %v1141 = vpop.f32.mrf.mxu0
        %v1142 = vadd.f32 0.0, %v1141
        %v1143 = vpop.f32.mrf.mxu0
        %v1144 = vadd.f32 0.0, %v1143
        %1145 = vdwg.mxu0
        %vm1146 = vcmask 130048
        %v1147 = vsel %vm1146, %v932, -inf
        %1148 = vmax.xlane.f32.xlu0 %v1147
        %v1149 = vpop.xlane.xlu0 %1148
        %v1150 = vsel %vm1146, %v934, -inf
        %1151 = vmax.xlane.f32.xlu0 %v1150
        %v1152 = vpop.xlane.xlu0 %1151
        %v1153 = vsel %vm1146, %v962, -inf
        %1154 = vmax.xlane.f32.xlu0 %v1153
        %v1155 = vpop.xlane.xlu0 %1154
        %v1156 = vsel %vm1146, %v964, -inf
        %1157 = vmax.xlane.f32.xlu0 %v1156
        %v1158 = vpop.xlane.xlu0 %1157
        %v1159 = vsel %vm1146, %v992, -inf
        %1160 = vmax.xlane.f32.xlu0 %v1159
        %v1161 = vpop.xlane.xlu0 %1160
        %v1162 = vsel %vm1146, %v994, -inf
        %1163 = vmax.xlane.f32.xlu0 %v1162
        %v1164 = vpop.xlane.xlu0 %1163
        %v1165 = vsel %vm1146, %v1022, -inf
        %1166 = vmax.xlane.f32.xlu0 %v1165
        %v1167 = vpop.xlane.xlu0 %1166
        %v1168 = vsel %vm1146, %v1024, -inf
        %1169 = vmax.xlane.f32.xlu0 %v1168
        %v1170 = vpop.xlane.xlu0 %1169
        %v1171 = vsel %vm1146, %v1052, -inf
        %1172 = vmax.xlane.f32.xlu0 %v1171
        %v1173 = vpop.xlane.xlu0 %1172
        %v1174 = vsel %vm1146, %v1054, -inf
        %1175 = vmax.xlane.f32.xlu0 %v1174
        %v1176 = vpop.xlane.xlu0 %1175
        %v1177 = vsel %vm1146, %v1082, -inf
        %1178 = vmax.xlane.f32.xlu0 %v1177
        %v1179 = vpop.xlane.xlu0 %1178
        %v1180 = vsel %vm1146, %v1084, -inf
        %1181 = vmax.xlane.f32.xlu0 %v1180
        %v1182 = vpop.xlane.xlu0 %1181
        %v1183 = vsel %vm1146, %v1112, -inf
        %1184 = vmax.xlane.f32.xlu0 %v1183
        %v1185 = vpop.xlane.xlu0 %1184
        %v1186 = vsel %vm1146, %v1114, -inf
        %1187 = vmax.xlane.f32.xlu0 %v1186
        %v1188 = vpop.xlane.xlu0 %1187
        %v1189 = vsel %vm1146, %v1142, -inf
        %1190 = vmax.xlane.f32.xlu0 %v1189
        %v1191 = vpop.xlane.xlu0 %1190
        %v1192 = vsel %vm1146, %v1144, -inf
        %1193 = vmax.xlane.f32.xlu0 %v1192
        %v1194 = vpop.xlane.xlu0 %1193
        %v1195 = vsub.f32 %v932, %v1149
        %v1196 = vsub.f32 %v934, %v1152
        %v1197 = vsub.f32 %v962, %v1155
        %v1198 = vsub.f32 %v964, %v1158
        %v1199 = vsub.f32 %v992, %v1161
        %v1200 = vsub.f32 %v994, %v1164
        %v1201 = vsub.f32 %v1022, %v1167
        %v1202 = vsub.f32 %v1024, %v1170
        %v1203 = vsub.f32 %v1052, %v1173
        %v1204 = vsub.f32 %v1054, %v1176
        %v1205 = vsub.f32 %v1082, %v1179
        %v1206 = vsub.f32 %v1084, %v1182
        %v1207 = vsub.f32 %v1112, %v1185
        %v1208 = vsub.f32 %v1114, %v1188
        %v1209 = vsub.f32 %v1142, %v1191
        %v1210 = vsub.f32 %v1144, %v1194
        %v1211 = vmul.f32 %v1195, 1.442695
        %v1212 = vpow.pop %v1211
        %v1213 = vmul.f32 %v1196, 1.442695
        %v1214 = vpow.pop %v1213
        %v1215 = vmul.f32 %v1197, 1.442695
        %v1216 = vpow.pop %v1215
        %v1217 = vmul.f32 %v1198, 1.442695
        %v1218 = vpow.pop %v1217
        %v1219 = vmul.f32 %v1199, 1.442695
        %v1220 = vpow.pop %v1219
        %v1221 = vmul.f32 %v1200, 1.442695
        %v1222 = vpow.pop %v1221
        %v1223 = vmul.f32 %v1201, 1.442695
        %v1224 = vpow.pop %v1223
        %v1225 = vmul.f32 %v1202, 1.442695
        %v1226 = vpow.pop %v1225
        %v1227 = vmul.f32 %v1203, 1.442695
        %v1228 = vpow.pop %v1227
        %v1229 = vmul.f32 %v1204, 1.442695
        %v1230 = vpow.pop %v1229
        %v1231 = vmul.f32 %v1205, 1.442695
        %v1232 = vpow.pop %v1231
        %v1233 = vmul.f32 %v1206, 1.442695
        %v1234 = vpow.pop %v1233
        %v1235 = vmul.f32 %v1207, 1.442695
        %v1236 = vpow.pop %v1235
        %v1237 = vmul.f32 %v1208, 1.442695
        %v1238 = vpow.pop %v1237
        %v1239 = vmul.f32 %v1209, 1.442695
        %v1240 = vpow.pop %v1239
        %v1241 = vmul.f32 %v1210, 1.442695
        %v1242 = vpow.pop %v1241
        %v1243 = vsel %vm1146, %v1212, 0.0
        %1244 = vadd.xlane.f32.xlu0 %v1243
        %v1245 = vpop.xlane.xlu0 %1244
        %v1246 = vsel %vm1146, %v1214, 0.0
        %1247 = vadd.xlane.f32.xlu0 %v1246
        %v1248 = vpop.xlane.xlu0 %1247
        %v1249 = vsel %vm1146, %v1216, 0.0
        %1250 = vadd.xlane.f32.xlu0 %v1249
        %v1251 = vpop.xlane.xlu0 %1250
        %v1252 = vsel %vm1146, %v1218, 0.0
        %1253 = vadd.xlane.f32.xlu0 %v1252
        %v1254 = vpop.xlane.xlu0 %1253
        %v1255 = vsel %vm1146, %v1220, 0.0
        %1256 = vadd.xlane.f32.xlu0 %v1255
        %v1257 = vpop.xlane.xlu0 %1256
        %v1258 = vsel %vm1146, %v1222, 0.0
        %1259 = vadd.xlane.f32.xlu0 %v1258
        %v1260 = vpop.xlane.xlu0 %1259
        %v1261 = vsel %vm1146, %v1224, 0.0
        %1262 = vadd.xlane.f32.xlu0 %v1261
        %v1263 = vpop.xlane.xlu0 %1262
        %v1264 = vsel %vm1146, %v1226, 0.0
        %1265 = vadd.xlane.f32.xlu0 %v1264
        %v1266 = vpop.xlane.xlu0 %1265
        %v1267 = vsel %vm1146, %v1228, 0.0
        %1268 = vadd.xlane.f32.xlu0 %v1267
        %v1269 = vpop.xlane.xlu0 %1268
        %v1270 = vsel %vm1146, %v1230, 0.0
        %1271 = vadd.xlane.f32.xlu0 %v1270
        %v1272 = vpop.xlane.xlu0 %1271
        %v1273 = vsel %vm1146, %v1232, 0.0
        %1274 = vadd.xlane.f32.xlu0 %v1273
        %v1275 = vpop.xlane.xlu0 %1274
        %v1276 = vsel %vm1146, %v1234, 0.0
        %1277 = vadd.xlane.f32.xlu0 %v1276
        %v1278 = vpop.xlane.xlu0 %1277
        %v1279 = vsel %vm1146, %v1236, 0.0
        %1280 = vadd.xlane.f32.xlu0 %v1279
        %v1281 = vpop.xlane.xlu0 %1280
        %v1282 = vsel %vm1146, %v1238, 0.0
        %1283 = vadd.xlane.f32.xlu0 %v1282
        %v1284 = vpop.xlane.xlu0 %1283
        %v1285 = vsel %vm1146, %v1240, 0.0
        %1286 = vadd.xlane.f32.xlu0 %v1285
        %v1287 = vpop.xlane.xlu0 %1286
        %v1288 = vsel %vm1146, %v1242, 0.0
        %1289 = vadd.xlane.f32.xlu0 %v1288
        %v1290 = vpop.xlane.xlu0 %1289
        %v1291 = vrcp.pop %v1245
        %v1292 = vrcp.pop %v1248
        %v1293 = vrcp.pop %v1251
        %v1294 = vrcp.pop %v1254
        %v1295 = vrcp.pop %v1257
        %v1296 = vrcp.pop %v1260
        %v1297 = vrcp.pop %v1263
        %v1298 = vrcp.pop %v1266
        %v1299 = vrcp.pop %v1269
        %v1300 = vrcp.pop %v1272
        %v1301 = vrcp.pop %v1275
        %v1302 = vrcp.pop %v1278
        %v1303 = vrcp.pop %v1281
        %v1304 = vrcp.pop %v1284
        %v1305 = vrcp.pop %v1287
        %v1306 = vrcp.pop %v1290
        %v1307 = vmul.f32 %v1212, %v1291
        %v1308 = vmul.f32 %v1214, %v1292
        %v1309 = vmul.f32 %v1216, %v1293
        %v1310 = vmul.f32 %v1218, %v1294
        %v1311 = vmul.f32 %v1220, %v1295
        %v1312 = vmul.f32 %v1222, %v1296
        %v1313 = vmul.f32 %v1224, %v1297
        %v1314 = vmul.f32 %v1226, %v1298
        %v1315 = vmul.f32 %v1228, %v1299
        %v1316 = vmul.f32 %v1230, %v1300
        %v1317 = vmul.f32 %v1232, %v1301
        %v1318 = vmul.f32 %v1234, %v1302
        %v1319 = vmul.f32 %v1236, %v1303
        %v1320 = vmul.f32 %v1238, %v1304
        %v1321 = vmul.f32 %v1240, %v1305
        %v1322 = vmul.f32 %v1242, %v1306
        %v1323 = vpack.c.bf16 %v1307, %v1307
        %v1324 = vpack.c.bf16 %v1308, %v1308
        %v1325 = vpack.c.bf16 %v1309, %v1309
        %v1326 = vpack.c.bf16 %v1310, %v1310
        %v1327 = vpack.c.bf16 %v1311, %v1311
        %v1328 = vpack.c.bf16 %v1312, %v1312
        %v1329 = vpack.c.bf16 %v1313, %v1313
        %v1330 = vpack.c.bf16 %v1314, %v1314
        %v1331 = vpack.c.bf16 %v1315, %v1315
        %v1332 = vpack.c.bf16 %v1316, %v1316
        %v1333 = vpack.c.bf16 %v1317, %v1317
        %v1334 = vpack.c.bf16 %v1318, %v1318
        %v1335 = vpack.c.bf16 %v1319, %v1319
        %v1336 = vpack.c.bf16 %v1320, %v1320
        %v1337 = vpack.c.bf16 %v1321, %v1321
        %v1338 = vpack.c.bf16 %v1322, %v1322
        %v1341 = vunpack.c.l.b16 %v1323
        %v1342 = vunpack.c.l.b16 %v1324
        %v1343 = vpack.c.b16 %v1342, %v1341
        %v1346 = vunpack.c.l.b16 %v889
        %v1347 = vunpack.c.l.b16 %v890
        %v1348 = vpack.c.b16 %v1347, %v1346
        %v1351 = vsel %vm1146, %v1343, 0
        %1353 = vmatpush.bf16.msra.mxu0 0
        %1354 = vmatpush.bf16.msra.mxu0 0
        %1355 = vmatpush.bf16.msra.mxu0 0
        %1356 = vmatpush.bf16.msra.mxu0 0
        %1357 = vmatpush.bf16.msra.mxu0 0
        %1358 = vmatpush.bf16.msra.mxu0 0
        %1359 = vmatpush.bf16.msra.mxu0 0
        %1360 = vmatpush.bf16.msra.mxu0 %v1348
        %1361 = vmatmul.bf16.gmra.mxu0 %v1351
        %v1362 = vpop.f32.mrf.mxu0
        %v1363 = vadd.f32 0.0, %v1362
        %v1364 = vpop.f32.mrf.mxu0
        %v1365 = vadd.f32 0.0, %v1364
        %1366 = vdwg.mxu0
        %v1369 = vunpack.c.l.b16 %v1325
        %v1370 = vunpack.c.l.b16 %v1326
        %v1371 = vpack.c.b16 %v1370, %v1369
        %v1374 = vunpack.c.l.b16 %v891
        %v1375 = vunpack.c.l.b16 %v892
        %v1376 = vpack.c.b16 %v1375, %v1374
        %v1379 = vsel %vm1146, %v1371, 0
        %1381 = vmatpush.bf16.msra.mxu0 0
        %1382 = vmatpush.bf16.msra.mxu0 0
        %1383 = vmatpush.bf16.msra.mxu0 0
        %1384 = vmatpush.bf16.msra.mxu0 0
        %1385 = vmatpush.bf16.msra.mxu0 0
        %1386 = vmatpush.bf16.msra.mxu0 0
        %1387 = vmatpush.bf16.msra.mxu0 0
        %1388 = vmatpush.bf16.msra.mxu0 %v1376
        %1389 = vmatmul.bf16.gmra.mxu0 %v1379
        %v1390 = vpop.f32.mrf.mxu0
        %v1391 = vadd.f32 0.0, %v1390
        %v1392 = vpop.f32.mrf.mxu0
        %v1393 = vadd.f32 0.0, %v1392
        %1394 = vdwg.mxu0
        %v1397 = vunpack.c.l.b16 %v1327
        %v1398 = vunpack.c.l.b16 %v1328
        %v1399 = vpack.c.b16 %v1398, %v1397
        %v1402 = vunpack.c.l.b16 %v893
        %v1403 = vunpack.c.l.b16 %v894
        %v1404 = vpack.c.b16 %v1403, %v1402
        %v1407 = vsel %vm1146, %v1399, 0
        %1409 = vmatpush.bf16.msra.mxu0 0
        %1410 = vmatpush.bf16.msra.mxu0 0
        %1411 = vmatpush.bf16.msra.mxu0 0
        %1412 = vmatpush.bf16.msra.mxu0 0
        %1413 = vmatpush.bf16.msra.mxu0 0
        %1414 = vmatpush.bf16.msra.mxu0 0
        %1415 = vmatpush.bf16.msra.mxu0 0
        %1416 = vmatpush.bf16.msra.mxu0 %v1404
        %1417 = vmatmul.bf16.gmra.mxu0 %v1407
        %v1418 = vpop.f32.mrf.mxu0
        %v1419 = vadd.f32 0.0, %v1418
        %v1420 = vpop.f32.mrf.mxu0
        %v1421 = vadd.f32 0.0, %v1420
        %1422 = vdwg.mxu0
        %v1425 = vunpack.c.l.b16 %v1329
        %v1426 = vunpack.c.l.b16 %v1330
        %v1427 = vpack.c.b16 %v1426, %v1425
        %v1430 = vunpack.c.l.b16 %v895
        %v1431 = vunpack.c.l.b16 %v896
        %v1432 = vpack.c.b16 %v1431, %v1430
        %v1435 = vsel %vm1146, %v1427, 0
        %1437 = vmatpush.bf16.msra.mxu0 0
        %1438 = vmatpush.bf16.msra.mxu0 0
        %1439 = vmatpush.bf16.msra.mxu0 0
        %1440 = vmatpush.bf16.msra.mxu0 0
        %1441 = vmatpush.bf16.msra.mxu0 0
        %1442 = vmatpush.bf16.msra.mxu0 0
        %1443 = vmatpush.bf16.msra.mxu0 0
        %1444 = vmatpush.bf16.msra.mxu0 %v1432
        %1445 = vmatmul.bf16.gmra.mxu0 %v1435
        %v1446 = vpop.f32.mrf.mxu0
        %v1447 = vadd.f32 0.0, %v1446
        %v1448 = vpop.f32.mrf.mxu0
        %v1449 = vadd.f32 0.0, %v1448
        %1450 = vdwg.mxu0
        %v1453 = vunpack.c.l.b16 %v1331
        %v1454 = vunpack.c.l.b16 %v1332
        %v1455 = vpack.c.b16 %v1454, %v1453
        %v1458 = vunpack.c.l.b16 %v897
        %v1459 = vunpack.c.l.b16 %v898
        %v1460 = vpack.c.b16 %v1459, %v1458
        %v1463 = vsel %vm1146, %v1455, 0
        %1465 = vmatpush.bf16.msra.mxu0 0
        %1466 = vmatpush.bf16.msra.mxu0 0
        %1467 = vmatpush.bf16.msra.mxu0 0
        %1468 = vmatpush.bf16.msra.mxu0 0
        %1469 = vmatpush.bf16.msra.mxu0 0
        %1470 = vmatpush.bf16.msra.mxu0 0
        %1471 = vmatpush.bf16.msra.mxu0 0
        %1472 = vmatpush.bf16.msra.mxu0 %v1460
        %1473 = vmatmul.bf16.gmra.mxu0 %v1463
        %v1474 = vpop.f32.mrf.mxu0
        %v1475 = vadd.f32 0.0, %v1474
        %v1476 = vpop.f32.mrf.mxu0
        %v1477 = vadd.f32 0.0, %v1476
        %1478 = vdwg.mxu0
        %v1481 = vunpack.c.l.b16 %v1333
        %v1482 = vunpack.c.l.b16 %v1334
        %v1483 = vpack.c.b16 %v1482, %v1481
        %v1486 = vunpack.c.l.b16 %v899
        %v1487 = vunpack.c.l.b16 %v900
        %v1488 = vpack.c.b16 %v1487, %v1486
        %v1491 = vsel %vm1146, %v1483, 0
        %1493 = vmatpush.bf16.msra.mxu0 0
        %1494 = vmatpush.bf16.msra.mxu0 0
        %1495 = vmatpush.bf16.msra.mxu0 0
        %1496 = vmatpush.bf16.msra.mxu0 0
        %1497 = vmatpush.bf16.msra.mxu0 0
        %1498 = vmatpush.bf16.msra.mxu0 0
        %1499 = vmatpush.bf16.msra.mxu0 0
        %1500 = vmatpush.bf16.msra.mxu0 %v1488
        %1501 = vmatmul.bf16.gmra.mxu0 %v1491
        %v1502 = vpop.f32.mrf.mxu0
        %v1503 = vadd.f32 0.0, %v1502
        %v1504 = vpop.f32.mrf.mxu0
        %v1505 = vadd.f32 0.0, %v1504
        %1506 = vdwg.mxu0
        %v1509 = vunpack.c.l.b16 %v1335
        %v1510 = vunpack.c.l.b16 %v1336
        %v1511 = vpack.c.b16 %v1510, %v1509
        %v1514 = vunpack.c.l.b16 %v901
        %v1515 = vunpack.c.l.b16 %v902
        %v1516 = vpack.c.b16 %v1515, %v1514
        %v1519 = vsel %vm1146, %v1511, 0
        %1521 = vmatpush.bf16.msra.mxu0 0
        %1522 = vmatpush.bf16.msra.mxu0 0
        %1523 = vmatpush.bf16.msra.mxu0 0
        %1524 = vmatpush.bf16.msra.mxu0 0
        %1525 = vmatpush.bf16.msra.mxu0 0
        %1526 = vmatpush.bf16.msra.mxu0 0
        %1527 = vmatpush.bf16.msra.mxu0 0
        %1528 = vmatpush.bf16.msra.mxu0 %v1516
        %1529 = vmatmul.bf16.gmra.mxu0 %v1519
        %v1530 = vpop.f32.mrf.mxu0
        %v1531 = vadd.f32 0.0, %v1530
        %v1532 = vpop.f32.mrf.mxu0
        %v1533 = vadd.f32 0.0, %v1532
        %1534 = vdwg.mxu0
        %v1537 = vunpack.c.l.b16 %v1337
        %v1538 = vunpack.c.l.b16 %v1338
        %v1539 = vpack.c.b16 %v1538, %v1537
        %v1542 = vunpack.c.l.b16 %v903
        %v1543 = vunpack.c.l.b16 %v904
        %v1544 = vpack.c.b16 %v1543, %v1542
        %v1547 = vsel %vm1146, %v1539, 0
        %1549 = vmatpush.bf16.msra.mxu0 0
        %1550 = vmatpush.bf16.msra.mxu0 0
        %1551 = vmatpush.bf16.msra.mxu0 0
        %1552 = vmatpush.bf16.msra.mxu0 0
        %1553 = vmatpush.bf16.msra.mxu0 0
        %1554 = vmatpush.bf16.msra.mxu0 0
        %1555 = vmatpush.bf16.msra.mxu0 0
        %1556 = vmatpush.bf16.msra.mxu0 %v1544
        %1557 = vmatmul.bf16.gmra.mxu0 %v1547
        %v1558 = vpop.f32.mrf.mxu0
        %v1559 = vadd.f32 0.0, %v1558
        %v1560 = vpop.f32.mrf.mxu0
        %v1561 = vadd.f32 0.0, %v1560
        %1562 = vdwg.mxu0
        %1563 = vrot.lane.b32.xlu0 %v909, 96
        %v1564 = vpop.permute.xlu0 %1563
        %1565 = vrot.lane.b32.xlu0 %v914, 96
        %v1566 = vpop.permute.xlu0 %1565
        %v1568 = vsel %vm915, %v1564, 0
        %v1571 = vsel %vm915, %v1566, 0
        %1573 = vmatpush.bf16.xpose.msra.mxu0 0
        %1574 = vmatpush.bf16.xpose.msra.mxu0 0
        %1575 = vmatpush.bf16.xpose.msra.mxu0 0
        %1576 = vmatpush.bf16.xpose.msra.mxu0 0
        %1577 = vmatpush.bf16.xpose.msra.mxu0 0
        %1578 = vmatpush.bf16.xpose.msra.mxu0 0
        %1579 = vmatpush.bf16.xpose.msra.mxu0 0
        %1580 = vmatpush.bf16.xpose.msra.mxu0 %v1571
        %1581 = vmatmul.bf16.gmra.mxu0 %v1568
        %v1582 = vpop.f32.mrf.mxu0
        %v1583 = vadd.f32 0.0, %v1582
        %v1584 = vpop.f32.mrf.mxu0
        %v1585 = vadd.f32 0.0, %v1584
        %1586 = vdwg.mxu0
        %1587 = vrot.lane.b32.xlu0 %v940, 96
        %v1588 = vpop.permute.xlu0 %1587
        %1589 = vrot.lane.b32.xlu0 %v945, 96
        %v1590 = vpop.permute.xlu0 %1589
        %v1592 = vsel %vm915, %v1588, 0
        %v1595 = vsel %vm915, %v1590, 0
        %1597 = vmatpush.bf16.xpose.msra.mxu0 0
        %1598 = vmatpush.bf16.xpose.msra.mxu0 0
        %1599 = vmatpush.bf16.xpose.msra.mxu0 0
        %1600 = vmatpush.bf16.xpose.msra.mxu0 0
        %1601 = vmatpush.bf16.xpose.msra.mxu0 0
        %1602 = vmatpush.bf16.xpose.msra.mxu0 0
        %1603 = vmatpush.bf16.xpose.msra.mxu0 0
        %1604 = vmatpush.bf16.xpose.msra.mxu0 %v1595
        %1605 = vmatmul.bf16.gmra.mxu0 %v1592
        %v1606 = vpop.f32.mrf.mxu0
        %v1607 = vadd.f32 0.0, %v1606
        %v1608 = vpop.f32.mrf.mxu0
        %v1609 = vadd.f32 0.0, %v1608
        %1610 = vdwg.mxu0
        %1611 = vrot.lane.b32.xlu0 %v970, 96
        %v1612 = vpop.permute.xlu0 %1611
        %1613 = vrot.lane.b32.xlu0 %v975, 96
        %v1614 = vpop.permute.xlu0 %1613
        %v1616 = vsel %vm915, %v1612, 0
        %v1619 = vsel %vm915, %v1614, 0
        %1621 = vmatpush.bf16.xpose.msra.mxu0 0
        %1622 = vmatpush.bf16.xpose.msra.mxu0 0
        %1623 = vmatpush.bf16.xpose.msra.mxu0 0
        %1624 = vmatpush.bf16.xpose.msra.mxu0 0
        %1625 = vmatpush.bf16.xpose.msra.mxu0 0
        %1626 = vmatpush.bf16.xpose.msra.mxu0 0
        %1627 = vmatpush.bf16.xpose.msra.mxu0 0
        %1628 = vmatpush.bf16.xpose.msra.mxu0 %v1619
        %1629 = vmatmul.bf16.gmra.mxu0 %v1616
        %v1630 = vpop.f32.mrf.mxu0
        %v1631 = vadd.f32 0.0, %v1630
        %v1632 = vpop.f32.mrf.mxu0
        %v1633 = vadd.f32 0.0, %v1632
        %1634 = vdwg.mxu0
        %1635 = vrot.lane.b32.xlu0 %v1000, 96
        %v1636 = vpop.permute.xlu0 %1635
        %1637 = vrot.lane.b32.xlu0 %v1005, 96
        %v1638 = vpop.permute.xlu0 %1637
        %v1640 = vsel %vm915, %v1636, 0
        %v1643 = vsel %vm915, %v1638, 0
        %1645 = vmatpush.bf16.xpose.msra.mxu0 0
        %1646 = vmatpush.bf16.xpose.msra.mxu0 0
        %1647 = vmatpush.bf16.xpose.msra.mxu0 0
        %1648 = vmatpush.bf16.xpose.msra.mxu0 0
        %1649 = vmatpush.bf16.xpose.msra.mxu0 0
        %1650 = vmatpush.bf16.xpose.msra.mxu0 0
        %1651 = vmatpush.bf16.xpose.msra.mxu0 0
        %1652 = vmatpush.bf16.xpose.msra.mxu0 %v1643
        %1653 = vmatmul.bf16.gmra.mxu0 %v1640
        %v1654 = vpop.f32.mrf.mxu0
        %v1655 = vadd.f32 0.0, %v1654
        %v1656 = vpop.f32.mrf.mxu0
        %v1657 = vadd.f32 0.0, %v1656
        %1658 = vdwg.mxu0
        %1659 = vrot.lane.b32.xlu0 %v1030, 96
        %v1660 = vpop.permute.xlu0 %1659
        %1661 = vrot.lane.b32.xlu0 %v1035, 96
        %v1662 = vpop.permute.xlu0 %1661
        %v1664 = vsel %vm915, %v1660, 0
        %v1667 = vsel %vm915, %v1662, 0
        %1669 = vmatpush.bf16.xpose.msra.mxu0 0
        %1670 = vmatpush.bf16.xpose.msra.mxu0 0
        %1671 = vmatpush.bf16.xpose.msra.mxu0 0
        %1672 = vmatpush.bf16.xpose.msra.mxu0 0
        %1673 = vmatpush.bf16.xpose.msra.mxu0 0
        %1674 = vmatpush.bf16.xpose.msra.mxu0 0
        %1675 = vmatpush.bf16.xpose.msra.mxu0 0
        %1676 = vmatpush.bf16.xpose.msra.mxu0 %v1667
        %1677 = vmatmul.bf16.gmra.mxu0 %v1664
        %v1678 = vpop.f32.mrf.mxu0
        %v1679 = vadd.f32 0.0, %v1678
        %v1680 = vpop.f32.mrf.mxu0
        %v1681 = vadd.f32 0.0, %v1680
        %1682 = vdwg.mxu0
        %1683 = vrot.lane.b32.xlu0 %v1060, 96
        %v1684 = vpop.permute.xlu0 %1683
        %1685 = vrot.lane.b32.xlu0 %v1065, 96
        %v1686 = vpop.permute.xlu0 %1685
        %v1688 = vsel %vm915, %v1684, 0
        %v1691 = vsel %vm915, %v1686, 0
        %1693 = vmatpush.bf16.xpose.msra.mxu0 0
        %1694 = vmatpush.bf16.xpose.msra.mxu0 0
        %1695 = vmatpush.bf16.xpose.msra.mxu0 0
        %1696 = vmatpush.bf16.xpose.msra.mxu0 0
        %1697 = vmatpush.bf16.xpose.msra.mxu0 0
        %1698 = vmatpush.bf16.xpose.msra.mxu0 0
        %1699 = vmatpush.bf16.xpose.msra.mxu0 0
        %1700 = vmatpush.bf16.xpose.msra.mxu0 %v1691
        %1701 = vmatmul.bf16.gmra.mxu0 %v1688
        %v1702 = vpop.f32.mrf.mxu0
        %v1703 = vadd.f32 0.0, %v1702
        %v1704 = vpop.f32.mrf.mxu0
        %v1705 = vadd.f32 0.0, %v1704
        %1706 = vdwg.mxu0
        %1707 = vrot.lane.b32.xlu0 %v1090, 96
        %v1708 = vpop.permute.xlu0 %1707
        %1709 = vrot.lane.b32.xlu0 %v1095, 96
        %v1710 = vpop.permute.xlu0 %1709
        %v1712 = vsel %vm915, %v1708, 0
        %v1715 = vsel %vm915, %v1710, 0
        %1717 = vmatpush.bf16.xpose.msra.mxu0 0
        %1718 = vmatpush.bf16.xpose.msra.mxu0 0
        %1719 = vmatpush.bf16.xpose.msra.mxu0 0
        %1720 = vmatpush.bf16.xpose.msra.mxu0 0
        %1721 = vmatpush.bf16.xpose.msra.mxu0 0
        %1722 = vmatpush.bf16.xpose.msra.mxu0 0
        %1723 = vmatpush.bf16.xpose.msra.mxu0 0
        %1724 = vmatpush.bf16.xpose.msra.mxu0 %v1715
        %1725 = vmatmul.bf16.gmra.mxu0 %v1712
        %v1726 = vpop.f32.mrf.mxu0
        %v1727 = vadd.f32 0.0, %v1726
        %v1728 = vpop.f32.mrf.mxu0
        %v1729 = vadd.f32 0.0, %v1728
        %1730 = vdwg.mxu0
        %1731 = vrot.lane.b32.xlu0 %v1120, 96
        %v1732 = vpop.permute.xlu0 %1731
        %1733 = vrot.lane.b32.xlu0 %v1125, 96
        %v1734 = vpop.permute.xlu0 %1733
        %v1736 = vsel %vm915, %v1732, 0
        %v1739 = vsel %vm915, %v1734, 0
        %1741 = vmatpush.bf16.xpose.msra.mxu0 0
        %1742 = vmatpush.bf16.xpose.msra.mxu0 0
        %1743 = vmatpush.bf16.xpose.msra.mxu0 0
        %1744 = vmatpush.bf16.xpose.msra.mxu0 0
        %1745 = vmatpush.bf16.xpose.msra.mxu0 0
        %1746 = vmatpush.bf16.xpose.msra.mxu0 0
        %1747 = vmatpush.bf16.xpose.msra.mxu0 0
        %1748 = vmatpush.bf16.xpose.msra.mxu0 %v1739
        %1749 = vmatmul.bf16.gmra.mxu0 %v1736
        %v1750 = vpop.f32.mrf.mxu0
        %v1751 = vadd.f32 0.0, %v1750
        %v1752 = vpop.f32.mrf.mxu0
        %v1753 = vadd.f32 0.0, %v1752
        %1754 = vdwg.mxu0
        %v1755 = vsel %vm1146, %v1583, -inf
        %1756 = vmax.xlane.f32.xlu0 %v1755
        %v1757 = vpop.xlane.xlu0 %1756
        %v1758 = vsel %vm1146, %v1585, -inf
        %1759 = vmax.xlane.f32.xlu0 %v1758
        %v1760 = vpop.xlane.xlu0 %1759
        %v1761 = vsel %vm1146, %v1607, -inf
        %1762 = vmax.xlane.f32.xlu0 %v1761
        %v1763 = vpop.xlane.xlu0 %1762
        %v1764 = vsel %vm1146, %v1609, -inf
        %1765 = vmax.xlane.f32.xlu0 %v1764
        %v1766 = vpop.xlane.xlu0 %1765
        %v1767 = vsel %vm1146, %v1631, -inf
        %1768 = vmax.xlane.f32.xlu0 %v1767
        %v1769 = vpop.xlane.xlu0 %1768
        %v1770 = vsel %vm1146, %v1633, -inf
        %1771 = vmax.xlane.f32.xlu0 %v1770
        %v1772 = vpop.xlane.xlu0 %1771
        %v1773 = vsel %vm1146, %v1655, -inf
        %1774 = vmax.xlane.f32.xlu0 %v1773
        %v1775 = vpop.xlane.xlu0 %1774
        %v1776 = vsel %vm1146, %v1657, -inf
        %1777 = vmax.xlane.f32.xlu0 %v1776
        %v1778 = vpop.xlane.xlu0 %1777
        %v1779 = vsel %vm1146, %v1679, -inf
        %1780 = vmax.xlane.f32.xlu0 %v1779
        %v1781 = vpop.xlane.xlu0 %1780
        %v1782 = vsel %vm1146, %v1681, -inf
        %1783 = vmax.xlane.f32.xlu0 %v1782
        %v1784 = vpop.xlane.xlu0 %1783
        %v1785 = vsel %vm1146, %v1703, -inf
        %1786 = vmax.xlane.f32.xlu0 %v1785
        %v1787 = vpop.xlane.xlu0 %1786
        %v1788 = vsel %vm1146, %v1705, -inf
        %1789 = vmax.xlane.f32.xlu0 %v1788
        %v1790 = vpop.xlane.xlu0 %1789
        %v1791 = vsel %vm1146, %v1727, -inf
        %1792 = vmax.xlane.f32.xlu0 %v1791
        %v1793 = vpop.xlane.xlu0 %1792
        %v1794 = vsel %vm1146, %v1729, -inf
        %1795 = vmax.xlane.f32.xlu0 %v1794
        %v1796 = vpop.xlane.xlu0 %1795
        %v1797 = vsel %vm1146, %v1751, -inf
        %1798 = vmax.xlane.f32.xlu0 %v1797
        %v1799 = vpop.xlane.xlu0 %1798
        %v1800 = vsel %vm1146, %v1753, -inf
        %1801 = vmax.xlane.f32.xlu0 %v1800
        %v1802 = vpop.xlane.xlu0 %1801
        %v1803 = vsub.f32 %v1583, %v1757
        %v1804 = vsub.f32 %v1585, %v1760
        %v1805 = vsub.f32 %v1607, %v1763
        %v1806 = vsub.f32 %v1609, %v1766
        %v1807 = vsub.f32 %v1631, %v1769
        %v1808 = vsub.f32 %v1633, %v1772
        %v1809 = vsub.f32 %v1655, %v1775
        %v1810 = vsub.f32 %v1657, %v1778
        %v1811 = vsub.f32 %v1679, %v1781
        %v1812 = vsub.f32 %v1681, %v1784
        %v1813 = vsub.f32 %v1703, %v1787
        %v1814 = vsub.f32 %v1705, %v1790
        %v1815 = vsub.f32 %v1727, %v1793
        %v1816 = vsub.f32 %v1729, %v1796
        %v1817 = vsub.f32 %v1751, %v1799
        %v1818 = vsub.f32 %v1753, %v1802
        %v1819 = vmul.f32 %v1803, 1.442695
        %v1820 = vpow.pop %v1819
        %v1821 = vmul.f32 %v1804, 1.442695
        %v1822 = vpow.pop %v1821
        %v1823 = vmul.f32 %v1805, 1.442695
        %v1824 = vpow.pop %v1823
        %v1825 = vmul.f32 %v1806, 1.442695
        %v1826 = vpow.pop %v1825
        %v1827 = vmul.f32 %v1807, 1.442695
        %v1828 = vpow.pop %v1827
        %v1829 = vmul.f32 %v1808, 1.442695
        %v1830 = vpow.pop %v1829
        %v1831 = vmul.f32 %v1809, 1.442695
        %v1832 = vpow.pop %v1831
        %v1833 = vmul.f32 %v1810, 1.442695
        %v1834 = vpow.pop %v1833
        %v1835 = vmul.f32 %v1811, 1.442695
        %v1836 = vpow.pop %v1835
        %v1837 = vmul.f32 %v1812, 1.442695
        %v1838 = vpow.pop %v1837
        %v1839 = vmul.f32 %v1813, 1.442695
        %v1840 = vpow.pop %v1839
        %v1841 = vmul.f32 %v1814, 1.442695
        %v1842 = vpow.pop %v1841
        %v1843 = vmul.f32 %v1815, 1.442695
        %v1844 = vpow.pop %v1843
        %v1845 = vmul.f32 %v1816, 1.442695
        %v1846 = vpow.pop %v1845
        %v1847 = vmul.f32 %v1817, 1.442695
        %v1848 = vpow.pop %v1847
        %v1849 = vmul.f32 %v1818, 1.442695
        %v1850 = vpow.pop %v1849
        %v1851 = vsel %vm1146, %v1820, 0.0
        %1852 = vadd.xlane.f32.xlu0 %v1851
        %v1853 = vpop.xlane.xlu0 %1852
        %v1854 = vsel %vm1146, %v1822, 0.0
        %1855 = vadd.xlane.f32.xlu0 %v1854
        %v1856 = vpop.xlane.xlu0 %1855
        %v1857 = vsel %vm1146, %v1824, 0.0
        %1858 = vadd.xlane.f32.xlu0 %v1857
        %v1859 = vpop.xlane.xlu0 %1858
        %v1860 = vsel %vm1146, %v1826, 0.0
        %1861 = vadd.xlane.f32.xlu0 %v1860
        %v1862 = vpop.xlane.xlu0 %1861
        %v1863 = vsel %vm1146, %v1828, 0.0
        %1864 = vadd.xlane.f32.xlu0 %v1863
        %v1865 = vpop.xlane.xlu0 %1864
        %v1866 = vsel %vm1146, %v1830, 0.0
        %1867 = vadd.xlane.f32.xlu0 %v1866
        %v1868 = vpop.xlane.xlu0 %1867
        %v1869 = vsel %vm1146, %v1832, 0.0
        %1870 = vadd.xlane.f32.xlu0 %v1869
        %v1871 = vpop.xlane.xlu0 %1870
        %v1872 = vsel %vm1146, %v1834, 0.0
        %1873 = vadd.xlane.f32.xlu0 %v1872
        %v1874 = vpop.xlane.xlu0 %1873
        %v1875 = vsel %vm1146, %v1836, 0.0
        %1876 = vadd.xlane.f32.xlu0 %v1875
        %v1877 = vpop.xlane.xlu0 %1876
        %v1878 = vsel %vm1146, %v1838, 0.0
        %1879 = vadd.xlane.f32.xlu0 %v1878
        %v1880 = vpop.xlane.xlu0 %1879
        %v1881 = vsel %vm1146, %v1840, 0.0
        %1882 = vadd.xlane.f32.xlu0 %v1881
        %v1883 = vpop.xlane.xlu0 %1882
        %v1884 = vsel %vm1146, %v1842, 0.0
        %1885 = vadd.xlane.f32.xlu0 %v1884
        %v1886 = vpop.xlane.xlu0 %1885
        %v1887 = vsel %vm1146, %v1844, 0.0
        %1888 = vadd.xlane.f32.xlu0 %v1887
        %v1889 = vpop.xlane.xlu0 %1888
        %v1890 = vsel %vm1146, %v1846, 0.0
        %1891 = vadd.xlane.f32.xlu0 %v1890
        %v1892 = vpop.xlane.xlu0 %1891
        %v1893 = vsel %vm1146, %v1848, 0.0
        %1894 = vadd.xlane.f32.xlu0 %v1893
        %v1895 = vpop.xlane.xlu0 %1894
        %v1896 = vsel %vm1146, %v1850, 0.0
        %1897 = vadd.xlane.f32.xlu0 %v1896
        %v1898 = vpop.xlane.xlu0 %1897
        %v1899 = vrcp.pop %v1853
        %v1900 = vrcp.pop %v1856
        %v1901 = vrcp.pop %v1859
        %v1902 = vrcp.pop %v1862
        %v1903 = vrcp.pop %v1865
        %v1904 = vrcp.pop %v1868
        %v1905 = vrcp.pop %v1871
        %v1906 = vrcp.pop %v1874
        %v1907 = vrcp.pop %v1877
        %v1908 = vrcp.pop %v1880
        %v1909 = vrcp.pop %v1883
        %v1910 = vrcp.pop %v1886
        %v1911 = vrcp.pop %v1889
        %v1912 = vrcp.pop %v1892
        %v1913 = vrcp.pop %v1895
        %v1914 = vrcp.pop %v1898
        %v1915 = vmul.f32 %v1820, %v1899
        %v1916 = vmul.f32 %v1822, %v1900
        %v1917 = vmul.f32 %v1824, %v1901
        %v1918 = vmul.f32 %v1826, %v1902
        %v1919 = vmul.f32 %v1828, %v1903
        %v1920 = vmul.f32 %v1830, %v1904
        %v1921 = vmul.f32 %v1832, %v1905
        %v1922 = vmul.f32 %v1834, %v1906
        %v1923 = vmul.f32 %v1836, %v1907
        %v1924 = vmul.f32 %v1838, %v1908
        %v1925 = vmul.f32 %v1840, %v1909
        %v1926 = vmul.f32 %v1842, %v1910
        %v1927 = vmul.f32 %v1844, %v1911
        %v1928 = vmul.f32 %v1846, %v1912
        %v1929 = vmul.f32 %v1848, %v1913
        %v1930 = vmul.f32 %v1850, %v1914
        %v1931 = vpack.c.bf16 %v1915, %v1915
        %v1932 = vpack.c.bf16 %v1916, %v1916
        %v1933 = vpack.c.bf16 %v1917, %v1917
        %v1934 = vpack.c.bf16 %v1918, %v1918
        %v1935 = vpack.c.bf16 %v1919, %v1919
        %v1936 = vpack.c.bf16 %v1920, %v1920
        %v1937 = vpack.c.bf16 %v1921, %v1921
        %v1938 = vpack.c.bf16 %v1922, %v1922
        %v1939 = vpack.c.bf16 %v1923, %v1923
        %v1940 = vpack.c.bf16 %v1924, %v1924
        %v1941 = vpack.c.bf16 %v1925, %v1925
        %v1942 = vpack.c.bf16 %v1926, %v1926
        %v1943 = vpack.c.bf16 %v1927, %v1927
        %v1944 = vpack.c.bf16 %v1928, %v1928
        %v1945 = vpack.c.bf16 %v1929, %v1929
        %v1946 = vpack.c.bf16 %v1930, %v1930
        %v1949 = vunpack.c.l.b16 %v1931
        %v1950 = vunpack.c.l.b16 %v1932
        %v1951 = vpack.c.b16 %v1950, %v1949
        %1952 = vrot.lane.b32.xlu0 %v1348, 96
        %v1953 = vpop.permute.xlu0 %1952
        %v1956 = vsel %vm1146, %v1951, 0
        %1958 = vmatpush.bf16.msra.mxu0 0
        %1959 = vmatpush.bf16.msra.mxu0 0
        %1960 = vmatpush.bf16.msra.mxu0 0
        %1961 = vmatpush.bf16.msra.mxu0 0
        %1962 = vmatpush.bf16.msra.mxu0 0
        %1963 = vmatpush.bf16.msra.mxu0 0
        %1964 = vmatpush.bf16.msra.mxu0 0
        %1965 = vmatpush.bf16.msra.mxu0 %v1953
        %1966 = vmatmul.bf16.gmra.mxu0 %v1956
        %v1967 = vpop.f32.mrf.mxu0
        %v1968 = vadd.f32 0.0, %v1967
        %v1969 = vpop.f32.mrf.mxu0
        %v1970 = vadd.f32 0.0, %v1969
        %1971 = vdwg.mxu0
        %v1974 = vunpack.c.l.b16 %v1933
        %v1975 = vunpack.c.l.b16 %v1934
        %v1976 = vpack.c.b16 %v1975, %v1974
        %1977 = vrot.lane.b32.xlu0 %v1376, 96
        %v1978 = vpop.permute.xlu0 %1977
        %v1981 = vsel %vm1146, %v1976, 0
        %1983 = vmatpush.bf16.msra.mxu0 0
        %1984 = vmatpush.bf16.msra.mxu0 0
        %1985 = vmatpush.bf16.msra.mxu0 0
        %1986 = vmatpush.bf16.msra.mxu0 0
        %1987 = vmatpush.bf16.msra.mxu0 0
        %1988 = vmatpush.bf16.msra.mxu0 0
        %1989 = vmatpush.bf16.msra.mxu0 0
        %1990 = vmatpush.bf16.msra.mxu0 %v1978
        %1991 = vmatmul.bf16.gmra.mxu0 %v1981
        %v1992 = vpop.f32.mrf.mxu0
        %v1993 = vadd.f32 0.0, %v1992
        %v1994 = vpop.f32.mrf.mxu0
        %v1995 = vadd.f32 0.0, %v1994
        %1996 = vdwg.mxu0
        %v1999 = vunpack.c.l.b16 %v1935
        %v2000 = vunpack.c.l.b16 %v1936
        %v2001 = vpack.c.b16 %v2000, %v1999
        %2002 = vrot.lane.b32.xlu0 %v1404, 96
        %v2003 = vpop.permute.xlu0 %2002
        %v2006 = vsel %vm1146, %v2001, 0
        %2008 = vmatpush.bf16.msra.mxu0 0
        %2009 = vmatpush.bf16.msra.mxu0 0
        %2010 = vmatpush.bf16.msra.mxu0 0
        %2011 = vmatpush.bf16.msra.mxu0 0
        %2012 = vmatpush.bf16.msra.mxu0 0
        %2013 = vmatpush.bf16.msra.mxu0 0
        %2014 = vmatpush.bf16.msra.mxu0 0
        %2015 = vmatpush.bf16.msra.mxu0 %v2003
        %2016 = vmatmul.bf16.gmra.mxu0 %v2006
        %v2017 = vpop.f32.mrf.mxu0
        %v2018 = vadd.f32 0.0, %v2017
        %v2019 = vpop.f32.mrf.mxu0
        %v2020 = vadd.f32 0.0, %v2019
        %2021 = vdwg.mxu0
        %v2024 = vunpack.c.l.b16 %v1937
        %v2025 = vunpack.c.l.b16 %v1938
        %v2026 = vpack.c.b16 %v2025, %v2024
        %2027 = vrot.lane.b32.xlu0 %v1432, 96
        %v2028 = vpop.permute.xlu0 %2027
        %v2031 = vsel %vm1146, %v2026, 0
        %2033 = vmatpush.bf16.msra.mxu0 0
        %2034 = vmatpush.bf16.msra.mxu0 0
        %2035 = vmatpush.bf16.msra.mxu0 0
        %2036 = vmatpush.bf16.msra.mxu0 0
        %2037 = vmatpush.bf16.msra.mxu0 0
        %2038 = vmatpush.bf16.msra.mxu0 0
        %2039 = vmatpush.bf16.msra.mxu0 0
        %2040 = vmatpush.bf16.msra.mxu0 %v2028
        %2041 = vmatmul.bf16.gmra.mxu0 %v2031
        %v2042 = vpop.f32.mrf.mxu0
        %v2043 = vadd.f32 0.0, %v2042
        %v2044 = vpop.f32.mrf.mxu0
        %v2045 = vadd.f32 0.0, %v2044
        %2046 = vdwg.mxu0
        %v2049 = vunpack.c.l.b16 %v1939
        %v2050 = vunpack.c.l.b16 %v1940
        %v2051 = vpack.c.b16 %v2050, %v2049
        %2052 = vrot.lane.b32.xlu0 %v1460, 96
        %v2053 = vpop.permute.xlu0 %2052
        %v2056 = vsel %vm1146, %v2051, 0
        %2058 = vmatpush.bf16.msra.mxu0 0
        %2059 = vmatpush.bf16.msra.mxu0 0
        %2060 = vmatpush.bf16.msra.mxu0 0
        %2061 = vmatpush.bf16.msra.mxu0 0
        %2062 = vmatpush.bf16.msra.mxu0 0
        %2063 = vmatpush.bf16.msra.mxu0 0
        %2064 = vmatpush.bf16.msra.mxu0 0
        %2065 = vmatpush.bf16.msra.mxu0 %v2053
        %2066 = vmatmul.bf16.gmra.mxu0 %v2056
        %v2067 = vpop.f32.mrf.mxu0
        %v2068 = vadd.f32 0.0, %v2067
        %v2069 = vpop.f32.mrf.mxu0
        %v2070 = vadd.f32 0.0, %v2069
        %2071 = vdwg.mxu0
        %v2074 = vunpack.c.l.b16 %v1941
        %v2075 = vunpack.c.l.b16 %v1942
        %v2076 = vpack.c.b16 %v2075, %v2074
        %2077 = vrot.lane.b32.xlu0 %v1488, 96
        %v2078 = vpop.permute.xlu0 %2077
        %v2081 = vsel %vm1146, %v2076, 0
        %2083 = vmatpush.bf16.msra.mxu0 0
        %2084 = vmatpush.bf16.msra.mxu0 0
        %2085 = vmatpush.bf16.msra.mxu0 0
        %2086 = vmatpush.bf16.msra.mxu0 0
        %2087 = vmatpush.bf16.msra.mxu0 0
        %2088 = vmatpush.bf16.msra.mxu0 0
        %2089 = vmatpush.bf16.msra.mxu0 0
        %2090 = vmatpush.bf16.msra.mxu0 %v2078
        %2091 = vmatmul.bf16.gmra.mxu0 %v2081
        %v2092 = vpop.f32.mrf.mxu0
        %v2093 = vadd.f32 0.0, %v2092
        %v2094 = vpop.f32.mrf.mxu0
        %v2095 = vadd.f32 0.0, %v2094
        %2096 = vdwg.mxu0
        %v2099 = vunpack.c.l.b16 %v1943
        %v2100 = vunpack.c.l.b16 %v1944
        %v2101 = vpack.c.b16 %v2100, %v2099
        %2102 = vrot.lane.b32.xlu0 %v1516, 96
        %v2103 = vpop.permute.xlu0 %2102
        %v2106 = vsel %vm1146, %v2101, 0
        %2108 = vmatpush.bf16.msra.mxu0 0
        %2109 = vmatpush.bf16.msra.mxu0 0
        %2110 = vmatpush.bf16.msra.mxu0 0
        %2111 = vmatpush.bf16.msra.mxu0 0
        %2112 = vmatpush.bf16.msra.mxu0 0
        %2113 = vmatpush.bf16.msra.mxu0 0
        %2114 = vmatpush.bf16.msra.mxu0 0
        %2115 = vmatpush.bf16.msra.mxu0 %v2103
        %2116 = vmatmul.bf16.gmra.mxu0 %v2106
        %v2117 = vpop.f32.mrf.mxu0
        %v2118 = vadd.f32 0.0, %v2117
        %v2119 = vpop.f32.mrf.mxu0
        %v2120 = vadd.f32 0.0, %v2119
        %2121 = vdwg.mxu0
        %v2124 = vunpack.c.l.b16 %v1945
        %v2125 = vunpack.c.l.b16 %v1946
        %v2126 = vpack.c.b16 %v2125, %v2124
        %2127 = vrot.lane.b32.xlu0 %v1544, 96
        %v2128 = vpop.permute.xlu0 %2127
        %v2131 = vsel %vm1146, %v2126, 0
        %2133 = vmatpush.bf16.msra.mxu0 0
        %2134 = vmatpush.bf16.msra.mxu0 0
        %2135 = vmatpush.bf16.msra.mxu0 0
        %2136 = vmatpush.bf16.msra.mxu0 0
        %2137 = vmatpush.bf16.msra.mxu0 0
        %2138 = vmatpush.bf16.msra.mxu0 0
        %2139 = vmatpush.bf16.msra.mxu0 0
        %2140 = vmatpush.bf16.msra.mxu0 %v2128
        %2141 = vmatmul.bf16.gmra.mxu0 %v2131
        %v2142 = vpop.f32.mrf.mxu0
        %v2143 = vadd.f32 0.0, %v2142
        %v2144 = vpop.f32.mrf.mxu0
        %v2145 = vadd.f32 0.0, %v2144
        %2146 = vdwg.mxu0
        %2147 = vrot.lane.b32.xlu0 %v909, 64
        %v2148 = vpop.permute.xlu0 %2147
        %2149 = vrot.lane.b32.xlu0 %v914, 64
        %v2150 = vpop.permute.xlu0 %2149
        %v2152 = vsel %vm915, %v2148, 0
        %v2155 = vsel %vm915, %v2150, 0
        %2157 = vmatpush.bf16.xpose.msra.mxu0 0
        %2158 = vmatpush.bf16.xpose.msra.mxu0 0
        %2159 = vmatpush.bf16.xpose.msra.mxu0 0
        %2160 = vmatpush.bf16.xpose.msra.mxu0 0
        %2161 = vmatpush.bf16.xpose.msra.mxu0 0
        %2162 = vmatpush.bf16.xpose.msra.mxu0 0
        %2163 = vmatpush.bf16.xpose.msra.mxu0 0
        %2164 = vmatpush.bf16.xpose.msra.mxu0 %v2155
        %2165 = vmatmul.bf16.gmra.mxu0 %v2152
        %v2166 = vpop.f32.mrf.mxu0
        %v2167 = vadd.f32 0.0, %v2166
        %v2168 = vpop.f32.mrf.mxu0
        %v2169 = vadd.f32 0.0, %v2168
        %2170 = vdwg.mxu0
        %2171 = vrot.lane.b32.xlu0 %v940, 64
        %v2172 = vpop.permute.xlu0 %2171
        %2173 = vrot.lane.b32.xlu0 %v945, 64
        %v2174 = vpop.permute.xlu0 %2173
        %v2176 = vsel %vm915, %v2172, 0
        %v2179 = vsel %vm915, %v2174, 0
        %2181 = vmatpush.bf16.xpose.msra.mxu0 0
        %2182 = vmatpush.bf16.xpose.msra.mxu0 0
        %2183 = vmatpush.bf16.xpose.msra.mxu0 0
        %2184 = vmatpush.bf16.xpose.msra.mxu0 0
        %2185 = vmatpush.bf16.xpose.msra.mxu0 0
        %2186 = vmatpush.bf16.xpose.msra.mxu0 0
        %2187 = vmatpush.bf16.xpose.msra.mxu0 0
        %2188 = vmatpush.bf16.xpose.msra.mxu0 %v2179
        %2189 = vmatmul.bf16.gmra.mxu0 %v2176
        %v2190 = vpop.f32.mrf.mxu0
        %v2191 = vadd.f32 0.0, %v2190
        %v2192 = vpop.f32.mrf.mxu0
        %v2193 = vadd.f32 0.0, %v2192
        %2194 = vdwg.mxu0
        %2195 = vrot.lane.b32.xlu0 %v970, 64
        %v2196 = vpop.permute.xlu0 %2195
        %2197 = vrot.lane.b32.xlu0 %v975, 64
        %v2198 = vpop.permute.xlu0 %2197
        %v2200 = vsel %vm915, %v2196, 0
        %v2203 = vsel %vm915, %v2198, 0
        %2205 = vmatpush.bf16.xpose.msra.mxu0 0
        %2206 = vmatpush.bf16.xpose.msra.mxu0 0
        %2207 = vmatpush.bf16.xpose.msra.mxu0 0
        %2208 = vmatpush.bf16.xpose.msra.mxu0 0
        %2209 = vmatpush.bf16.xpose.msra.mxu0 0
        %2210 = vmatpush.bf16.xpose.msra.mxu0 0
        %2211 = vmatpush.bf16.xpose.msra.mxu0 0
        %2212 = vmatpush.bf16.xpose.msra.mxu0 %v2203
        %2213 = vmatmul.bf16.gmra.mxu0 %v2200
        %v2214 = vpop.f32.mrf.mxu0
        %v2215 = vadd.f32 0.0, %v2214
        %v2216 = vpop.f32.mrf.mxu0
        %v2217 = vadd.f32 0.0, %v2216
        %2218 = vdwg.mxu0
        %2219 = vrot.lane.b32.xlu0 %v1000, 64
        %v2220 = vpop.permute.xlu0 %2219
        %2221 = vrot.lane.b32.xlu0 %v1005, 64
        %v2222 = vpop.permute.xlu0 %2221
        %v2224 = vsel %vm915, %v2220, 0
        %v2227 = vsel %vm915, %v2222, 0
        %2229 = vmatpush.bf16.xpose.msra.mxu0 0
        %2230 = vmatpush.bf16.xpose.msra.mxu0 0
        %2231 = vmatpush.bf16.xpose.msra.mxu0 0
        %2232 = vmatpush.bf16.xpose.msra.mxu0 0
        %2233 = vmatpush.bf16.xpose.msra.mxu0 0
        %2234 = vmatpush.bf16.xpose.msra.mxu0 0
        %2235 = vmatpush.bf16.xpose.msra.mxu0 0
        %2236 = vmatpush.bf16.xpose.msra.mxu0 %v2227
        %2237 = vmatmul.bf16.gmra.mxu0 %v2224
        %v2238 = vpop.f32.mrf.mxu0
        %v2239 = vadd.f32 0.0, %v2238
        %v2240 = vpop.f32.mrf.mxu0
        %v2241 = vadd.f32 0.0, %v2240
        %2242 = vdwg.mxu0
        %2243 = vrot.lane.b32.xlu0 %v1030, 64
        %v2244 = vpop.permute.xlu0 %2243
        %2245 = vrot.lane.b32.xlu0 %v1035, 64
        %v2246 = vpop.permute.xlu0 %2245
        %v2248 = vsel %vm915, %v2244, 0
        %v2251 = vsel %vm915, %v2246, 0
        %2253 = vmatpush.bf16.xpose.msra.mxu0 0
        %2254 = vmatpush.bf16.xpose.msra.mxu0 0
        %2255 = vmatpush.bf16.xpose.msra.mxu0 0
        %2256 = vmatpush.bf16.xpose.msra.mxu0 0
        %2257 = vmatpush.bf16.xpose.msra.mxu0 0
        %2258 = vmatpush.bf16.xpose.msra.mxu0 0
        %2259 = vmatpush.bf16.xpose.msra.mxu0 0
        %2260 = vmatpush.bf16.xpose.msra.mxu0 %v2251
        %2261 = vmatmul.bf16.gmra.mxu0 %v2248
        %v2262 = vpop.f32.mrf.mxu0
        %v2263 = vadd.f32 0.0, %v2262
        %v2264 = vpop.f32.mrf.mxu0
        %v2265 = vadd.f32 0.0, %v2264
        %2266 = vdwg.mxu0
        %2267 = vrot.lane.b32.xlu0 %v1060, 64
        %v2268 = vpop.permute.xlu0 %2267
        %2269 = vrot.lane.b32.xlu0 %v1065, 64
        %v2270 = vpop.permute.xlu0 %2269
        %v2272 = vsel %vm915, %v2268, 0
        %v2275 = vsel %vm915, %v2270, 0
        %2277 = vmatpush.bf16.xpose.msra.mxu0 0
        %2278 = vmatpush.bf16.xpose.msra.mxu0 0
        %2279 = vmatpush.bf16.xpose.msra.mxu0 0
        %2280 = vmatpush.bf16.xpose.msra.mxu0 0
        %2281 = vmatpush.bf16.xpose.msra.mxu0 0
        %2282 = vmatpush.bf16.xpose.msra.mxu0 0
        %2283 = vmatpush.bf16.xpose.msra.mxu0 0
        %2284 = vmatpush.bf16.xpose.msra.mxu0 %v2275
        %2285 = vmatmul.bf16.gmra.mxu0 %v2272
        %v2286 = vpop.f32.mrf.mxu0
        %v2287 = vadd.f32 0.0, %v2286
        %v2288 = vpop.f32.mrf.mxu0
        %v2289 = vadd.f32 0.0, %v2288
        %2290 = vdwg.mxu0
        %2291 = vrot.lane.b32.xlu0 %v1090, 64
        %v2292 = vpop.permute.xlu0 %2291
        %2293 = vrot.lane.b32.xlu0 %v1095, 64
        %v2294 = vpop.permute.xlu0 %2293
        %v2296 = vsel %vm915, %v2292, 0
        %v2299 = vsel %vm915, %v2294, 0
        %2301 = vmatpush.bf16.xpose.msra.mxu0 0
        %2302 = vmatpush.bf16.xpose.msra.mxu0 0
        %2303 = vmatpush.bf16.xpose.msra.mxu0 0
        %2304 = vmatpush.bf16.xpose.msra.mxu0 0
        %2305 = vmatpush.bf16.xpose.msra.mxu0 0
        %2306 = vmatpush.bf16.xpose.msra.mxu0 0
        %2307 = vmatpush.bf16.xpose.msra.mxu0 0
        %2308 = vmatpush.bf16.xpose.msra.mxu0 %v2299
        %2309 = vmatmul.bf16.gmra.mxu0 %v2296
        %v2310 = vpop.f32.mrf.mxu0
        %v2311 = vadd.f32 0.0, %v2310
        %v2312 = vpop.f32.mrf.mxu0
        %v2313 = vadd.f32 0.0, %v2312
        %2314 = vdwg.mxu0
        %2315 = vrot.lane.b32.xlu0 %v1120, 64
        %v2316 = vpop.permute.xlu0 %2315
        %2317 = vrot.lane.b32.xlu0 %v1125, 64
        %v2318 = vpop.permute.xlu0 %2317
        %v2320 = vsel %vm915, %v2316, 0
        %v2323 = vsel %vm915, %v2318, 0
        %2325 = vmatpush.bf16.xpose.msra.mxu0 0
        %2326 = vmatpush.bf16.xpose.msra.mxu0 0
        %2327 = vmatpush.bf16.xpose.msra.mxu0 0
        %2328 = vmatpush.bf16.xpose.msra.mxu0 0
        %2329 = vmatpush.bf16.xpose.msra.mxu0 0
        %2330 = vmatpush.bf16.xpose.msra.mxu0 0
        %2331 = vmatpush.bf16.xpose.msra.mxu0 0
        %2332 = vmatpush.bf16.xpose.msra.mxu0 %v2323
        %2333 = vmatmul.bf16.gmra.mxu0 %v2320
        %v2334 = vpop.f32.mrf.mxu0
        %v2335 = vadd.f32 0.0, %v2334
        %v2336 = vpop.f32.mrf.mxu0
        %v2337 = vadd.f32 0.0, %v2336
        %2338 = vdwg.mxu0
        %v2339 = vsel %vm1146, %v2167, -inf
        %2340 = vmax.xlane.f32.xlu0 %v2339
        %v2341 = vpop.xlane.xlu0 %2340
        %v2342 = vsel %vm1146, %v2169, -inf
        %2343 = vmax.xlane.f32.xlu0 %v2342
        %v2344 = vpop.xlane.xlu0 %2343
        %v2345 = vsel %vm1146, %v2191, -inf
        %2346 = vmax.xlane.f32.xlu0 %v2345
        %v2347 = vpop.xlane.xlu0 %2346
        %v2348 = vsel %vm1146, %v2193, -inf
        %2349 = vmax.xlane.f32.xlu0 %v2348
        %v2350 = vpop.xlane.xlu0 %2349
        %v2351 = vsel %vm1146, %v2215, -inf
        %2352 = vmax.xlane.f32.xlu0 %v2351
        %v2353 = vpop.xlane.xlu0 %2352
        %v2354 = vsel %vm1146, %v2217, -inf
        %2355 = vmax.xlane.f32.xlu0 %v2354
        %v2356 = vpop.xlane.xlu0 %2355
        %v2357 = vsel %vm1146, %v2239, -inf
        %2358 = vmax.xlane.f32.xlu0 %v2357
        %v2359 = vpop.xlane.xlu0 %2358
        %v2360 = vsel %vm1146, %v2241, -inf
        %2361 = vmax.xlane.f32.xlu0 %v2360
        %v2362 = vpop.xlane.xlu0 %2361
        %v2363 = vsel %vm1146, %v2263, -inf
        %2364 = vmax.xlane.f32.xlu0 %v2363
        %v2365 = vpop.xlane.xlu0 %2364
        %v2366 = vsel %vm1146, %v2265, -inf
        %2367 = vmax.xlane.f32.xlu0 %v2366
        %v2368 = vpop.xlane.xlu0 %2367
        %v2369 = vsel %vm1146, %v2287, -inf
        %2370 = vmax.xlane.f32.xlu0 %v2369
        %v2371 = vpop.xlane.xlu0 %2370
        %v2372 = vsel %vm1146, %v2289, -inf
        %2373 = vmax.xlane.f32.xlu0 %v2372
        %v2374 = vpop.xlane.xlu0 %2373
        %v2375 = vsel %vm1146, %v2311, -inf
        %2376 = vmax.xlane.f32.xlu0 %v2375
        %v2377 = vpop.xlane.xlu0 %2376
        %v2378 = vsel %vm1146, %v2313, -inf
        %2379 = vmax.xlane.f32.xlu0 %v2378
        %v2380 = vpop.xlane.xlu0 %2379
        %v2381 = vsel %vm1146, %v2335, -inf
        %2382 = vmax.xlane.f32.xlu0 %v2381
        %v2383 = vpop.xlane.xlu0 %2382
        %v2384 = vsel %vm1146, %v2337, -inf
        %2385 = vmax.xlane.f32.xlu0 %v2384
        %v2386 = vpop.xlane.xlu0 %2385
        %v2387 = vsub.f32 %v2167, %v2341
        %v2388 = vsub.f32 %v2169, %v2344
        %v2389 = vsub.f32 %v2191, %v2347
        %v2390 = vsub.f32 %v2193, %v2350
        %v2391 = vsub.f32 %v2215, %v2353
        %v2392 = vsub.f32 %v2217, %v2356
        %v2393 = vsub.f32 %v2239, %v2359
        %v2394 = vsub.f32 %v2241, %v2362
        %v2395 = vsub.f32 %v2263, %v2365
        %v2396 = vsub.f32 %v2265, %v2368
        %v2397 = vsub.f32 %v2287, %v2371
        %v2398 = vsub.f32 %v2289, %v2374
        %v2399 = vsub.f32 %v2311, %v2377
        %v2400 = vsub.f32 %v2313, %v2380
        %v2401 = vsub.f32 %v2335, %v2383
        %v2402 = vsub.f32 %v2337, %v2386
        %v2403 = vmul.f32 %v2387, 1.442695
        %v2404 = vpow.pop %v2403
        %v2405 = vmul.f32 %v2388, 1.442695
        %v2406 = vpow.pop %v2405
        %v2407 = vmul.f32 %v2389, 1.442695
        %v2408 = vpow.pop %v2407
        %v2409 = vmul.f32 %v2390, 1.442695
        %v2410 = vpow.pop %v2409
        %v2411 = vmul.f32 %v2391, 1.442695
        %v2412 = vpow.pop %v2411
        %v2413 = vmul.f32 %v2392, 1.442695
        %v2414 = vpow.pop %v2413
        %v2415 = vmul.f32 %v2393, 1.442695
        %v2416 = vpow.pop %v2415
        %v2417 = vmul.f32 %v2394, 1.442695
        %v2418 = vpow.pop %v2417
        %v2419 = vmul.f32 %v2395, 1.442695
        %v2420 = vpow.pop %v2419
        %v2421 = vmul.f32 %v2396, 1.442695
        %v2422 = vpow.pop %v2421
        %v2423 = vmul.f32 %v2397, 1.442695
        %v2424 = vpow.pop %v2423
        %v2425 = vmul.f32 %v2398, 1.442695
        %v2426 = vpow.pop %v2425
        %v2427 = vmul.f32 %v2399, 1.442695
        %v2428 = vpow.pop %v2427
        %v2429 = vmul.f32 %v2400, 1.442695
        %v2430 = vpow.pop %v2429
        %v2431 = vmul.f32 %v2401, 1.442695
        %v2432 = vpow.pop %v2431
        %v2433 = vmul.f32 %v2402, 1.442695
        %v2434 = vpow.pop %v2433
        %v2435 = vsel %vm1146, %v2404, 0.0
        %2436 = vadd.xlane.f32.xlu0 %v2435
        %v2437 = vpop.xlane.xlu0 %2436
        %v2438 = vsel %vm1146, %v2406, 0.0
        %2439 = vadd.xlane.f32.xlu0 %v2438
        %v2440 = vpop.xlane.xlu0 %2439
        %v2441 = vsel %vm1146, %v2408, 0.0
        %2442 = vadd.xlane.f32.xlu0 %v2441
        %v2443 = vpop.xlane.xlu0 %2442
        %v2444 = vsel %vm1146, %v2410, 0.0
        %2445 = vadd.xlane.f32.xlu0 %v2444
        %v2446 = vpop.xlane.xlu0 %2445
        %v2447 = vsel %vm1146, %v2412, 0.0
        %2448 = vadd.xlane.f32.xlu0 %v2447
        %v2449 = vpop.xlane.xlu0 %2448
        %v2450 = vsel %vm1146, %v2414, 0.0
        %2451 = vadd.xlane.f32.xlu0 %v2450
        %v2452 = vpop.xlane.xlu0 %2451
        %v2453 = vsel %vm1146, %v2416, 0.0
        %2454 = vadd.xlane.f32.xlu0 %v2453
        %v2455 = vpop.xlane.xlu0 %2454
        %v2456 = vsel %vm1146, %v2418, 0.0
        %2457 = vadd.xlane.f32.xlu0 %v2456
        %v2458 = vpop.xlane.xlu0 %2457
        %v2459 = vsel %vm1146, %v2420, 0.0
        %2460 = vadd.xlane.f32.xlu0 %v2459
        %v2461 = vpop.xlane.xlu0 %2460
        %v2462 = vsel %vm1146, %v2422, 0.0
        %2463 = vadd.xlane.f32.xlu0 %v2462
        %v2464 = vpop.xlane.xlu0 %2463
        %v2465 = vsel %vm1146, %v2424, 0.0
        %2466 = vadd.xlane.f32.xlu0 %v2465
        %v2467 = vpop.xlane.xlu0 %2466
        %v2468 = vsel %vm1146, %v2426, 0.0
        %2469 = vadd.xlane.f32.xlu0 %v2468
        %v2470 = vpop.xlane.xlu0 %2469
        %v2471 = vsel %vm1146, %v2428, 0.0
        %2472 = vadd.xlane.f32.xlu0 %v2471
        %v2473 = vpop.xlane.xlu0 %2472
        %v2474 = vsel %vm1146, %v2430, 0.0
        %2475 = vadd.xlane.f32.xlu0 %v2474
        %v2476 = vpop.xlane.xlu0 %2475
        %v2477 = vsel %vm1146, %v2432, 0.0
        %2478 = vadd.xlane.f32.xlu0 %v2477
        %v2479 = vpop.xlane.xlu0 %2478
        %v2480 = vsel %vm1146, %v2434, 0.0
        %2481 = vadd.xlane.f32.xlu0 %v2480
        %v2482 = vpop.xlane.xlu0 %2481
        %v2483 = vrcp.pop %v2437
        %v2484 = vrcp.pop %v2440
        %v2485 = vrcp.pop %v2443
        %v2486 = vrcp.pop %v2446
        %v2487 = vrcp.pop %v2449
        %v2488 = vrcp.pop %v2452
        %v2489 = vrcp.pop %v2455
        %v2490 = vrcp.pop %v2458
        %v2491 = vrcp.pop %v2461
        %v2492 = vrcp.pop %v2464
        %v2493 = vrcp.pop %v2467
        %v2494 = vrcp.pop %v2470
        %v2495 = vrcp.pop %v2473
        %v2496 = vrcp.pop %v2476
        %v2497 = vrcp.pop %v2479
        %v2498 = vrcp.pop %v2482
        %v2499 = vmul.f32 %v2404, %v2483
        %v2500 = vmul.f32 %v2406, %v2484
        %v2501 = vmul.f32 %v2408, %v2485
        %v2502 = vmul.f32 %v2410, %v2486
        %v2503 = vmul.f32 %v2412, %v2487
        %v2504 = vmul.f32 %v2414, %v2488
        %v2505 = vmul.f32 %v2416, %v2489
        %v2506 = vmul.f32 %v2418, %v2490
        %v2507 = vmul.f32 %v2420, %v2491
        %v2508 = vmul.f32 %v2422, %v2492
        %v2509 = vmul.f32 %v2424, %v2493
        %v2510 = vmul.f32 %v2426, %v2494
        %v2511 = vmul.f32 %v2428, %v2495
        %v2512 = vmul.f32 %v2430, %v2496
        %v2513 = vmul.f32 %v2432, %v2497
        %v2514 = vmul.f32 %v2434, %v2498
        %v2515 = vpack.c.bf16 %v2499, %v2499
        %v2516 = vpack.c.bf16 %v2500, %v2500
        %v2517 = vpack.c.bf16 %v2501, %v2501
        %v2518 = vpack.c.bf16 %v2502, %v2502
        %v2519 = vpack.c.bf16 %v2503, %v2503
        %v2520 = vpack.c.bf16 %v2504, %v2504
        %v2521 = vpack.c.bf16 %v2505, %v2505
        %v2522 = vpack.c.bf16 %v2506, %v2506
        %v2523 = vpack.c.bf16 %v2507, %v2507
        %v2524 = vpack.c.bf16 %v2508, %v2508
        %v2525 = vpack.c.bf16 %v2509, %v2509
        %v2526 = vpack.c.bf16 %v2510, %v2510
        %v2527 = vpack.c.bf16 %v2511, %v2511
        %v2528 = vpack.c.bf16 %v2512, %v2512
        %v2529 = vpack.c.bf16 %v2513, %v2513
        %v2530 = vpack.c.bf16 %v2514, %v2514
        %v2533 = vunpack.c.l.b16 %v2515
        %v2534 = vunpack.c.l.b16 %v2516
        %v2535 = vpack.c.b16 %v2534, %v2533
        %2536 = vrot.lane.b32.xlu0 %v1348, 64
        %v2537 = vpop.permute.xlu0 %2536
        %v2540 = vsel %vm1146, %v2535, 0
        %2542 = vmatpush.bf16.msra.mxu0 0
        %2543 = vmatpush.bf16.msra.mxu0 0
        %2544 = vmatpush.bf16.msra.mxu0 0
        %2545 = vmatpush.bf16.msra.mxu0 0
        %2546 = vmatpush.bf16.msra.mxu0 0
        %2547 = vmatpush.bf16.msra.mxu0 0
        %2548 = vmatpush.bf16.msra.mxu0 0
        %2549 = vmatpush.bf16.msra.mxu0 %v2537
        %2550 = vmatmul.bf16.gmra.mxu0 %v2540
        %v2551 = vpop.f32.mrf.mxu0
        %v2552 = vadd.f32 0.0, %v2551
        %v2553 = vpop.f32.mrf.mxu0
        %v2554 = vadd.f32 0.0, %v2553
        %2555 = vdwg.mxu0
        %v2558 = vunpack.c.l.b16 %v2517
        %v2559 = vunpack.c.l.b16 %v2518
        %v2560 = vpack.c.b16 %v2559, %v2558
        %2561 = vrot.lane.b32.xlu0 %v1376, 64
        %v2562 = vpop.permute.xlu0 %2561
        %v2565 = vsel %vm1146, %v2560, 0
        %2567 = vmatpush.bf16.msra.mxu0 0
        %2568 = vmatpush.bf16.msra.mxu0 0
        %2569 = vmatpush.bf16.msra.mxu0 0
        %2570 = vmatpush.bf16.msra.mxu0 0
        %2571 = vmatpush.bf16.msra.mxu0 0
        %2572 = vmatpush.bf16.msra.mxu0 0
        %2573 = vmatpush.bf16.msra.mxu0 0
        %2574 = vmatpush.bf16.msra.mxu0 %v2562
        %2575 = vmatmul.bf16.gmra.mxu0 %v2565
        %v2576 = vpop.f32.mrf.mxu0
        %v2577 = vadd.f32 0.0, %v2576
        %v2578 = vpop.f32.mrf.mxu0
        %v2579 = vadd.f32 0.0, %v2578
        %2580 = vdwg.mxu0
        %v2583 = vunpack.c.l.b16 %v2519
        %v2584 = vunpack.c.l.b16 %v2520
        %v2585 = vpack.c.b16 %v2584, %v2583
        %2586 = vrot.lane.b32.xlu0 %v1404, 64
        %v2587 = vpop.permute.xlu0 %2586
        %v2590 = vsel %vm1146, %v2585, 0
        %2592 = vmatpush.bf16.msra.mxu0 0
        %2593 = vmatpush.bf16.msra.mxu0 0
        %2594 = vmatpush.bf16.msra.mxu0 0
        %2595 = vmatpush.bf16.msra.mxu0 0
        %2596 = vmatpush.bf16.msra.mxu0 0
        %2597 = vmatpush.bf16.msra.mxu0 0
        %2598 = vmatpush.bf16.msra.mxu0 0
        %2599 = vmatpush.bf16.msra.mxu0 %v2587
        %2600 = vmatmul.bf16.gmra.mxu0 %v2590
        %v2601 = vpop.f32.mrf.mxu0
        %v2602 = vadd.f32 0.0, %v2601
        %v2603 = vpop.f32.mrf.mxu0
        %v2604 = vadd.f32 0.0, %v2603
        %2605 = vdwg.mxu0
        %v2608 = vunpack.c.l.b16 %v2521
        %v2609 = vunpack.c.l.b16 %v2522
        %v2610 = vpack.c.b16 %v2609, %v2608
        %2611 = vrot.lane.b32.xlu0 %v1432, 64
        %v2612 = vpop.permute.xlu0 %2611
        %v2615 = vsel %vm1146, %v2610, 0
        %2617 = vmatpush.bf16.msra.mxu0 0
        %2618 = vmatpush.bf16.msra.mxu0 0
        %2619 = vmatpush.bf16.msra.mxu0 0
        %2620 = vmatpush.bf16.msra.mxu0 0
        %2621 = vmatpush.bf16.msra.mxu0 0
        %2622 = vmatpush.bf16.msra.mxu0 0
        %2623 = vmatpush.bf16.msra.mxu0 0
        %2624 = vmatpush.bf16.msra.mxu0 %v2612
        %2625 = vmatmul.bf16.gmra.mxu0 %v2615
        %v2626 = vpop.f32.mrf.mxu0
        %v2627 = vadd.f32 0.0, %v2626
        %v2628 = vpop.f32.mrf.mxu0
        %v2629 = vadd.f32 0.0, %v2628
        %2630 = vdwg.mxu0
        %v2633 = vunpack.c.l.b16 %v2523
        %v2634 = vunpack.c.l.b16 %v2524
        %v2635 = vpack.c.b16 %v2634, %v2633
        %2636 = vrot.lane.b32.xlu0 %v1460, 64
        %v2637 = vpop.permute.xlu0 %2636
        %v2640 = vsel %vm1146, %v2635, 0
        %2642 = vmatpush.bf16.msra.mxu0 0
        %2643 = vmatpush.bf16.msra.mxu0 0
        %2644 = vmatpush.bf16.msra.mxu0 0
        %2645 = vmatpush.bf16.msra.mxu0 0
        %2646 = vmatpush.bf16.msra.mxu0 0
        %2647 = vmatpush.bf16.msra.mxu0 0
        %2648 = vmatpush.bf16.msra.mxu0 0
        %2649 = vmatpush.bf16.msra.mxu0 %v2637
        %2650 = vmatmul.bf16.gmra.mxu0 %v2640
        %v2651 = vpop.f32.mrf.mxu0
        %v2652 = vadd.f32 0.0, %v2651
        %v2653 = vpop.f32.mrf.mxu0
        %v2654 = vadd.f32 0.0, %v2653
        %2655 = vdwg.mxu0
        %v2658 = vunpack.c.l.b16 %v2525
        %v2659 = vunpack.c.l.b16 %v2526
        %v2660 = vpack.c.b16 %v2659, %v2658
        %2661 = vrot.lane.b32.xlu0 %v1488, 64
        %v2662 = vpop.permute.xlu0 %2661
        %v2665 = vsel %vm1146, %v2660, 0
        %2667 = vmatpush.bf16.msra.mxu0 0
        %2668 = vmatpush.bf16.msra.mxu0 0
        %2669 = vmatpush.bf16.msra.mxu0 0
        %2670 = vmatpush.bf16.msra.mxu0 0
        %2671 = vmatpush.bf16.msra.mxu0 0
        %2672 = vmatpush.bf16.msra.mxu0 0
        %2673 = vmatpush.bf16.msra.mxu0 0
        %2674 = vmatpush.bf16.msra.mxu0 %v2662
        %2675 = vmatmul.bf16.gmra.mxu0 %v2665
        %v2676 = vpop.f32.mrf.mxu0
        %v2677 = vadd.f32 0.0, %v2676
        %v2678 = vpop.f32.mrf.mxu0
        %v2679 = vadd.f32 0.0, %v2678
        %2680 = vdwg.mxu0
        %v2683 = vunpack.c.l.b16 %v2527
        %v2684 = vunpack.c.l.b16 %v2528
        %v2685 = vpack.c.b16 %v2684, %v2683
        %2686 = vrot.lane.b32.xlu0 %v1516, 64
        %v2687 = vpop.permute.xlu0 %2686
        %v2690 = vsel %vm1146, %v2685, 0
        %2692 = vmatpush.bf16.msra.mxu0 0
        %2693 = vmatpush.bf16.msra.mxu0 0
        %2694 = vmatpush.bf16.msra.mxu0 0
        %2695 = vmatpush.bf16.msra.mxu0 0
        %2696 = vmatpush.bf16.msra.mxu0 0
        %2697 = vmatpush.bf16.msra.mxu0 0
        %2698 = vmatpush.bf16.msra.mxu0 0
        %2699 = vmatpush.bf16.msra.mxu0 %v2687
        %2700 = vmatmul.bf16.gmra.mxu0 %v2690
        %v2701 = vpop.f32.mrf.mxu0
        %v2702 = vadd.f32 0.0, %v2701
        %v2703 = vpop.f32.mrf.mxu0
        %v2704 = vadd.f32 0.0, %v2703
        %2705 = vdwg.mxu0
        %v2708 = vunpack.c.l.b16 %v2529
        %v2709 = vunpack.c.l.b16 %v2530
        %v2710 = vpack.c.b16 %v2709, %v2708
        %2711 = vrot.lane.b32.xlu0 %v1544, 64
        %v2712 = vpop.permute.xlu0 %2711
        %v2715 = vsel %vm1146, %v2710, 0
        %2717 = vmatpush.bf16.msra.mxu0 0
        %2718 = vmatpush.bf16.msra.mxu0 0
        %2719 = vmatpush.bf16.msra.mxu0 0
        %2720 = vmatpush.bf16.msra.mxu0 0
        %2721 = vmatpush.bf16.msra.mxu0 0
        %2722 = vmatpush.bf16.msra.mxu0 0
        %2723 = vmatpush.bf16.msra.mxu0 0
        %2724 = vmatpush.bf16.msra.mxu0 %v2712
        %2725 = vmatmul.bf16.gmra.mxu0 %v2715
        %v2726 = vpop.f32.mrf.mxu0
        %v2727 = vadd.f32 0.0, %v2726
        %v2728 = vpop.f32.mrf.mxu0
        %v2729 = vadd.f32 0.0, %v2728
        %2730 = vdwg.mxu0
        %2731 = vrot.lane.b32.xlu0 %v909, 32
        %v2732 = vpop.permute.xlu0 %2731
        %2733 = vrot.lane.b32.xlu0 %v914, 32
        %v2734 = vpop.permute.xlu0 %2733
        %v2736 = vsel %vm915, %v2732, 0
        %v2739 = vsel %vm915, %v2734, 0
        %2741 = vmatpush.bf16.xpose.msra.mxu0 0
        %2742 = vmatpush.bf16.xpose.msra.mxu0 0
        %2743 = vmatpush.bf16.xpose.msra.mxu0 0
        %2744 = vmatpush.bf16.xpose.msra.mxu0 0
        %2745 = vmatpush.bf16.xpose.msra.mxu0 0
        %2746 = vmatpush.bf16.xpose.msra.mxu0 0
        %2747 = vmatpush.bf16.xpose.msra.mxu0 0
        %2748 = vmatpush.bf16.xpose.msra.mxu0 %v2739
        %2749 = vmatmul.bf16.gmra.mxu0 %v2736
        %v2750 = vpop.f32.mrf.mxu0
        %v2751 = vadd.f32 0.0, %v2750
        %v2752 = vpop.f32.mrf.mxu0
        %v2753 = vadd.f32 0.0, %v2752
        %2754 = vdwg.mxu0
        %2755 = vrot.lane.b32.xlu0 %v940, 32
        %v2756 = vpop.permute.xlu0 %2755
        %2757 = vrot.lane.b32.xlu0 %v945, 32
        %v2758 = vpop.permute.xlu0 %2757
        %v2760 = vsel %vm915, %v2756, 0
        %v2763 = vsel %vm915, %v2758, 0
        %2765 = vmatpush.bf16.xpose.msra.mxu0 0
        %2766 = vmatpush.bf16.xpose.msra.mxu0 0
        %2767 = vmatpush.bf16.xpose.msra.mxu0 0
        %2768 = vmatpush.bf16.xpose.msra.mxu0 0
        %2769 = vmatpush.bf16.xpose.msra.mxu0 0
        %2770 = vmatpush.bf16.xpose.msra.mxu0 0
        %2771 = vmatpush.bf16.xpose.msra.mxu0 0
        %2772 = vmatpush.bf16.xpose.msra.mxu0 %v2763
        %2773 = vmatmul.bf16.gmra.mxu0 %v2760
        %v2774 = vpop.f32.mrf.mxu0
        %v2775 = vadd.f32 0.0, %v2774
        %v2776 = vpop.f32.mrf.mxu0
        %v2777 = vadd.f32 0.0, %v2776
        %2778 = vdwg.mxu0
        %2779 = vrot.lane.b32.xlu0 %v970, 32
        %v2780 = vpop.permute.xlu0 %2779
        %2781 = vrot.lane.b32.xlu0 %v975, 32
        %v2782 = vpop.permute.xlu0 %2781
        %v2784 = vsel %vm915, %v2780, 0
        %v2787 = vsel %vm915, %v2782, 0
        %2789 = vmatpush.bf16.xpose.msra.mxu0 0
        %2790 = vmatpush.bf16.xpose.msra.mxu0 0
        %2791 = vmatpush.bf16.xpose.msra.mxu0 0
        %2792 = vmatpush.bf16.xpose.msra.mxu0 0
        %2793 = vmatpush.bf16.xpose.msra.mxu0 0
        %2794 = vmatpush.bf16.xpose.msra.mxu0 0
        %2795 = vmatpush.bf16.xpose.msra.mxu0 0
        %2796 = vmatpush.bf16.xpose.msra.mxu0 %v2787
        %2797 = vmatmul.bf16.gmra.mxu0 %v2784
        %v2798 = vpop.f32.mrf.mxu0
        %v2799 = vadd.f32 0.0, %v2798
        %v2800 = vpop.f32.mrf.mxu0
        %v2801 = vadd.f32 0.0, %v2800
        %2802 = vdwg.mxu0
        %2803 = vrot.lane.b32.xlu0 %v1000, 32
        %v2804 = vpop.permute.xlu0 %2803
        %2805 = vrot.lane.b32.xlu0 %v1005, 32
        %v2806 = vpop.permute.xlu0 %2805
        %v2808 = vsel %vm915, %v2804, 0
        %v2811 = vsel %vm915, %v2806, 0
        %2813 = vmatpush.bf16.xpose.msra.mxu0 0
        %2814 = vmatpush.bf16.xpose.msra.mxu0 0
        %2815 = vmatpush.bf16.xpose.msra.mxu0 0
        %2816 = vmatpush.bf16.xpose.msra.mxu0 0
        %2817 = vmatpush.bf16.xpose.msra.mxu0 0
        %2818 = vmatpush.bf16.xpose.msra.mxu0 0
        %2819 = vmatpush.bf16.xpose.msra.mxu0 0
        %2820 = vmatpush.bf16.xpose.msra.mxu0 %v2811
        %2821 = vmatmul.bf16.gmra.mxu0 %v2808
        %v2822 = vpop.f32.mrf.mxu0
        %v2823 = vadd.f32 0.0, %v2822
        %v2824 = vpop.f32.mrf.mxu0
        %v2825 = vadd.f32 0.0, %v2824
        %2826 = vdwg.mxu0
        %2827 = vrot.lane.b32.xlu0 %v1030, 32
        %v2828 = vpop.permute.xlu0 %2827
        %2829 = vrot.lane.b32.xlu0 %v1035, 32
        %v2830 = vpop.permute.xlu0 %2829
        %v2832 = vsel %vm915, %v2828, 0
        %v2835 = vsel %vm915, %v2830, 0
        %2837 = vmatpush.bf16.xpose.msra.mxu0 0
        %2838 = vmatpush.bf16.xpose.msra.mxu0 0
        %2839 = vmatpush.bf16.xpose.msra.mxu0 0
        %2840 = vmatpush.bf16.xpose.msra.mxu0 0
        %2841 = vmatpush.bf16.xpose.msra.mxu0 0
        %2842 = vmatpush.bf16.xpose.msra.mxu0 0
        %2843 = vmatpush.bf16.xpose.msra.mxu0 0
        %2844 = vmatpush.bf16.xpose.msra.mxu0 %v2835
        %2845 = vmatmul.bf16.gmra.mxu0 %v2832
        %v2846 = vpop.f32.mrf.mxu0
        %v2847 = vadd.f32 0.0, %v2846
        %v2848 = vpop.f32.mrf.mxu0
        %v2849 = vadd.f32 0.0, %v2848
        %2850 = vdwg.mxu0
        %2851 = vrot.lane.b32.xlu0 %v1060, 32
        %v2852 = vpop.permute.xlu0 %2851
        %2853 = vrot.lane.b32.xlu0 %v1065, 32
        %v2854 = vpop.permute.xlu0 %2853
        %v2856 = vsel %vm915, %v2852, 0
        %v2859 = vsel %vm915, %v2854, 0
        %2861 = vmatpush.bf16.xpose.msra.mxu0 0
        %2862 = vmatpush.bf16.xpose.msra.mxu0 0
        %2863 = vmatpush.bf16.xpose.msra.mxu0 0
        %2864 = vmatpush.bf16.xpose.msra.mxu0 0
        %2865 = vmatpush.bf16.xpose.msra.mxu0 0
        %2866 = vmatpush.bf16.xpose.msra.mxu0 0
        %2867 = vmatpush.bf16.xpose.msra.mxu0 0
        %2868 = vmatpush.bf16.xpose.msra.mxu0 %v2859
        %2869 = vmatmul.bf16.gmra.mxu0 %v2856
        %v2870 = vpop.f32.mrf.mxu0
        %v2871 = vadd.f32 0.0, %v2870
        %v2872 = vpop.f32.mrf.mxu0
        %v2873 = vadd.f32 0.0, %v2872
        %2874 = vdwg.mxu0
        %2875 = vrot.lane.b32.xlu0 %v1090, 32
        %v2876 = vpop.permute.xlu0 %2875
        %2877 = vrot.lane.b32.xlu0 %v1095, 32
        %v2878 = vpop.permute.xlu0 %2877
        %v2880 = vsel %vm915, %v2876, 0
        %v2883 = vsel %vm915, %v2878, 0
        %2885 = vmatpush.bf16.xpose.msra.mxu0 0
        %2886 = vmatpush.bf16.xpose.msra.mxu0 0
        %2887 = vmatpush.bf16.xpose.msra.mxu0 0
        %2888 = vmatpush.bf16.xpose.msra.mxu0 0
        %2889 = vmatpush.bf16.xpose.msra.mxu0 0
        %2890 = vmatpush.bf16.xpose.msra.mxu0 0
        %2891 = vmatpush.bf16.xpose.msra.mxu0 0
        %2892 = vmatpush.bf16.xpose.msra.mxu0 %v2883
        %2893 = vmatmul.bf16.gmra.mxu0 %v2880
        %v2894 = vpop.f32.mrf.mxu0
        %v2895 = vadd.f32 0.0, %v2894
        %v2896 = vpop.f32.mrf.mxu0
        %v2897 = vadd.f32 0.0, %v2896
        %2898 = vdwg.mxu0
        %2899 = vrot.lane.b32.xlu0 %v1120, 32
        %v2900 = vpop.permute.xlu0 %2899
        %2901 = vrot.lane.b32.xlu0 %v1125, 32
        %v2902 = vpop.permute.xlu0 %2901
        %v2904 = vsel %vm915, %v2900, 0
        %v2907 = vsel %vm915, %v2902, 0
        %2909 = vmatpush.bf16.xpose.msra.mxu0 0
        %2910 = vmatpush.bf16.xpose.msra.mxu0 0
        %2911 = vmatpush.bf16.xpose.msra.mxu0 0
        %2912 = vmatpush.bf16.xpose.msra.mxu0 0
        %2913 = vmatpush.bf16.xpose.msra.mxu0 0
        %2914 = vmatpush.bf16.xpose.msra.mxu0 0
        %2915 = vmatpush.bf16.xpose.msra.mxu0 0
        %2916 = vmatpush.bf16.xpose.msra.mxu0 %v2907
        %2917 = vmatmul.bf16.gmra.mxu0 %v2904
        %v2918 = vpop.f32.mrf.mxu0
        %v2919 = vadd.f32 0.0, %v2918
        %v2920 = vpop.f32.mrf.mxu0
        %v2921 = vadd.f32 0.0, %v2920
        %2922 = vdwg.mxu0
        %v2923 = vsel %vm1146, %v2751, -inf
        %2924 = vmax.xlane.f32.xlu0 %v2923
        %v2925 = vpop.xlane.xlu0 %2924
        %v2926 = vsel %vm1146, %v2753, -inf
        %2927 = vmax.xlane.f32.xlu0 %v2926
        %v2928 = vpop.xlane.xlu0 %2927
        %v2929 = vsel %vm1146, %v2775, -inf
        %2930 = vmax.xlane.f32.xlu0 %v2929
        %v2931 = vpop.xlane.xlu0 %2930
        %v2932 = vsel %vm1146, %v2777, -inf
        %2933 = vmax.xlane.f32.xlu0 %v2932
        %v2934 = vpop.xlane.xlu0 %2933
        %v2935 = vsel %vm1146, %v2799, -inf
        %2936 = vmax.xlane.f32.xlu0 %v2935
        %v2937 = vpop.xlane.xlu0 %2936
        %v2938 = vsel %vm1146, %v2801, -inf
        %2939 = vmax.xlane.f32.xlu0 %v2938
        %v2940 = vpop.xlane.xlu0 %2939
        %v2941 = vsel %vm1146, %v2823, -inf
        %2942 = vmax.xlane.f32.xlu0 %v2941
        %v2943 = vpop.xlane.xlu0 %2942
        %v2944 = vsel %vm1146, %v2825, -inf
        %2945 = vmax.xlane.f32.xlu0 %v2944
        %v2946 = vpop.xlane.xlu0 %2945
        %v2947 = vsel %vm1146, %v2847, -inf
        %2948 = vmax.xlane.f32.xlu0 %v2947
        %v2949 = vpop.xlane.xlu0 %2948
        %v2950 = vsel %vm1146, %v2849, -inf
        %2951 = vmax.xlane.f32.xlu0 %v2950
        %v2952 = vpop.xlane.xlu0 %2951
        %v2953 = vsel %vm1146, %v2871, -inf
        %2954 = vmax.xlane.f32.xlu0 %v2953
        %v2955 = vpop.xlane.xlu0 %2954
        %v2956 = vsel %vm1146, %v2873, -inf
        %2957 = vmax.xlane.f32.xlu0 %v2956
        %v2958 = vpop.xlane.xlu0 %2957
        %v2959 = vsel %vm1146, %v2895, -inf
        %2960 = vmax.xlane.f32.xlu0 %v2959
        %v2961 = vpop.xlane.xlu0 %2960
        %v2962 = vsel %vm1146, %v2897, -inf
        %2963 = vmax.xlane.f32.xlu0 %v2962
        %v2964 = vpop.xlane.xlu0 %2963
        %v2965 = vsel %vm1146, %v2919, -inf
        %2966 = vmax.xlane.f32.xlu0 %v2965
        %v2967 = vpop.xlane.xlu0 %2966
        %v2968 = vsel %vm1146, %v2921, -inf
        %2969 = vmax.xlane.f32.xlu0 %v2968
        %v2970 = vpop.xlane.xlu0 %2969
        %v2971 = vsub.f32 %v2751, %v2925
        %v2972 = vsub.f32 %v2753, %v2928
        %v2973 = vsub.f32 %v2775, %v2931
        %v2974 = vsub.f32 %v2777, %v2934
        %v2975 = vsub.f32 %v2799, %v2937
        %v2976 = vsub.f32 %v2801, %v2940
        %v2977 = vsub.f32 %v2823, %v2943
        %v2978 = vsub.f32 %v2825, %v2946
        %v2979 = vsub.f32 %v2847, %v2949
        %v2980 = vsub.f32 %v2849, %v2952
        %v2981 = vsub.f32 %v2871, %v2955
        %v2982 = vsub.f32 %v2873, %v2958
        %v2983 = vsub.f32 %v2895, %v2961
        %v2984 = vsub.f32 %v2897, %v2964
        %v2985 = vsub.f32 %v2919, %v2967
        %v2986 = vsub.f32 %v2921, %v2970
        %v2987 = vmul.f32 %v2971, 1.442695
        %v2988 = vpow.pop %v2987
        %v2989 = vmul.f32 %v2972, 1.442695
        %v2990 = vpow.pop %v2989
        %v2991 = vmul.f32 %v2973, 1.442695
        %v2992 = vpow.pop %v2991
        %v2993 = vmul.f32 %v2974, 1.442695
        %v2994 = vpow.pop %v2993
        %v2995 = vmul.f32 %v2975, 1.442695
        %v2996 = vpow.pop %v2995
        %v2997 = vmul.f32 %v2976, 1.442695
        %v2998 = vpow.pop %v2997
        %v2999 = vmul.f32 %v2977, 1.442695
        %v3000 = vpow.pop %v2999
        %v3001 = vmul.f32 %v2978, 1.442695
        %v3002 = vpow.pop %v3001
        %v3003 = vmul.f32 %v2979, 1.442695
        %v3004 = vpow.pop %v3003
        %v3005 = vmul.f32 %v2980, 1.442695
        %v3006 = vpow.pop %v3005
        %v3007 = vmul.f32 %v2981, 1.442695
        %v3008 = vpow.pop %v3007
        %v3009 = vmul.f32 %v2982, 1.442695
        %v3010 = vpow.pop %v3009
        %v3011 = vmul.f32 %v2983, 1.442695
        %v3012 = vpow.pop %v3011
        %v3013 = vmul.f32 %v2984, 1.442695
        %v3014 = vpow.pop %v3013
        %v3015 = vmul.f32 %v2985, 1.442695
        %v3016 = vpow.pop %v3015
        %v3017 = vmul.f32 %v2986, 1.442695
        %v3018 = vpow.pop %v3017
        %v3019 = vsel %vm1146, %v2988, 0.0
        %3020 = vadd.xlane.f32.xlu0 %v3019
        %v3021 = vpop.xlane.xlu0 %3020
        %v3022 = vsel %vm1146, %v2990, 0.0
        %3023 = vadd.xlane.f32.xlu0 %v3022
        %v3024 = vpop.xlane.xlu0 %3023
        %v3025 = vsel %vm1146, %v2992, 0.0
        %3026 = vadd.xlane.f32.xlu0 %v3025
        %v3027 = vpop.xlane.xlu0 %3026
        %v3028 = vsel %vm1146, %v2994, 0.0
        %3029 = vadd.xlane.f32.xlu0 %v3028
        %v3030 = vpop.xlane.xlu0 %3029
        %v3031 = vsel %vm1146, %v2996, 0.0
        %3032 = vadd.xlane.f32.xlu0 %v3031
        %v3033 = vpop.xlane.xlu0 %3032
        %v3034 = vsel %vm1146, %v2998, 0.0
        %3035 = vadd.xlane.f32.xlu0 %v3034
        %v3036 = vpop.xlane.xlu0 %3035
        %v3037 = vsel %vm1146, %v3000, 0.0
        %3038 = vadd.xlane.f32.xlu0 %v3037
        %v3039 = vpop.xlane.xlu0 %3038
        %v3040 = vsel %vm1146, %v3002, 0.0
        %3041 = vadd.xlane.f32.xlu0 %v3040
        %v3042 = vpop.xlane.xlu0 %3041
        %v3043 = vsel %vm1146, %v3004, 0.0
        %3044 = vadd.xlane.f32.xlu0 %v3043
        %v3045 = vpop.xlane.xlu0 %3044
        %v3046 = vsel %vm1146, %v3006, 0.0
        %3047 = vadd.xlane.f32.xlu0 %v3046
        %v3048 = vpop.xlane.xlu0 %3047
        %v3049 = vsel %vm1146, %v3008, 0.0
        %3050 = vadd.xlane.f32.xlu0 %v3049
        %v3051 = vpop.xlane.xlu0 %3050
        %v3052 = vsel %vm1146, %v3010, 0.0
        %3053 = vadd.xlane.f32.xlu0 %v3052
        %v3054 = vpop.xlane.xlu0 %3053
        %v3055 = vsel %vm1146, %v3012, 0.0
        %3056 = vadd.xlane.f32.xlu0 %v3055
        %v3057 = vpop.xlane.xlu0 %3056
        %v3058 = vsel %vm1146, %v3014, 0.0
        %3059 = vadd.xlane.f32.xlu0 %v3058
        %v3060 = vpop.xlane.xlu0 %3059
        %v3061 = vsel %vm1146, %v3016, 0.0
        %3062 = vadd.xlane.f32.xlu0 %v3061
        %v3063 = vpop.xlane.xlu0 %3062
        %v3064 = vsel %vm1146, %v3018, 0.0
        %3065 = vadd.xlane.f32.xlu0 %v3064
        %v3066 = vpop.xlane.xlu0 %3065
        %v3067 = vrcp.pop %v3021
        %v3068 = vrcp.pop %v3024
        %v3069 = vrcp.pop %v3027
        %v3070 = vrcp.pop %v3030
        %v3071 = vrcp.pop %v3033
        %v3072 = vrcp.pop %v3036
        %v3073 = vrcp.pop %v3039
        %v3074 = vrcp.pop %v3042
        %v3075 = vrcp.pop %v3045
        %v3076 = vrcp.pop %v3048
        %v3077 = vrcp.pop %v3051
        %v3078 = vrcp.pop %v3054
        %v3079 = vrcp.pop %v3057
        %v3080 = vrcp.pop %v3060
        %v3081 = vrcp.pop %v3063
        %v3082 = vrcp.pop %v3066
        %v3083 = vmul.f32 %v2988, %v3067
        %v3084 = vmul.f32 %v2990, %v3068
        %v3085 = vmul.f32 %v2992, %v3069
        %v3086 = vmul.f32 %v2994, %v3070
        %v3087 = vmul.f32 %v2996, %v3071
        %v3088 = vmul.f32 %v2998, %v3072
        %v3089 = vmul.f32 %v3000, %v3073
        %v3090 = vmul.f32 %v3002, %v3074
        %v3091 = vmul.f32 %v3004, %v3075
        %v3092 = vmul.f32 %v3006, %v3076
        %v3093 = vmul.f32 %v3008, %v3077
        %v3094 = vmul.f32 %v3010, %v3078
        %v3095 = vmul.f32 %v3012, %v3079
        %v3096 = vmul.f32 %v3014, %v3080
        %v3097 = vmul.f32 %v3016, %v3081
        %v3098 = vmul.f32 %v3018, %v3082
        %v3099 = vpack.c.bf16 %v3083, %v3083
        %v3100 = vpack.c.bf16 %v3084, %v3084
        %v3101 = vpack.c.bf16 %v3085, %v3085
        %v3102 = vpack.c.bf16 %v3086, %v3086
        %v3103 = vpack.c.bf16 %v3087, %v3087
        %v3104 = vpack.c.bf16 %v3088, %v3088
        %v3105 = vpack.c.bf16 %v3089, %v3089
        %v3106 = vpack.c.bf16 %v3090, %v3090
        %v3107 = vpack.c.bf16 %v3091, %v3091
        %v3108 = vpack.c.bf16 %v3092, %v3092
        %v3109 = vpack.c.bf16 %v3093, %v3093
        %v3110 = vpack.c.bf16 %v3094, %v3094
        %v3111 = vpack.c.bf16 %v3095, %v3095
        %v3112 = vpack.c.bf16 %v3096, %v3096
        %v3113 = vpack.c.bf16 %v3097, %v3097
        %v3114 = vpack.c.bf16 %v3098, %v3098
        %v3117 = vunpack.c.l.b16 %v3099
        %v3118 = vunpack.c.l.b16 %v3100
        %v3119 = vpack.c.b16 %v3118, %v3117
        %3120 = vrot.lane.b32.xlu0 %v1348, 32
        %v3121 = vpop.permute.xlu0 %3120
        %v3124 = vsel %vm1146, %v3119, 0
        %3126 = vmatpush.bf16.msra.mxu0 0
        %3127 = vmatpush.bf16.msra.mxu0 0
        %3128 = vmatpush.bf16.msra.mxu0 0
        %3129 = vmatpush.bf16.msra.mxu0 0
        %3130 = vmatpush.bf16.msra.mxu0 0
        %3131 = vmatpush.bf16.msra.mxu0 0
        %3132 = vmatpush.bf16.msra.mxu0 0
        %3133 = vmatpush.bf16.msra.mxu0 %v3121
        %3134 = vmatmul.bf16.gmra.mxu0 %v3124
        %v3135 = vpop.f32.mrf.mxu0
        %v3136 = vadd.f32 0.0, %v3135
        %v3137 = vpop.f32.mrf.mxu0
        %v3138 = vadd.f32 0.0, %v3137
        %3139 = vdwg.mxu0
        %v3142 = vunpack.c.l.b16 %v3101
        %v3143 = vunpack.c.l.b16 %v3102
        %v3144 = vpack.c.b16 %v3143, %v3142
        %3145 = vrot.lane.b32.xlu0 %v1376, 32
        %v3146 = vpop.permute.xlu0 %3145
        %v3149 = vsel %vm1146, %v3144, 0
        %3151 = vmatpush.bf16.msra.mxu0 0
        %3152 = vmatpush.bf16.msra.mxu0 0
        %3153 = vmatpush.bf16.msra.mxu0 0
        %3154 = vmatpush.bf16.msra.mxu0 0
        %3155 = vmatpush.bf16.msra.mxu0 0
        %3156 = vmatpush.bf16.msra.mxu0 0
        %3157 = vmatpush.bf16.msra.mxu0 0
        %3158 = vmatpush.bf16.msra.mxu0 %v3146
        %3159 = vmatmul.bf16.gmra.mxu0 %v3149
        %v3160 = vpop.f32.mrf.mxu0
        %v3161 = vadd.f32 0.0, %v3160
        %v3162 = vpop.f32.mrf.mxu0
        %v3163 = vadd.f32 0.0, %v3162
        %3164 = vdwg.mxu0
        %v3167 = vunpack.c.l.b16 %v3103
        %v3168 = vunpack.c.l.b16 %v3104
        %v3169 = vpack.c.b16 %v3168, %v3167
        %3170 = vrot.lane.b32.xlu0 %v1404, 32
        %v3171 = vpop.permute.xlu0 %3170
        %v3174 = vsel %vm1146, %v3169, 0
        %3176 = vmatpush.bf16.msra.mxu0 0
        %3177 = vmatpush.bf16.msra.mxu0 0
        %3178 = vmatpush.bf16.msra.mxu0 0
        %3179 = vmatpush.bf16.msra.mxu0 0
        %3180 = vmatpush.bf16.msra.mxu0 0
        %3181 = vmatpush.bf16.msra.mxu0 0
        %3182 = vmatpush.bf16.msra.mxu0 0
        %3183 = vmatpush.bf16.msra.mxu0 %v3171
        %3184 = vmatmul.bf16.gmra.mxu0 %v3174
        %v3185 = vpop.f32.mrf.mxu0
        %v3186 = vadd.f32 0.0, %v3185
        %v3187 = vpop.f32.mrf.mxu0
        %v3188 = vadd.f32 0.0, %v3187
        %3189 = vdwg.mxu0
        %v3192 = vunpack.c.l.b16 %v3105
        %v3193 = vunpack.c.l.b16 %v3106
        %v3194 = vpack.c.b16 %v3193, %v3192
        %3195 = vrot.lane.b32.xlu0 %v1432, 32
        %v3196 = vpop.permute.xlu0 %3195
        %v3199 = vsel %vm1146, %v3194, 0
        %3201 = vmatpush.bf16.msra.mxu0 0
        %3202 = vmatpush.bf16.msra.mxu0 0
        %3203 = vmatpush.bf16.msra.mxu0 0
        %3204 = vmatpush.bf16.msra.mxu0 0
        %3205 = vmatpush.bf16.msra.mxu0 0
        %3206 = vmatpush.bf16.msra.mxu0 0
        %3207 = vmatpush.bf16.msra.mxu0 0
        %3208 = vmatpush.bf16.msra.mxu0 %v3196
        %3209 = vmatmul.bf16.gmra.mxu0 %v3199
        %v3210 = vpop.f32.mrf.mxu0
        %v3211 = vadd.f32 0.0, %v3210
        %v3212 = vpop.f32.mrf.mxu0
        %v3213 = vadd.f32 0.0, %v3212
        %3214 = vdwg.mxu0
        %v3217 = vunpack.c.l.b16 %v3107
        %v3218 = vunpack.c.l.b16 %v3108
        %v3219 = vpack.c.b16 %v3218, %v3217
        %3220 = vrot.lane.b32.xlu0 %v1460, 32
        %v3221 = vpop.permute.xlu0 %3220
        %v3224 = vsel %vm1146, %v3219, 0
        %3226 = vmatpush.bf16.msra.mxu0 0
        %3227 = vmatpush.bf16.msra.mxu0 0
        %3228 = vmatpush.bf16.msra.mxu0 0
        %3229 = vmatpush.bf16.msra.mxu0 0
        %3230 = vmatpush.bf16.msra.mxu0 0
        %3231 = vmatpush.bf16.msra.mxu0 0
        %3232 = vmatpush.bf16.msra.mxu0 0
        %3233 = vmatpush.bf16.msra.mxu0 %v3221
        %3234 = vmatmul.bf16.gmra.mxu0 %v3224
        %v3235 = vpop.f32.mrf.mxu0
        %v3236 = vadd.f32 0.0, %v3235
        %v3237 = vpop.f32.mrf.mxu0
        %v3238 = vadd.f32 0.0, %v3237
        %3239 = vdwg.mxu0
        %v3242 = vunpack.c.l.b16 %v3109
        %v3243 = vunpack.c.l.b16 %v3110
        %v3244 = vpack.c.b16 %v3243, %v3242
        %3245 = vrot.lane.b32.xlu0 %v1488, 32
        %v3246 = vpop.permute.xlu0 %3245
        %v3249 = vsel %vm1146, %v3244, 0
        %3251 = vmatpush.bf16.msra.mxu0 0
        %3252 = vmatpush.bf16.msra.mxu0 0
        %3253 = vmatpush.bf16.msra.mxu0 0
        %3254 = vmatpush.bf16.msra.mxu0 0
        %3255 = vmatpush.bf16.msra.mxu0 0
        %3256 = vmatpush.bf16.msra.mxu0 0
        %3257 = vmatpush.bf16.msra.mxu0 0
        %3258 = vmatpush.bf16.msra.mxu0 %v3246
        %3259 = vmatmul.bf16.gmra.mxu0 %v3249
        %v3260 = vpop.f32.mrf.mxu0
        %v3261 = vadd.f32 0.0, %v3260
        %v3262 = vpop.f32.mrf.mxu0
        %v3263 = vadd.f32 0.0, %v3262
        %3264 = vdwg.mxu0
        %v3267 = vunpack.c.l.b16 %v3111
        %v3268 = vunpack.c.l.b16 %v3112
        %v3269 = vpack.c.b16 %v3268, %v3267
        %3270 = vrot.lane.b32.xlu0 %v1516, 32
        %v3271 = vpop.permute.xlu0 %3270
        %v3274 = vsel %vm1146, %v3269, 0
        %3276 = vmatpush.bf16.msra.mxu0 0
        %3277 = vmatpush.bf16.msra.mxu0 0
        %3278 = vmatpush.bf16.msra.mxu0 0
        %3279 = vmatpush.bf16.msra.mxu0 0
        %3280 = vmatpush.bf16.msra.mxu0 0
        %3281 = vmatpush.bf16.msra.mxu0 0
        %3282 = vmatpush.bf16.msra.mxu0 0
        %3283 = vmatpush.bf16.msra.mxu0 %v3271
        %3284 = vmatmul.bf16.gmra.mxu0 %v3274
        %v3285 = vpop.f32.mrf.mxu0
        %v3286 = vadd.f32 0.0, %v3285
        %v3287 = vpop.f32.mrf.mxu0
        %v3288 = vadd.f32 0.0, %v3287
        %3289 = vdwg.mxu0
        %v3292 = vunpack.c.l.b16 %v3113
        %v3293 = vunpack.c.l.b16 %v3114
        %v3294 = vpack.c.b16 %v3293, %v3292
        %3295 = vrot.lane.b32.xlu0 %v1544, 32
        %v3296 = vpop.permute.xlu0 %3295
        %v3299 = vsel %vm1146, %v3294, 0
        %3301 = vmatpush.bf16.msra.mxu0 0
        %3302 = vmatpush.bf16.msra.mxu0 0
        %3303 = vmatpush.bf16.msra.mxu0 0
        %3304 = vmatpush.bf16.msra.mxu0 0
        %3305 = vmatpush.bf16.msra.mxu0 0
        %3306 = vmatpush.bf16.msra.mxu0 0
        %3307 = vmatpush.bf16.msra.mxu0 0
        %3308 = vmatpush.bf16.msra.mxu0 %v3296
        %3309 = vmatmul.bf16.gmra.mxu0 %v3299
        %v3310 = vpop.f32.mrf.mxu0
        %v3311 = vadd.f32 0.0, %v3310
        %v3312 = vpop.f32.mrf.mxu0
        %v3313 = vadd.f32 0.0, %v3312
        %3314 = vdwg.mxu0
        %3331 = vrot.lane.b32.xlu0 %v1968, 32
        %v3332 = vpop.permute.xlu0 %3331
        %3333 = vrot.lane.b32.xlu0 %v1970, 32
        %v3334 = vpop.permute.xlu0 %3333
        %3335 = vrot.lane.b32.xlu0 %v1993, 32
        %v3336 = vpop.permute.xlu0 %3335
        %3337 = vrot.lane.b32.xlu0 %v1995, 32
        %v3338 = vpop.permute.xlu0 %3337
        %3339 = vrot.lane.b32.xlu0 %v2018, 32
        %v3340 = vpop.permute.xlu0 %3339
        %3341 = vrot.lane.b32.xlu0 %v2020, 32
        %v3342 = vpop.permute.xlu0 %3341
        %3343 = vrot.lane.b32.xlu0 %v2043, 32
        %v3344 = vpop.permute.xlu0 %3343
        %3345 = vrot.lane.b32.xlu0 %v2045, 32
        %v3346 = vpop.permute.xlu0 %3345
        %3347 = vrot.lane.b32.xlu0 %v2068, 32
        %v3348 = vpop.permute.xlu0 %3347
        %3349 = vrot.lane.b32.xlu0 %v2070, 32
        %v3350 = vpop.permute.xlu0 %3349
        %3351 = vrot.lane.b32.xlu0 %v2093, 32
        %v3352 = vpop.permute.xlu0 %3351
        %3353 = vrot.lane.b32.xlu0 %v2095, 32
        %v3354 = vpop.permute.xlu0 %3353
        %3355 = vrot.lane.b32.xlu0 %v2118, 32
        %v3356 = vpop.permute.xlu0 %3355
        %3357 = vrot.lane.b32.xlu0 %v2120, 32
        %v3358 = vpop.permute.xlu0 %3357
        %3359 = vrot.lane.b32.xlu0 %v2143, 32
        %v3360 = vpop.permute.xlu0 %3359
        %3361 = vrot.lane.b32.xlu0 %v2145, 32
        %v3362 = vpop.permute.xlu0 %3361
        %3395 = vrot.lane.b32.xlu0 %v2552, 64
        %v3396 = vpop.permute.xlu0 %3395
        %3397 = vrot.lane.b32.xlu0 %v2554, 64
        %v3398 = vpop.permute.xlu0 %3397
        %3399 = vrot.lane.b32.xlu0 %v2577, 64
        %v3400 = vpop.permute.xlu0 %3399
        %3401 = vrot.lane.b32.xlu0 %v2579, 64
        %v3402 = vpop.permute.xlu0 %3401
        %3403 = vrot.lane.b32.xlu0 %v2602, 64
        %v3404 = vpop.permute.xlu0 %3403
        %3405 = vrot.lane.b32.xlu0 %v2604, 64
        %v3406 = vpop.permute.xlu0 %3405
        %3407 = vrot.lane.b32.xlu0 %v2627, 64
        %v3408 = vpop.permute.xlu0 %3407
        %3409 = vrot.lane.b32.xlu0 %v2629, 64
        %v3410 = vpop.permute.xlu0 %3409
        %3411 = vrot.lane.b32.xlu0 %v2652, 64
        %v3412 = vpop.permute.xlu0 %3411
        %3413 = vrot.lane.b32.xlu0 %v2654, 64
        %v3414 = vpop.permute.xlu0 %3413
        %3415 = vrot.lane.b32.xlu0 %v2677, 64
        %v3416 = vpop.permute.xlu0 %3415
        %3417 = vrot.lane.b32.xlu0 %v2679, 64
        %v3418 = vpop.permute.xlu0 %3417
        %3419 = vrot.lane.b32.xlu0 %v2702, 64
        %v3420 = vpop.permute.xlu0 %3419
        %3421 = vrot.lane.b32.xlu0 %v2704, 64
        %v3422 = vpop.permute.xlu0 %3421
        %3423 = vrot.lane.b32.xlu0 %v2727, 64
        %v3424 = vpop.permute.xlu0 %3423
        %3425 = vrot.lane.b32.xlu0 %v2729, 64
        %v3426 = vpop.permute.xlu0 %3425
        %3459 = vrot.lane.b32.xlu0 %v3136, 96
        %v3460 = vpop.permute.xlu0 %3459
        %3461 = vrot.lane.b32.xlu0 %v3138, 96
        %v3462 = vpop.permute.xlu0 %3461
        %3463 = vrot.lane.b32.xlu0 %v3161, 96
        %v3464 = vpop.permute.xlu0 %3463
        %3465 = vrot.lane.b32.xlu0 %v3163, 96
        %v3466 = vpop.permute.xlu0 %3465
        %3467 = vrot.lane.b32.xlu0 %v3186, 96
        %v3468 = vpop.permute.xlu0 %3467
        %3469 = vrot.lane.b32.xlu0 %v3188, 96
        %v3470 = vpop.permute.xlu0 %3469
        %3471 = vrot.lane.b32.xlu0 %v3211, 96
        %v3472 = vpop.permute.xlu0 %3471
        %3473 = vrot.lane.b32.xlu0 %v3213, 96
        %v3474 = vpop.permute.xlu0 %3473
        %3475 = vrot.lane.b32.xlu0 %v3236, 96
        %v3476 = vpop.permute.xlu0 %3475
        %3477 = vrot.lane.b32.xlu0 %v3238, 96
        %v3478 = vpop.permute.xlu0 %3477
        %3479 = vrot.lane.b32.xlu0 %v3261, 96
        %v3480 = vpop.permute.xlu0 %3479
        %3481 = vrot.lane.b32.xlu0 %v3263, 96
        %v3482 = vpop.permute.xlu0 %3481
        %3483 = vrot.lane.b32.xlu0 %v3286, 96
        %v3484 = vpop.permute.xlu0 %3483
        %3485 = vrot.lane.b32.xlu0 %v3288, 96
        %v3486 = vpop.permute.xlu0 %3485
        %3487 = vrot.lane.b32.xlu0 %v3311, 96
        %v3488 = vpop.permute.xlu0 %3487
        %3489 = vrot.lane.b32.xlu0 %v3313, 96
        %v3490 = vpop.permute.xlu0 %3489
        %v3507 = vsel %vm915, %v1363, %v3332
        %v3508 = vsel %vm915, %v1365, %v3334
        %v3509 = vsel %vm915, %v1391, %v3336
        %v3510 = vsel %vm915, %v1393, %v3338
        %v3511 = vsel %vm915, %v1419, %v3340
        %v3512 = vsel %vm915, %v1421, %v3342
        %v3513 = vsel %vm915, %v1447, %v3344
        %v3514 = vsel %vm915, %v1449, %v3346
        %v3515 = vsel %vm915, %v1475, %v3348
        %v3516 = vsel %vm915, %v1477, %v3350
        %v3517 = vsel %vm915, %v1503, %v3352
        %v3518 = vsel %vm915, %v1505, %v3354
        %v3519 = vsel %vm915, %v1531, %v3356
        %v3520 = vsel %vm915, %v1533, %v3358
        %v3521 = vsel %vm915, %v1559, %v3360
        %v3522 = vsel %vm915, %v1561, %v3362
        %vm3523 = vcmask 523264
        %v3524 = vsel %vm3523, %v3507, %v3396
        %v3525 = vsel %vm3523, %v3508, %v3398
        %v3526 = vsel %vm3523, %v3509, %v3400
        %v3527 = vsel %vm3523, %v3510, %v3402
        %v3528 = vsel %vm3523, %v3511, %v3404
        %v3529 = vsel %vm3523, %v3512, %v3406
        %v3530 = vsel %vm3523, %v3513, %v3408
        %v3531 = vsel %vm3523, %v3514, %v3410
        %v3532 = vsel %vm3523, %v3515, %v3412
        %v3533 = vsel %vm3523, %v3516, %v3414
        %v3534 = vsel %vm3523, %v3517, %v3416
        %v3535 = vsel %vm3523, %v3518, %v3418
        %v3536 = vsel %vm3523, %v3519, %v3420
        %v3537 = vsel %vm3523, %v3520, %v3422
        %v3538 = vsel %vm3523, %v3521, %v3424
        %v3539 = vsel %vm3523, %v3522, %v3426
        %vm3540 = vcmask 785408
        %v3541 = vsel %vm3540, %v3524, %v3460
        %v3542 = vsel %vm3540, %v3525, %v3462
        %v3543 = vsel %vm3540, %v3526, %v3464
        %v3544 = vsel %vm3540, %v3527, %v3466
        %v3545 = vsel %vm3540, %v3528, %v3468
        %v3546 = vsel %vm3540, %v3529, %v3470
        %v3547 = vsel %vm3540, %v3530, %v3472
        %v3548 = vsel %vm3540, %v3531, %v3474
        %v3549 = vsel %vm3540, %v3532, %v3476
        %v3550 = vsel %vm3540, %v3533, %v3478
        %v3551 = vsel %vm3540, %v3534, %v3480
        %v3552 = vsel %vm3540, %v3535, %v3482
        %v3553 = vsel %vm3540, %v3536, %v3484
        %v3554 = vsel %vm3540, %v3537, %v3486
        %v3555 = vsel %vm3540, %v3538, %v3488
        %v3556 = vsel %vm3540, %v3539, %v3490
        %v3557 = vpack.c.bf16 %v3542, %v3541
        %v3558 = vpack.c.bf16 %v3544, %v3543
        %v3559 = vpack.c.bf16 %v3546, %v3545
        %v3560 = vpack.c.bf16 %v3548, %v3547
        %v3561 = vpack.c.bf16 %v3550, %v3549
        %v3562 = vpack.c.bf16 %v3552, %v3551
        %v3563 = vpack.c.bf16 %v3554, %v3553
        %v3564 = vpack.c.bf16 %v3556, %v3555
        %v3565 = vld [vmem:[#allocation8] sm:$0xf]
        %v3566 = vld [vmem:[#allocation8 + $0x4] sm:$0xf]
        %v3567 = vld [vmem:[#allocation8 + $0x8] sm:$0xf]
        %v3568 = vld [vmem:[#allocation8 + $0xc] sm:$0xf]
        %v3569 = vld [vmem:[#allocation8 + $0x10] sm:$0xf]
        %v3570 = vld [vmem:[#allocation8 + $0x14] sm:$0xf]
        %v3571 = vld [vmem:[#allocation8 + $0x18] sm:$0xf]
        %v3572 = vld [vmem:[#allocation8 + $0x1c] sm:$0xf]
        %v3573 = vld [vmem:[#allocation8 + $0x20] sm:$0xf]
        %v3574 = vld [vmem:[#allocation8 + $0x24] sm:$0xf]
        %v3575 = vld [vmem:[#allocation8 + $0x28] sm:$0xf]
        %v3576 = vld [vmem:[#allocation8 + $0x2c] sm:$0xf]
        %v3577 = vld [vmem:[#allocation8 + $0x30] sm:$0xf]
        %v3578 = vld [vmem:[#allocation8 + $0x34] sm:$0xf]
        %v3579 = vld [vmem:[#allocation8 + $0x38] sm:$0xf]
        %v3580 = vld [vmem:[#allocation8 + $0x3c] sm:$0xf]
        %v3597 = vunpack.c.l.b16 %v3565
        %v3598 = vunpack.c.l.b16 %v3566
        %v3599 = vunpack.c.l.b16 %v3567
        %v3600 = vunpack.c.l.b16 %v3568
        %v3601 = vunpack.c.l.b16 %v3569
        %v3602 = vunpack.c.l.b16 %v3570
        %v3603 = vunpack.c.l.b16 %v3571
        %v3604 = vunpack.c.l.b16 %v3572
        %v3605 = vunpack.c.l.b16 %v3573
        %v3606 = vunpack.c.l.b16 %v3574
        %v3607 = vunpack.c.l.b16 %v3575
        %v3608 = vunpack.c.l.b16 %v3576
        %v3609 = vunpack.c.l.b16 %v3577
        %v3610 = vunpack.c.l.b16 %v3578
        %v3611 = vunpack.c.l.b16 %v3579
        %v3612 = vunpack.c.l.b16 %v3580
        %v3613 = vpack.c.b16 %v3598, %v3597
        %v3614 = vpack.c.b16 %v3600, %v3599
        %v3615 = vpack.c.b16 %v3602, %v3601
        %v3616 = vpack.c.b16 %v3604, %v3603
        %v3617 = vpack.c.b16 %v3606, %v3605
        %v3618 = vpack.c.b16 %v3608, %v3607
        %v3619 = vpack.c.b16 %v3610, %v3609
        %v3620 = vpack.c.b16 %v3612, %v3611
        %3629 = vmatpush.bf16.msra.mxu0 %v3620
        %3630 = vmatpush.bf16.msra.mxu0 %v3619
        %3631 = vmatpush.bf16.msra.mxu0 %v3618
        %3632 = vmatpush.bf16.msra.mxu0 %v3617
        %3633 = vmatpush.bf16.msra.mxu0 %v3616
        %3634 = vmatpush.bf16.msra.mxu0 %v3615
        %3635 = vmatpush.bf16.msra.mxu0 %v3614
        %3636 = vmatpush.bf16.msra.mxu0 %v3613
        %3637 = vmatmul.bf16.gmra.mxu0 %v3557
        %v3638 = vpop.f32.mrf.mxu0
        %v3639 = vadd.f32 0.0, %v3638
        %v3640 = vpop.f32.mrf.mxu0
        %v3641 = vadd.f32 0.0, %v3640
        %3642 = vmatmul.bf16.gmra.mxu0 %v3558
        %v3643 = vpop.f32.mrf.mxu0
        %v3644 = vadd.f32 0.0, %v3643
        %v3645 = vpop.f32.mrf.mxu0
        %v3646 = vadd.f32 0.0, %v3645
        %3647 = vmatmul.bf16.gmra.mxu0 %v3559
        %v3648 = vpop.f32.mrf.mxu0
        %v3649 = vadd.f32 0.0, %v3648
        %v3650 = vpop.f32.mrf.mxu0
        %v3651 = vadd.f32 0.0, %v3650
        %3652 = vmatmul.bf16.gmra.mxu0 %v3560
        %v3653 = vpop.f32.mrf.mxu0
        %v3654 = vadd.f32 0.0, %v3653
        %v3655 = vpop.f32.mrf.mxu0
        %v3656 = vadd.f32 0.0, %v3655
        %3657 = vmatmul.bf16.gmra.mxu0 %v3561
        %v3658 = vpop.f32.mrf.mxu0
        %v3659 = vadd.f32 0.0, %v3658
        %v3660 = vpop.f32.mrf.mxu0
        %v3661 = vadd.f32 0.0, %v3660
        %3662 = vmatmul.bf16.gmra.mxu0 %v3562
        %v3663 = vpop.f32.mrf.mxu0
        %v3664 = vadd.f32 0.0, %v3663
        %v3665 = vpop.f32.mrf.mxu0
        %v3666 = vadd.f32 0.0, %v3665
        %3667 = vmatmul.bf16.gmra.mxu0 %v3563
        %v3668 = vpop.f32.mrf.mxu0
        %v3669 = vadd.f32 0.0, %v3668
        %v3670 = vpop.f32.mrf.mxu0
        %v3671 = vadd.f32 0.0, %v3670
        %3672 = vmatmul.bf16.gmra.mxu0 %v3564
        %v3673 = vpop.f32.mrf.mxu0
        %v3674 = vadd.f32 0.0, %v3673
        %v3675 = vpop.f32.mrf.mxu0
        %v3676 = vadd.f32 0.0, %v3675
        %3677 = vdwg.mxu0
        %v3678 = vadd.f32 %v526, %v3639
        %v3679 = vadd.f32 %v527, %v3641
        %v3680 = vadd.f32 %v528, %v3644
        %v3681 = vadd.f32 %v529, %v3646
        %v3682 = vadd.f32 %v530, %v3649
        %v3683 = vadd.f32 %v531, %v3651
        %v3684 = vadd.f32 %v532, %v3654
        %v3685 = vadd.f32 %v533, %v3656
        %v3686 = vadd.f32 %v534, %v3659
        %v3687 = vadd.f32 %v535, %v3661
        %v3688 = vadd.f32 %v536, %v3664
        %v3689 = vadd.f32 %v537, %v3666
        %v3690 = vadd.f32 %v538, %v3669
        %v3691 = vadd.f32 %v539, %v3671
        %v3692 = vadd.f32 %v540, %v3674
        %v3693 = vadd.f32 %v541, %v3676
        %v3694 = vmul.f32 %v3678, %v3678
        %v3695 = vmul.f32 %v3679, %v3679
        %v3696 = vmul.f32 %v3680, %v3680
        %v3697 = vmul.f32 %v3681, %v3681
        %v3698 = vmul.f32 %v3682, %v3682
        %v3699 = vmul.f32 %v3683, %v3683
        %v3700 = vmul.f32 %v3684, %v3684
        %v3701 = vmul.f32 %v3685, %v3685
        %v3702 = vmul.f32 %v3686, %v3686
        %v3703 = vmul.f32 %v3687, %v3687
        %v3704 = vmul.f32 %v3688, %v3688
        %v3705 = vmul.f32 %v3689, %v3689
        %v3706 = vmul.f32 %v3690, %v3690
        %v3707 = vmul.f32 %v3691, %v3691
        %v3708 = vmul.f32 %v3692, %v3692
        %v3709 = vmul.f32 %v3693, %v3693
        %v3710 = vadd.f32 %v3694, %v3695
        %v3711 = vrot.slane %v3710, 4
        %v3712 = vadd.f32 %v3710, %v3711
        %v3713 = vrot.slane %v3712, 2
        %v3714 = vadd.f32 %v3712, %v3713
        %v3715 = vrot.slane %v3714, 1
        %v3716 = vadd.f32 %v3714, %v3715
        %v3717 = vadd.f32 %v3696, %v3697
        %v3718 = vrot.slane %v3717, 4
        %v3719 = vadd.f32 %v3717, %v3718
        %v3720 = vrot.slane %v3719, 2
        %v3721 = vadd.f32 %v3719, %v3720
        %v3722 = vrot.slane %v3721, 1
        %v3723 = vadd.f32 %v3721, %v3722
        %v3724 = vadd.f32 %v3698, %v3699
        %v3725 = vrot.slane %v3724, 4
        %v3726 = vadd.f32 %v3724, %v3725
        %v3727 = vrot.slane %v3726, 2
        %v3728 = vadd.f32 %v3726, %v3727
        %v3729 = vrot.slane %v3728, 1
        %v3730 = vadd.f32 %v3728, %v3729
        %v3731 = vadd.f32 %v3700, %v3701
        %v3732 = vrot.slane %v3731, 4
        %v3733 = vadd.f32 %v3731, %v3732
        %v3734 = vrot.slane %v3733, 2
        %v3735 = vadd.f32 %v3733, %v3734
        %v3736 = vrot.slane %v3735, 1
        %v3737 = vadd.f32 %v3735, %v3736
        %v3738 = vadd.f32 %v3702, %v3703
        %v3739 = vrot.slane %v3738, 4
        %v3740 = vadd.f32 %v3738, %v3739
        %v3741 = vrot.slane %v3740, 2
        %v3742 = vadd.f32 %v3740, %v3741
        %v3743 = vrot.slane %v3742, 1
        %v3744 = vadd.f32 %v3742, %v3743
        %v3745 = vadd.f32 %v3704, %v3705
        %v3746 = vrot.slane %v3745, 4
        %v3747 = vadd.f32 %v3745, %v3746
        %v3748 = vrot.slane %v3747, 2
        %v3749 = vadd.f32 %v3747, %v3748
        %v3750 = vrot.slane %v3749, 1
        %v3751 = vadd.f32 %v3749, %v3750
        %v3752 = vadd.f32 %v3706, %v3707
        %v3753 = vrot.slane %v3752, 4
        %v3754 = vadd.f32 %v3752, %v3753
        %v3755 = vrot.slane %v3754, 2
        %v3756 = vadd.f32 %v3754, %v3755
        %v3757 = vrot.slane %v3756, 1
        %v3758 = vadd.f32 %v3756, %v3757
        %v3759 = vadd.f32 %v3708, %v3709
        %v3760 = vrot.slane %v3759, 4
        %v3761 = vadd.f32 %v3759, %v3760
        %v3762 = vrot.slane %v3761, 2
        %v3763 = vadd.f32 %v3761, %v3762
        %v3764 = vrot.slane %v3763, 1
        %v3765 = vadd.f32 %v3763, %v3764
        %v3766 = vrsqrt.pop %v3716
        %v3767 = vmul.f32 %v3766, %v3716
        %v3768 = vmul.f32 %v3767, %v3766
        %v3769 = vmul.f32 0.5, %v3768
        %v3770 = vsub.f32 1.5, %v3769
        %v3771 = vmul.f32 %v3766, %v3770
        %v3772 = vmul.f32 %v3716, %v3771
        %vm3773 = vcmp.eq.f32.partialorder %v3716, inf
        %v3774 = vsel %vm3773, %v3716, %v3772
        %vm3775 = vcmp.eq.f32.partialorder %v3716, 0.0
        %v3776 = vand.u32 %v3716, 2147483648
        %v3777 = vsel %vm3775, %v3776, %v3774
        %v3778 = vrsqrt.pop %v3723
        %v3779 = vmul.f32 %v3778, %v3723
        %v3780 = vmul.f32 %v3779, %v3778
        %v3781 = vmul.f32 0.5, %v3780
        %v3782 = vsub.f32 1.5, %v3781
        %v3783 = vmul.f32 %v3778, %v3782
        %v3784 = vmul.f32 %v3723, %v3783
        %vm3785 = vcmp.eq.f32.partialorder %v3723, inf
        %v3786 = vsel %vm3785, %v3723, %v3784
        %vm3787 = vcmp.eq.f32.partialorder %v3723, 0.0
        %v3788 = vand.u32 %v3723, 2147483648
        %v3789 = vsel %vm3787, %v3788, %v3786
        %v3790 = vrsqrt.pop %v3730
        %v3791 = vmul.f32 %v3790, %v3730
        %v3792 = vmul.f32 %v3791, %v3790
        %v3793 = vmul.f32 0.5, %v3792
        %v3794 = vsub.f32 1.5, %v3793
        %v3795 = vmul.f32 %v3790, %v3794
        %v3796 = vmul.f32 %v3730, %v3795
        %vm3797 = vcmp.eq.f32.partialorder %v3730, inf
        %v3798 = vsel %vm3797, %v3730, %v3796
        %vm3799 = vcmp.eq.f32.partialorder %v3730, 0.0
        %v3800 = vand.u32 %v3730, 2147483648
        %v3801 = vsel %vm3799, %v3800, %v3798
        %v3802 = vrsqrt.pop %v3737
        %v3803 = vmul.f32 %v3802, %v3737
        %v3804 = vmul.f32 %v3803, %v3802
        %v3805 = vmul.f32 0.5, %v3804
        %v3806 = vsub.f32 1.5, %v3805
        %v3807 = vmul.f32 %v3802, %v3806
        %v3808 = vmul.f32 %v3737, %v3807
        %vm3809 = vcmp.eq.f32.partialorder %v3737, inf
        %v3810 = vsel %vm3809, %v3737, %v3808
        %vm3811 = vcmp.eq.f32.partialorder %v3737, 0.0
        %v3812 = vand.u32 %v3737, 2147483648
        %v3813 = vsel %vm3811, %v3812, %v3810
        %v3814 = vrsqrt.pop %v3744
        %v3815 = vmul.f32 %v3814, %v3744
        %v3816 = vmul.f32 %v3815, %v3814
        %v3817 = vmul.f32 0.5, %v3816
        %v3818 = vsub.f32 1.5, %v3817
        %v3819 = vmul.f32 %v3814, %v3818
        %v3820 = vmul.f32 %v3744, %v3819
        %vm3821 = vcmp.eq.f32.partialorder %v3744, inf
        %v3822 = vsel %vm3821, %v3744, %v3820
        %vm3823 = vcmp.eq.f32.partialorder %v3744, 0.0
        %v3824 = vand.u32 %v3744, 2147483648
        %v3825 = vsel %vm3823, %v3824, %v3822
        %v3826 = vrsqrt.pop %v3751
        %v3827 = vmul.f32 %v3826, %v3751
        %v3828 = vmul.f32 %v3827, %v3826
        %v3829 = vmul.f32 0.5, %v3828
        %v3830 = vsub.f32 1.5, %v3829
        %v3831 = vmul.f32 %v3826, %v3830
        %v3832 = vmul.f32 %v3751, %v3831
        %vm3833 = vcmp.eq.f32.partialorder %v3751, inf
        %v3834 = vsel %vm3833, %v3751, %v3832
        %vm3835 = vcmp.eq.f32.partialorder %v3751, 0.0
        %v3836 = vand.u32 %v3751, 2147483648
        %v3837 = vsel %vm3835, %v3836, %v3834
        %v3838 = vrsqrt.pop %v3758
        %v3839 = vmul.f32 %v3838, %v3758
        %v3840 = vmul.f32 %v3839, %v3838
        %v3841 = vmul.f32 0.5, %v3840
        %v3842 = vsub.f32 1.5, %v3841
        %v3843 = vmul.f32 %v3838, %v3842
        %v3844 = vmul.f32 %v3758, %v3843
        %vm3845 = vcmp.eq.f32.partialorder %v3758, inf
        %v3846 = vsel %vm3845, %v3758, %v3844
        %vm3847 = vcmp.eq.f32.partialorder %v3758, 0.0
        %v3848 = vand.u32 %v3758, 2147483648
        %v3849 = vsel %vm3847, %v3848, %v3846
        %v3850 = vrsqrt.pop %v3765
        %v3851 = vmul.f32 %v3850, %v3765
        %v3852 = vmul.f32 %v3851, %v3850
        %v3853 = vmul.f32 0.5, %v3852
        %v3854 = vsub.f32 1.5, %v3853
        %v3855 = vmul.f32 %v3850, %v3854
        %v3856 = vmul.f32 %v3765, %v3855
        %vm3857 = vcmp.eq.f32.partialorder %v3765, inf
        %v3858 = vsel %vm3857, %v3765, %v3856
        %vm3859 = vcmp.eq.f32.partialorder %v3765, 0.0
        %v3860 = vand.u32 %v3765, 2147483648
        %v3861 = vsel %vm3859, %v3860, %v3858
        %v3862 = vmax.f32 %v3777, 1e-12
        %v3863 = vmax.f32 %v3789, 1e-12
        %v3864 = vmax.f32 %v3801, 1e-12
        %v3865 = vmax.f32 %v3813, 1e-12
        %v3866 = vmax.f32 %v3825, 1e-12
        %v3867 = vmax.f32 %v3837, 1e-12
        %v3868 = vmax.f32 %v3849, 1e-12
        %v3869 = vmax.f32 %v3861, 1e-12
        %v3870 = vrcp.pop %v3862
        %v3871 = vmul.f32 %v3862, %v3870
        %v3872 = vsub.f32 1.0, %v3871
        %v3873 = vmul.f32 %v3870, %v3872
        %v3874 = vadd.f32 %v3870, %v3873
        %vm3875 = vweird.f32 %v3862
        %vm3876 = vweird.f32 %v3870
        %vm3877 = vmor %vm3875, %vm3876
        %v3878 = vsel %vm3877, %v3870, %v3874
        %v3879 = vand.u32 2147483647, %v3862
        %vm3880 = vcmp.eq.f32.partialorder %v3879, 8.507059e+37
        %v3881 = vand.u32 %v3862, 2147483648
        %v3882 = vor.u32 1.1754944e-38, %v3881
        %v3883 = vsel %vm3880, %v3882, %v3878
        %v3884 = vmul.f32 %v3678, %v3883
        %v3885 = vmul.f32 %v3679, %v3883
        %v3886 = vrcp.pop %v3863
        %v3887 = vmul.f32 %v3863, %v3886
        %v3888 = vsub.f32 1.0, %v3887
        %v3889 = vmul.f32 %v3886, %v3888
        %v3890 = vadd.f32 %v3886, %v3889
        %vm3891 = vweird.f32 %v3863
        %vm3892 = vweird.f32 %v3886
        %vm3893 = vmor %vm3891, %vm3892
        %v3894 = vsel %vm3893, %v3886, %v3890
        %v3895 = vand.u32 2147483647, %v3863
        %vm3896 = vcmp.eq.f32.partialorder %v3895, 8.507059e+37
        %v3897 = vand.u32 %v3863, 2147483648
        %v3898 = vor.u32 1.1754944e-38, %v3897
        %v3899 = vsel %vm3896, %v3898, %v3894
        %v3900 = vmul.f32 %v3680, %v3899
        %v3901 = vmul.f32 %v3681, %v3899
        %v3902 = vrcp.pop %v3864
        %v3903 = vmul.f32 %v3864, %v3902
        %v3904 = vsub.f32 1.0, %v3903
        %v3905 = vmul.f32 %v3902, %v3904
        %v3906 = vadd.f32 %v3902, %v3905
        %vm3907 = vweird.f32 %v3864
        %vm3908 = vweird.f32 %v3902
        %vm3909 = vmor %vm3907, %vm3908
        %v3910 = vsel %vm3909, %v3902, %v3906
        %v3911 = vand.u32 2147483647, %v3864
        %vm3912 = vcmp.eq.f32.partialorder %v3911, 8.507059e+37
        %v3913 = vand.u32 %v3864, 2147483648
        %v3914 = vor.u32 1.1754944e-38, %v3913
        %v3915 = vsel %vm3912, %v3914, %v3910
        %v3916 = vmul.f32 %v3682, %v3915
        %v3917 = vmul.f32 %v3683, %v3915
        %v3918 = vrcp.pop %v3865
        %v3919 = vmul.f32 %v3865, %v3918
        %v3920 = vsub.f32 1.0, %v3919
        %v3921 = vmul.f32 %v3918, %v3920
        %v3922 = vadd.f32 %v3918, %v3921
        %vm3923 = vweird.f32 %v3865
        %vm3924 = vweird.f32 %v3918
        %vm3925 = vmor %vm3923, %vm3924
        %v3926 = vsel %vm3925, %v3918, %v3922
        %v3927 = vand.u32 2147483647, %v3865
        %vm3928 = vcmp.eq.f32.partialorder %v3927, 8.507059e+37
        %v3929 = vand.u32 %v3865, 2147483648
        %v3930 = vor.u32 1.1754944e-38, %v3929
        %v3931 = vsel %vm3928, %v3930, %v3926
        %v3932 = vmul.f32 %v3684, %v3931
        %v3933 = vmul.f32 %v3685, %v3931
        %v3934 = vrcp.pop %v3866
        %v3935 = vmul.f32 %v3866, %v3934
        %v3936 = vsub.f32 1.0, %v3935
        %v3937 = vmul.f32 %v3934, %v3936
        %v3938 = vadd.f32 %v3934, %v3937
        %vm3939 = vweird.f32 %v3866
        %vm3940 = vweird.f32 %v3934
        %vm3941 = vmor %vm3939, %vm3940
        %v3942 = vsel %vm3941, %v3934, %v3938
        %v3943 = vand.u32 2147483647, %v3866
        %vm3944 = vcmp.eq.f32.partialorder %v3943, 8.507059e+37
        %v3945 = vand.u32 %v3866, 2147483648
        %v3946 = vor.u32 1.1754944e-38, %v3945
        %v3947 = vsel %vm3944, %v3946, %v3942
        %v3948 = vmul.f32 %v3686, %v3947
        %v3949 = vmul.f32 %v3687, %v3947
        %v3950 = vrcp.pop %v3867
        %v3951 = vmul.f32 %v3867, %v3950
        %v3952 = vsub.f32 1.0, %v3951
        %v3953 = vmul.f32 %v3950, %v3952
        %v3954 = vadd.f32 %v3950, %v3953
        %vm3955 = vweird.f32 %v3867
        %vm3956 = vweird.f32 %v3950
        %vm3957 = vmor %vm3955, %vm3956
        %v3958 = vsel %vm3957, %v3950, %v3954
        %v3959 = vand.u32 2147483647, %v3867
        %vm3960 = vcmp.eq.f32.partialorder %v3959, 8.507059e+37
        %v3961 = vand.u32 %v3867, 2147483648
        %v3962 = vor.u32 1.1754944e-38, %v3961
        %v3963 = vsel %vm3960, %v3962, %v3958
        %v3964 = vmul.f32 %v3688, %v3963
        %v3965 = vmul.f32 %v3689, %v3963
        %v3966 = vrcp.pop %v3868
        %v3967 = vmul.f32 %v3868, %v3966
        %v3968 = vsub.f32 1.0, %v3967
        %v3969 = vmul.f32 %v3966, %v3968
        %v3970 = vadd.f32 %v3966, %v3969
        %vm3971 = vweird.f32 %v3868
        %vm3972 = vweird.f32 %v3966
        %vm3973 = vmor %vm3971, %vm3972
        %v3974 = vsel %vm3973, %v3966, %v3970
        %v3975 = vand.u32 2147483647, %v3868
        %vm3976 = vcmp.eq.f32.partialorder %v3975, 8.507059e+37
        %v3977 = vand.u32 %v3868, 2147483648
        %v3978 = vor.u32 1.1754944e-38, %v3977
        %v3979 = vsel %vm3976, %v3978, %v3974
        %v3980 = vmul.f32 %v3690, %v3979
        %v3981 = vmul.f32 %v3691, %v3979
        %v3982 = vrcp.pop %v3869
        %v3983 = vmul.f32 %v3869, %v3982
        %v3984 = vsub.f32 1.0, %v3983
        %v3985 = vmul.f32 %v3982, %v3984
        %v3986 = vadd.f32 %v3982, %v3985
        %vm3987 = vweird.f32 %v3869
        %vm3988 = vweird.f32 %v3982
        %vm3989 = vmor %vm3987, %vm3988
        %v3990 = vsel %vm3989, %v3982, %v3986
        %v3991 = vand.u32 2147483647, %v3869
        %vm3992 = vcmp.eq.f32.partialorder %v3991, 8.507059e+37
        %v3993 = vand.u32 %v3869, 2147483648
        %v3994 = vor.u32 1.1754944e-38, %v3993
        %v3995 = vsel %vm3992, %v3994, %v3990
        %v3996 = vmul.f32 %v3692, %v3995
        %v3997 = vmul.f32 %v3693, %v3995
        %v3998 = vpack.c.bf16 %v3885, %v3884
        %v3999 = vpack.c.bf16 %v3901, %v3900
        %v4000 = vpack.c.bf16 %v3917, %v3916
        %v4001 = vpack.c.bf16 %v3933, %v3932
        %v4002 = vpack.c.bf16 %v3949, %v3948
        %v4003 = vpack.c.bf16 %v3965, %v3964
        %v4004 = vpack.c.bf16 %v3981, %v3980
        %v4005 = vpack.c.bf16 %v3997, %v3996
        %v4006 = vld [vmem:[#allocation10] sm:$0xff]
        %v4007 = vld [vmem:[#allocation10 + $0x8] sm:$0xff]
        %v4008 = vld [vmem:[#allocation10 + $0x10] sm:$0xff]
        %v4009 = vld [vmem:[#allocation10 + $0x18] sm:$0xff]
        %v4010 = vld [vmem:[#allocation10 + $0x20] sm:$0xff]
        %v4011 = vld [vmem:[#allocation10 + $0x28] sm:$0xff]
        %v4012 = vld [vmem:[#allocation10 + $0x30] sm:$0xff]
        %v4013 = vld [vmem:[#allocation10 + $0x38] sm:$0xff]
        %v4014 = vld [vmem:[#allocation10 + $0x40] sm:$0xff]
        %v4015 = vld [vmem:[#allocation10 + $0x48] sm:$0xff]
        %v4016 = vld [vmem:[#allocation10 + $0x50] sm:$0xff]
        %v4017 = vld [vmem:[#allocation10 + $0x58] sm:$0xff]
        %v4018 = vld [vmem:[#allocation10 + $0x60] sm:$0xff]
        %v4019 = vld [vmem:[#allocation10 + $0x68] sm:$0xff]
        %v4020 = vld [vmem:[#allocation10 + $0x70] sm:$0xff]
        %v4021 = vld [vmem:[#allocation10 + $0x78] sm:$0xff]
        %v4022 = vld [vmem:[#allocation10 + $0x80] sm:$0xff]
        %v4023 = vld [vmem:[#allocation10 + $0x88] sm:$0xff]
        %v4024 = vld [vmem:[#allocation10 + $0x90] sm:$0xff]
        %v4025 = vld [vmem:[#allocation10 + $0x98] sm:$0xff]
        %v4026 = vld [vmem:[#allocation10 + $0xa0] sm:$0xff]
        %v4027 = vld [vmem:[#allocation10 + $0xa8] sm:$0xff]
        %v4028 = vld [vmem:[#allocation10 + $0xb0] sm:$0xff]
        %v4029 = vld [vmem:[#allocation10 + $0xb8] sm:$0xff]
        %v4030 = vld [vmem:[#allocation10 + $0xc0] sm:$0xff]
        %v4031 = vld [vmem:[#allocation10 + $0xc8] sm:$0xff]
        %v4032 = vld [vmem:[#allocation10 + $0xd0] sm:$0xff]
        %v4033 = vld [vmem:[#allocation10 + $0xd8] sm:$0xff]
        %v4034 = vld [vmem:[#allocation10 + $0xe0] sm:$0xff]
        %v4035 = vld [vmem:[#allocation10 + $0xe8] sm:$0xff]
        %v4036 = vld [vmem:[#allocation10 + $0xf0] sm:$0xff]
        %v4037 = vld [vmem:[#allocation10 + $0xf8] sm:$0xff]
        %v4038 = vld [vmem:[%s5] sm:$0xf]
        %v4040 = vperm.slane %v4038, 0
        %v4041 = vperm.slane %v4038, 1
        %v4042 = vperm.slane %v4038, 2
        %v4043 = vperm.slane %v4038, 3
        %v4080 = vunpack.c.l.b16 %v4006
        %v4081 = vunpack.c.h.b16 %v4006
        %v4082 = vunpack.c.l.b16 %v4007
        %v4083 = vunpack.c.h.b16 %v4007
        %v4084 = vunpack.c.l.b16 %v4008
        %v4085 = vunpack.c.h.b16 %v4008
        %v4086 = vunpack.c.l.b16 %v4009
        %v4087 = vunpack.c.h.b16 %v4009
        %v4088 = vunpack.c.l.b16 %v4010
        %v4089 = vunpack.c.h.b16 %v4010
        %v4090 = vunpack.c.l.b16 %v4011
        %v4091 = vunpack.c.h.b16 %v4011
        %v4092 = vunpack.c.l.b16 %v4012
        %v4093 = vunpack.c.h.b16 %v4012
        %v4094 = vunpack.c.l.b16 %v4013
        %v4095 = vunpack.c.h.b16 %v4013
        %v4096 = vunpack.c.l.b16 %v4014
        %v4097 = vunpack.c.h.b16 %v4014
        %v4098 = vunpack.c.l.b16 %v4015
        %v4099 = vunpack.c.h.b16 %v4015
        %v4100 = vunpack.c.l.b16 %v4016
        %v4101 = vunpack.c.h.b16 %v4016
        %v4102 = vunpack.c.l.b16 %v4017
        %v4103 = vunpack.c.h.b16 %v4017
        %v4104 = vunpack.c.l.b16 %v4018
        %v4105 = vunpack.c.h.b16 %v4018
        %v4106 = vunpack.c.l.b16 %v4019
        %v4107 = vunpack.c.h.b16 %v4019
        %v4108 = vunpack.c.l.b16 %v4020
        %v4109 = vunpack.c.h.b16 %v4020
        %v4110 = vunpack.c.l.b16 %v4021
        %v4111 = vunpack.c.h.b16 %v4021
        %v4112 = vunpack.c.l.b16 %v4022
        %v4113 = vunpack.c.h.b16 %v4022
        %v4114 = vunpack.c.l.b16 %v4023
        %v4115 = vunpack.c.h.b16 %v4023
        %v4116 = vunpack.c.l.b16 %v4024
        %v4117 = vunpack.c.h.b16 %v4024
        %v4118 = vunpack.c.l.b16 %v4025
        %v4119 = vunpack.c.h.b16 %v4025
        %v4120 = vunpack.c.l.b16 %v4026
        %v4121 = vunpack.c.h.b16 %v4026
        %v4122 = vunpack.c.l.b16 %v4027
        %v4123 = vunpack.c.h.b16 %v4027
        %v4124 = vunpack.c.l.b16 %v4028
        %v4125 = vunpack.c.h.b16 %v4028
        %v4126 = vunpack.c.l.b16 %v4029
        %v4127 = vunpack.c.h.b16 %v4029
        %v4128 = vunpack.c.l.b16 %v4030
        %v4129 = vunpack.c.h.b16 %v4030
        %v4130 = vunpack.c.l.b16 %v4031
        %v4131 = vunpack.c.h.b16 %v4031
        %v4132 = vunpack.c.l.b16 %v4032
        %v4133 = vunpack.c.h.b16 %v4032
        %v4134 = vunpack.c.l.b16 %v4033
        %v4135 = vunpack.c.h.b16 %v4033
        %v4136 = vunpack.c.l.b16 %v4034
        %v4137 = vunpack.c.h.b16 %v4034
        %v4138 = vunpack.c.l.b16 %v4035
        %v4139 = vunpack.c.h.b16 %v4035
        %v4140 = vunpack.c.l.b16 %v4036
        %v4141 = vunpack.c.h.b16 %v4036
        %v4142 = vunpack.c.l.b16 %v4037
        %v4143 = vunpack.c.h.b16 %v4037
        %v4144 = vpack.c.b16 %v4084, %v4080
        %v4145 = vpack.c.b16 %v4085, %v4081
        %v4146 = vpack.c.b16 %v4086, %v4082
        %v4147 = vpack.c.b16 %v4087, %v4083
        %v4148 = vpack.c.b16 %v4092, %v4088
        %v4149 = vpack.c.b16 %v4093, %v4089
        %v4150 = vpack.c.b16 %v4094, %v4090
        %v4151 = vpack.c.b16 %v4095, %v4091
        %v4152 = vpack.c.b16 %v4100, %v4096
        %v4153 = vpack.c.b16 %v4101, %v4097
        %v4154 = vpack.c.b16 %v4102, %v4098
        %v4155 = vpack.c.b16 %v4103, %v4099
        %v4156 = vpack.c.b16 %v4108, %v4104
        %v4157 = vpack.c.b16 %v4109, %v4105
        %v4158 = vpack.c.b16 %v4110, %v4106
        %v4159 = vpack.c.b16 %v4111, %v4107
        %v4160 = vpack.c.b16 %v4116, %v4112
        %v4161 = vpack.c.b16 %v4117, %v4113
        %v4162 = vpack.c.b16 %v4118, %v4114
        %v4163 = vpack.c.b16 %v4119, %v4115
        %v4164 = vpack.c.b16 %v4124, %v4120
        %v4165 = vpack.c.b16 %v4125, %v4121
        %v4166 = vpack.c.b16 %v4126, %v4122
        %v4167 = vpack.c.b16 %v4127, %v4123
        %v4168 = vpack.c.b16 %v4132, %v4128
        %v4169 = vpack.c.b16 %v4133, %v4129
        %v4170 = vpack.c.b16 %v4134, %v4130
        %v4171 = vpack.c.b16 %v4135, %v4131
        %v4172 = vpack.c.b16 %v4140, %v4136
        %v4173 = vpack.c.b16 %v4141, %v4137
        %v4174 = vpack.c.b16 %v4142, %v4138
        %v4175 = vpack.c.b16 %v4143, %v4139
        %4208 = vmatpush.bf16.msra.mxu0 %v4172
        %4209 = vmatpush.bf16.msra.mxu0 %v4168
        %4210 = vmatpush.bf16.msra.mxu0 %v4164
        %4211 = vmatpush.bf16.msra.mxu0 %v4160
        %4212 = vmatpush.bf16.msra.mxu0 %v4156
        %4213 = vmatpush.bf16.msra.mxu0 %v4152
        %4214 = vmatpush.bf16.msra.mxu0 %v4148
        %4215 = vmatpush.bf16.msra.mxu0 %v4144
        %4216 = vmatmul.bf16.gmra.mxu0 %v3998
        %v4217 = vpop.f32.mrf.mxu0
        %v4218 = vadd.f32 %v4040, %v4217
        %v4219 = vpop.f32.mrf.mxu0
        %v4220 = vadd.f32 %v4040, %v4219
        %4221 = vmatmul.bf16.gmra.mxu0 %v3999
        %v4222 = vpop.f32.mrf.mxu0
        %v4223 = vadd.f32 %v4040, %v4222
        %v4224 = vpop.f32.mrf.mxu0
        %v4225 = vadd.f32 %v4040, %v4224
        %4226 = vmatmul.bf16.gmra.mxu0 %v4000
        %v4227 = vpop.f32.mrf.mxu0
        %v4228 = vadd.f32 %v4040, %v4227
        %v4229 = vpop.f32.mrf.mxu0
        %v4230 = vadd.f32 %v4040, %v4229
        %4231 = vmatmul.bf16.gmra.mxu0 %v4001
        %v4232 = vpop.f32.mrf.mxu0
        %v4233 = vadd.f32 %v4040, %v4232
        %v4234 = vpop.f32.mrf.mxu0
        %v4235 = vadd.f32 %v4040, %v4234
        %4236 = vmatmul.bf16.gmra.mxu0 %v4002
        %v4237 = vpop.f32.mrf.mxu0
        %v4238 = vadd.f32 %v4040, %v4237
        %v4239 = vpop.f32.mrf.mxu0
        %v4240 = vadd.f32 %v4040, %v4239
        %4241 = vmatmul.bf16.gmra.mxu0 %v4003
        %v4242 = vpop.f32.mrf.mxu0
        %v4243 = vadd.f32 %v4040, %v4242
        %v4244 = vpop.f32.mrf.mxu0
        %v4245 = vadd.f32 %v4040, %v4244
        %4246 = vmatmul.bf16.gmra.mxu0 %v4004
        %v4247 = vpop.f32.mrf.mxu0
        %v4248 = vadd.f32 %v4040, %v4247
        %v4249 = vpop.f32.mrf.mxu0
        %v4250 = vadd.f32 %v4040, %v4249
        %4251 = vmatmul.bf16.gmra.mxu0 %v4005
        %v4252 = vpop.f32.mrf.mxu0
        %v4253 = vadd.f32 %v4040, %v4252
        %v4254 = vpop.f32.mrf.mxu0
        %v4255 = vadd.f32 %v4040, %v4254
        %4256 = vdwg.mxu0
        %4257 = vmatpush.bf16.msra.mxu0 %v4173
        %4258 = vmatpush.bf16.msra.mxu0 %v4169
        %4259 = vmatpush.bf16.msra.mxu0 %v4165
        %4260 = vmatpush.bf16.msra.mxu0 %v4161
        %4261 = vmatpush.bf16.msra.mxu0 %v4157
        %4262 = vmatpush.bf16.msra.mxu0 %v4153
        %4263 = vmatpush.bf16.msra.mxu0 %v4149
        %4264 = vmatpush.bf16.msra.mxu0 %v4145
        %4265 = vmatmul.bf16.gmra.mxu0 %v3998
        %v4266 = vpop.f32.mrf.mxu0
        %v4267 = vadd.f32 %v4041, %v4266
        %v4268 = vpop.f32.mrf.mxu0
        %v4269 = vadd.f32 %v4041, %v4268
        %4270 = vmatmul.bf16.gmra.mxu0 %v3999
        %v4271 = vpop.f32.mrf.mxu0
        %v4272 = vadd.f32 %v4041, %v4271
        %v4273 = vpop.f32.mrf.mxu0
        %v4274 = vadd.f32 %v4041, %v4273
        %4275 = vmatmul.bf16.gmra.mxu0 %v4000
        %v4276 = vpop.f32.mrf.mxu0
        %v4277 = vadd.f32 %v4041, %v4276
        %v4278 = vpop.f32.mrf.mxu0
        %v4279 = vadd.f32 %v4041, %v4278
        %4280 = vmatmul.bf16.gmra.mxu0 %v4001
        %v4281 = vpop.f32.mrf.mxu0
        %v4282 = vadd.f32 %v4041, %v4281
        %v4283 = vpop.f32.mrf.mxu0
        %v4284 = vadd.f32 %v4041, %v4283
        %4285 = vmatmul.bf16.gmra.mxu0 %v4002
        %v4286 = vpop.f32.mrf.mxu0
        %v4287 = vadd.f32 %v4041, %v4286
        %v4288 = vpop.f32.mrf.mxu0
        %v4289 = vadd.f32 %v4041, %v4288
        %4290 = vmatmul.bf16.gmra.mxu0 %v4003
        %v4291 = vpop.f32.mrf.mxu0
        %v4292 = vadd.f32 %v4041, %v4291
        %v4293 = vpop.f32.mrf.mxu0
        %v4294 = vadd.f32 %v4041, %v4293
        %4295 = vmatmul.bf16.gmra.mxu0 %v4004
        %v4296 = vpop.f32.mrf.mxu0
        %v4297 = vadd.f32 %v4041, %v4296
        %v4298 = vpop.f32.mrf.mxu0
        %v4299 = vadd.f32 %v4041, %v4298
        %4300 = vmatmul.bf16.gmra.mxu0 %v4005
        %v4301 = vpop.f32.mrf.mxu0
        %v4302 = vadd.f32 %v4041, %v4301
        %v4303 = vpop.f32.mrf.mxu0
        %v4304 = vadd.f32 %v4041, %v4303
        %4305 = vdwg.mxu0
        %4306 = vmatpush.bf16.msra.mxu0 %v4174
        %4307 = vmatpush.bf16.msra.mxu0 %v4170
        %4308 = vmatpush.bf16.msra.mxu0 %v4166
        %4309 = vmatpush.bf16.msra.mxu0 %v4162
        %4310 = vmatpush.bf16.msra.mxu0 %v4158
        %4311 = vmatpush.bf16.msra.mxu0 %v4154
        %4312 = vmatpush.bf16.msra.mxu0 %v4150
        %4313 = vmatpush.bf16.msra.mxu0 %v4146
        %4314 = vmatmul.bf16.gmra.mxu0 %v3998
        %v4315 = vpop.f32.mrf.mxu0
        %v4316 = vadd.f32 %v4042, %v4315
        %v4317 = vpop.f32.mrf.mxu0
        %v4318 = vadd.f32 %v4042, %v4317
        %4319 = vmatmul.bf16.gmra.mxu0 %v3999
        %v4320 = vpop.f32.mrf.mxu0
        %v4321 = vadd.f32 %v4042, %v4320
        %v4322 = vpop.f32.mrf.mxu0
        %v4323 = vadd.f32 %v4042, %v4322
        %4324 = vmatmul.bf16.gmra.mxu0 %v4000
        %v4325 = vpop.f32.mrf.mxu0
        %v4326 = vadd.f32 %v4042, %v4325
        %v4327 = vpop.f32.mrf.mxu0
        %v4328 = vadd.f32 %v4042, %v4327
        %4329 = vmatmul.bf16.gmra.mxu0 %v4001
        %v4330 = vpop.f32.mrf.mxu0
        %v4331 = vadd.f32 %v4042, %v4330
        %v4332 = vpop.f32.mrf.mxu0
        %v4333 = vadd.f32 %v4042, %v4332
        %4334 = vmatmul.bf16.gmra.mxu0 %v4002
        %v4335 = vpop.f32.mrf.mxu0
        %v4336 = vadd.f32 %v4042, %v4335
        %v4337 = vpop.f32.mrf.mxu0
        %v4338 = vadd.f32 %v4042, %v4337
        %4339 = vmatmul.bf16.gmra.mxu0 %v4003
        %v4340 = vpop.f32.mrf.mxu0
        %v4341 = vadd.f32 %v4042, %v4340
        %v4342 = vpop.f32.mrf.mxu0
        %v4343 = vadd.f32 %v4042, %v4342
        %4344 = vmatmul.bf16.gmra.mxu0 %v4004
        %v4345 = vpop.f32.mrf.mxu0
        %v4346 = vadd.f32 %v4042, %v4345
        %v4347 = vpop.f32.mrf.mxu0
        %v4348 = vadd.f32 %v4042, %v4347
        %4349 = vmatmul.bf16.gmra.mxu0 %v4005
        %v4350 = vpop.f32.mrf.mxu0
        %v4351 = vadd.f32 %v4042, %v4350
        %v4352 = vpop.f32.mrf.mxu0
        %v4353 = vadd.f32 %v4042, %v4352
        %4354 = vdwg.mxu0
        %4355 = vmatpush.bf16.msra.mxu0 %v4175
        %4356 = vmatpush.bf16.msra.mxu0 %v4171
        %4357 = vmatpush.bf16.msra.mxu0 %v4167
        %4358 = vmatpush.bf16.msra.mxu0 %v4163
        %4359 = vmatpush.bf16.msra.mxu0 %v4159
        %4360 = vmatpush.bf16.msra.mxu0 %v4155
        %4361 = vmatpush.bf16.msra.mxu0 %v4151
        %4362 = vmatpush.bf16.msra.mxu0 %v4147
        %4363 = vmatmul.bf16.gmra.mxu0 %v3998
        %v4364 = vpop.f32.mrf.mxu0
        %v4365 = vadd.f32 %v4043, %v4364
        %v4366 = vpop.f32.mrf.mxu0
        %v4367 = vadd.f32 %v4043, %v4366
        %4368 = vmatmul.bf16.gmra.mxu0 %v3999
        %v4369 = vpop.f32.mrf.mxu0
        %v4370 = vadd.f32 %v4043, %v4369
        %v4371 = vpop.f32.mrf.mxu0
        %v4372 = vadd.f32 %v4043, %v4371
        %4373 = vmatmul.bf16.gmra.mxu0 %v4000
        %v4374 = vpop.f32.mrf.mxu0
        %v4375 = vadd.f32 %v4043, %v4374
        %v4376 = vpop.f32.mrf.mxu0
        %v4377 = vadd.f32 %v4043, %v4376
        %4378 = vmatmul.bf16.gmra.mxu0 %v4001
        %v4379 = vpop.f32.mrf.mxu0
        %v4380 = vadd.f32 %v4043, %v4379
        %v4381 = vpop.f32.mrf.mxu0
        %v4382 = vadd.f32 %v4043, %v4381
        %4383 = vmatmul.bf16.gmra.mxu0 %v4002
        %v4384 = vpop.f32.mrf.mxu0
        %v4385 = vadd.f32 %v4043, %v4384
        %v4386 = vpop.f32.mrf.mxu0
        %v4387 = vadd.f32 %v4043, %v4386
        %4388 = vmatmul.bf16.gmra.mxu0 %v4003
        %v4389 = vpop.f32.mrf.mxu0
        %v4390 = vadd.f32 %v4043, %v4389
        %v4391 = vpop.f32.mrf.mxu0
        %v4392 = vadd.f32 %v4043, %v4391
        %4393 = vmatmul.bf16.gmra.mxu0 %v4004
        %v4394 = vpop.f32.mrf.mxu0
        %v4395 = vadd.f32 %v4043, %v4394
        %v4396 = vpop.f32.mrf.mxu0
        %v4397 = vadd.f32 %v4043, %v4396
        %4398 = vmatmul.bf16.gmra.mxu0 %v4005
        %v4399 = vpop.f32.mrf.mxu0
        %v4400 = vadd.f32 %v4043, %v4399
        %v4401 = vpop.f32.mrf.mxu0
        %v4402 = vadd.f32 %v4043, %v4401
        %4403 = vdwg.mxu0
        %v4404 = vpack.c.bf16 %v4220, %v4218
        %v4405 = vpack.c.bf16 %v4269, %v4267
        %v4406 = vpack.c.bf16 %v4318, %v4316
        %v4407 = vpack.c.bf16 %v4367, %v4365
        %v4408 = vpack.c.bf16 %v4225, %v4223
        %v4409 = vpack.c.bf16 %v4274, %v4272
        %v4410 = vpack.c.bf16 %v4323, %v4321
        %v4411 = vpack.c.bf16 %v4372, %v4370
        %v4412 = vpack.c.bf16 %v4230, %v4228
        %v4413 = vpack.c.bf16 %v4279, %v4277
        %v4414 = vpack.c.bf16 %v4328, %v4326
        %v4415 = vpack.c.bf16 %v4377, %v4375
        %v4416 = vpack.c.bf16 %v4235, %v4233
        %v4417 = vpack.c.bf16 %v4284, %v4282
        %v4418 = vpack.c.bf16 %v4333, %v4331
        %v4419 = vpack.c.bf16 %v4382, %v4380
        %v4420 = vpack.c.bf16 %v4240, %v4238
        %v4421 = vpack.c.bf16 %v4289, %v4287
        %v4422 = vpack.c.bf16 %v4338, %v4336
        %v4423 = vpack.c.bf16 %v4387, %v4385
        %v4424 = vpack.c.bf16 %v4245, %v4243
        %v4425 = vpack.c.bf16 %v4294, %v4292
        %v4426 = vpack.c.bf16 %v4343, %v4341
        %v4427 = vpack.c.bf16 %v4392, %v4390
        %v4428 = vpack.c.bf16 %v4250, %v4248
        %v4429 = vpack.c.bf16 %v4299, %v4297
        %v4430 = vpack.c.bf16 %v4348, %v4346
        %v4431 = vpack.c.bf16 %v4397, %v4395
        %v4432 = vpack.c.bf16 %v4255, %v4253
        %v4433 = vpack.c.bf16 %v4304, %v4302
        %v4434 = vpack.c.bf16 %v4353, %v4351
        %v4435 = vpack.c.bf16 %v4402, %v4400
        %v4436 = vld [vmem:[#allocation11] sm:$0xf]
        %v4437 = vld [vmem:[#allocation11 + $0x4] sm:$0xf]
        %v4438 = vld [vmem:[#allocation11 + $0x8] sm:$0xf]
        %v4439 = vld [vmem:[#allocation11 + $0xc] sm:$0xf]
        %v4440 = vld [vmem:[#allocation11 + $0x10] sm:$0xf]
        %v4441 = vld [vmem:[#allocation11 + $0x14] sm:$0xf]
        %v4442 = vld [vmem:[#allocation11 + $0x18] sm:$0xf]
        %v4443 = vld [vmem:[#allocation11 + $0x1c] sm:$0xf]
        %v4444 = vld [vmem:[#allocation11 + $0x20] sm:$0xf]
        %v4445 = vld [vmem:[#allocation11 + $0x24] sm:$0xf]
        %v4446 = vld [vmem:[#allocation11 + $0x28] sm:$0xf]
        %v4447 = vld [vmem:[#allocation11 + $0x2c] sm:$0xf]
        %v4448 = vld [vmem:[#allocation11 + $0x30] sm:$0xf]
        %v4449 = vld [vmem:[#allocation11 + $0x34] sm:$0xf]
        %v4450 = vld [vmem:[#allocation11 + $0x38] sm:$0xf]
        %v4451 = vld [vmem:[#allocation11 + $0x3c] sm:$0xf]
        %v4452 = vld [vmem:[#allocation11 + $0x40] sm:$0xf]
        %v4453 = vld [vmem:[#allocation11 + $0x44] sm:$0xf]
        %v4454 = vld [vmem:[#allocation11 + $0x48] sm:$0xf]
        %v4455 = vld [vmem:[#allocation11 + $0x4c] sm:$0xf]
        %v4456 = vld [vmem:[#allocation11 + $0x50] sm:$0xf]
        %v4457 = vld [vmem:[#allocation11 + $0x54] sm:$0xf]
        %v4458 = vld [vmem:[#allocation11 + $0x58] sm:$0xf]
        %v4459 = vld [vmem:[#allocation11 + $0x5c] sm:$0xf]
        %v4460 = vld [vmem:[#allocation11 + $0x60] sm:$0xf]
        %v4461 = vld [vmem:[#allocation11 + $0x64] sm:$0xf]
        %v4462 = vld [vmem:[#allocation11 + $0x68] sm:$0xf]
        %v4463 = vld [vmem:[#allocation11 + $0x6c] sm:$0xf]
        %v4464 = vld [vmem:[#allocation11 + $0x70] sm:$0xf]
        %v4465 = vld [vmem:[#allocation11 + $0x74] sm:$0xf]
        %v4466 = vld [vmem:[#allocation11 + $0x78] sm:$0xf]
        %v4467 = vld [vmem:[#allocation11 + $0x7c] sm:$0xf]
        %v4468 = vld [vmem:[#allocation11 + $0x80] sm:$0xf]
        %v4469 = vld [vmem:[#allocation11 + $0x84] sm:$0xf]
        %v4470 = vld [vmem:[#allocation11 + $0x88] sm:$0xf]
        %v4471 = vld [vmem:[#allocation11 + $0x8c] sm:$0xf]
        %v4472 = vld [vmem:[#allocation11 + $0x90] sm:$0xf]
        %v4473 = vld [vmem:[#allocation11 + $0x94] sm:$0xf]
        %v4474 = vld [vmem:[#allocation11 + $0x98] sm:$0xf]
        %v4475 = vld [vmem:[#allocation11 + $0x9c] sm:$0xf]
        %v4476 = vld [vmem:[#allocation11 + $0xa0] sm:$0xf]
        %v4477 = vld [vmem:[#allocation11 + $0xa4] sm:$0xf]
        %v4478 = vld [vmem:[#allocation11 + $0xa8] sm:$0xf]
        %v4479 = vld [vmem:[#allocation11 + $0xac] sm:$0xf]
        %v4480 = vld [vmem:[#allocation11 + $0xb0] sm:$0xf]
        %v4481 = vld [vmem:[#allocation11 + $0xb4] sm:$0xf]
        %v4482 = vld [vmem:[#allocation11 + $0xb8] sm:$0xf]
        %v4483 = vld [vmem:[#allocation11 + $0xbc] sm:$0xf]
        %v4484 = vld [vmem:[#allocation11 + $0xc0] sm:$0xf]
        %v4485 = vld [vmem:[#allocation11 + $0xc4] sm:$0xf]
        %v4486 = vld [vmem:[#allocation11 + $0xc8] sm:$0xf]
        %v4487 = vld [vmem:[#allocation11 + $0xcc] sm:$0xf]
        %v4488 = vld [vmem:[#allocation11 + $0xd0] sm:$0xf]
        %v4489 = vld [vmem:[#allocation11 + $0xd4] sm:$0xf]
        %v4490 = vld [vmem:[#allocation11 + $0xd8] sm:$0xf]
        %v4491 = vld [vmem:[#allocation11 + $0xdc] sm:$0xf]
        %v4492 = vld [vmem:[#allocation11 + $0xe0] sm:$0xf]
        %v4493 = vld [vmem:[#allocation11 + $0xe4] sm:$0xf]
        %v4494 = vld [vmem:[#allocation11 + $0xe8] sm:$0xf]
        %v4495 = vld [vmem:[#allocation11 + $0xec] sm:$0xf]
        %v4496 = vld [vmem:[#allocation11 + $0xf0] sm:$0xf]
        %v4497 = vld [vmem:[#allocation11 + $0xf4] sm:$0xf]
        %v4498 = vld [vmem:[#allocation11 + $0xf8] sm:$0xf]
        %v4499 = vld [vmem:[#allocation11 + $0xfc] sm:$0xf]
        %v4500 = vld [vmem:[%s7] sm:$0x1]
        %v4502 = vperm.slane %v4500, 0
        %v4568 = vunpack.c.l.b16 %v4436
        %v4569 = vunpack.c.l.b16 %v4437
        %v4570 = vunpack.c.l.b16 %v4438
        %v4571 = vunpack.c.l.b16 %v4439
        %v4572 = vunpack.c.l.b16 %v4440
        %v4573 = vunpack.c.l.b16 %v4441
        %v4574 = vunpack.c.l.b16 %v4442
        %v4575 = vunpack.c.l.b16 %v4443
        %v4576 = vunpack.c.l.b16 %v4444
        %v4577 = vunpack.c.l.b16 %v4445
        %v4578 = vunpack.c.l.b16 %v4446
        %v4579 = vunpack.c.l.b16 %v4447
        %v4580 = vunpack.c.l.b16 %v4448
        %v4581 = vunpack.c.l.b16 %v4449
        %v4582 = vunpack.c.l.b16 %v4450
        %v4583 = vunpack.c.l.b16 %v4451
        %v4584 = vunpack.c.l.b16 %v4452
        %v4585 = vunpack.c.l.b16 %v4453
        %v4586 = vunpack.c.l.b16 %v4454
        %v4587 = vunpack.c.l.b16 %v4455
        %v4588 = vunpack.c.l.b16 %v4456
        %v4589 = vunpack.c.l.b16 %v4457
        %v4590 = vunpack.c.l.b16 %v4458
        %v4591 = vunpack.c.l.b16 %v4459
        %v4592 = vunpack.c.l.b16 %v4460
        %v4593 = vunpack.c.l.b16 %v4461
        %v4594 = vunpack.c.l.b16 %v4462
        %v4595 = vunpack.c.l.b16 %v4463
        %v4596 = vunpack.c.l.b16 %v4464
        %v4597 = vunpack.c.l.b16 %v4465
        %v4598 = vunpack.c.l.b16 %v4466
        %v4599 = vunpack.c.l.b16 %v4467
        %v4600 = vunpack.c.l.b16 %v4468
        %v4601 = vunpack.c.l.b16 %v4469
        %v4602 = vunpack.c.l.b16 %v4470
        %v4603 = vunpack.c.l.b16 %v4471
        %v4604 = vunpack.c.l.b16 %v4472
        %v4605 = vunpack.c.l.b16 %v4473
        %v4606 = vunpack.c.l.b16 %v4474
        %v4607 = vunpack.c.l.b16 %v4475
        %v4608 = vunpack.c.l.b16 %v4476
        %v4609 = vunpack.c.l.b16 %v4477
        %v4610 = vunpack.c.l.b16 %v4478
        %v4611 = vunpack.c.l.b16 %v4479
        %v4612 = vunpack.c.l.b16 %v4480
        %v4613 = vunpack.c.l.b16 %v4481
        %v4614 = vunpack.c.l.b16 %v4482
        %v4615 = vunpack.c.l.b16 %v4483
        %v4616 = vunpack.c.l.b16 %v4484
        %v4617 = vunpack.c.l.b16 %v4485
        %v4618 = vunpack.c.l.b16 %v4486
        %v4619 = vunpack.c.l.b16 %v4487
        %v4620 = vunpack.c.l.b16 %v4488
        %v4621 = vunpack.c.l.b16 %v4489
        %v4622 = vunpack.c.l.b16 %v4490
        %v4623 = vunpack.c.l.b16 %v4491
        %v4624 = vunpack.c.l.b16 %v4492
        %v4625 = vunpack.c.l.b16 %v4493
        %v4626 = vunpack.c.l.b16 %v4494
        %v4627 = vunpack.c.l.b16 %v4495
        %v4628 = vunpack.c.l.b16 %v4496
        %v4629 = vunpack.c.l.b16 %v4497
        %v4630 = vunpack.c.l.b16 %v4498
        %v4631 = vunpack.c.l.b16 %v4499
        %v4632 = vpack.c.b16 %v4569, %v4568
        %v4633 = vpack.c.b16 %v4571, %v4570
        %v4634 = vpack.c.b16 %v4573, %v4572
        %v4635 = vpack.c.b16 %v4575, %v4574
        %v4636 = vpack.c.b16 %v4577, %v4576
        %v4637 = vpack.c.b16 %v4579, %v4578
        %v4638 = vpack.c.b16 %v4581, %v4580
        %v4639 = vpack.c.b16 %v4583, %v4582
        %v4640 = vpack.c.b16 %v4585, %v4584
        %v4641 = vpack.c.b16 %v4587, %v4586
        %v4642 = vpack.c.b16 %v4589, %v4588
        %v4643 = vpack.c.b16 %v4591, %v4590
        %v4644 = vpack.c.b16 %v4593, %v4592
        %v4645 = vpack.c.b16 %v4595, %v4594
        %v4646 = vpack.c.b16 %v4597, %v4596
        %v4647 = vpack.c.b16 %v4599, %v4598
        %v4648 = vpack.c.b16 %v4601, %v4600
        %v4649 = vpack.c.b16 %v4603, %v4602
        %v4650 = vpack.c.b16 %v4605, %v4604
        %v4651 = vpack.c.b16 %v4607, %v4606
        %v4652 = vpack.c.b16 %v4609, %v4608
        %v4653 = vpack.c.b16 %v4611, %v4610
        %v4654 = vpack.c.b16 %v4613, %v4612
        %v4655 = vpack.c.b16 %v4615, %v4614
        %v4656 = vpack.c.b16 %v4617, %v4616
        %v4657 = vpack.c.b16 %v4619, %v4618
        %v4658 = vpack.c.b16 %v4621, %v4620
        %v4659 = vpack.c.b16 %v4623, %v4622
        %v4660 = vpack.c.b16 %v4625, %v4624
        %v4661 = vpack.c.b16 %v4627, %v4626
        %v4662 = vpack.c.b16 %v4629, %v4628
        %v4663 = vpack.c.b16 %v4631, %v4630
        %4696 = vmatpush.bf16.msra.mxu0 %v4639
        %4697 = vmatpush.bf16.msra.mxu0 %v4638
        %4698 = vmatpush.bf16.msra.mxu0 %v4637
        %4699 = vmatpush.bf16.msra.mxu0 %v4636
        %4700 = vmatpush.bf16.msra.mxu0 %v4635
        %4701 = vmatpush.bf16.msra.mxu0 %v4634
        %4702 = vmatpush.bf16.msra.mxu0 %v4633
        %4703 = vmatpush.bf16.msra.mxu0 %v4632
        %4704 = vmatmul.bf16.gmra.mxu0 %v4404
        %v4705 = vpop.f32.mrf.mxu0
        %v4706 = vadd.f32 %v4502, %v4705
        %v4707 = vpop.f32.mrf.mxu0
        %v4708 = vadd.f32 %v4502, %v4707
        %4709 = vmatmul.bf16.gmra.mxu0 %v4408
        %v4710 = vpop.f32.mrf.mxu0
        %v4711 = vadd.f32 %v4502, %v4710
        %v4712 = vpop.f32.mrf.mxu0
        %v4713 = vadd.f32 %v4502, %v4712
        %4714 = vmatmul.bf16.gmra.mxu0 %v4412
        %v4715 = vpop.f32.mrf.mxu0
        %v4716 = vadd.f32 %v4502, %v4715
        %v4717 = vpop.f32.mrf.mxu0
        %v4718 = vadd.f32 %v4502, %v4717
        %4719 = vmatmul.bf16.gmra.mxu0 %v4416
        %v4720 = vpop.f32.mrf.mxu0
        %v4721 = vadd.f32 %v4502, %v4720
        %v4722 = vpop.f32.mrf.mxu0
        %v4723 = vadd.f32 %v4502, %v4722
        %4724 = vmatmul.bf16.gmra.mxu0 %v4420
        %v4725 = vpop.f32.mrf.mxu0
        %v4726 = vadd.f32 %v4502, %v4725
        %v4727 = vpop.f32.mrf.mxu0
        %v4728 = vadd.f32 %v4502, %v4727
        %4729 = vmatmul.bf16.gmra.mxu0 %v4424
        %v4730 = vpop.f32.mrf.mxu0
        %v4731 = vadd.f32 %v4502, %v4730
        %v4732 = vpop.f32.mrf.mxu0
        %v4733 = vadd.f32 %v4502, %v4732
        %4734 = vmatmul.bf16.gmra.mxu0 %v4428
        %v4735 = vpop.f32.mrf.mxu0
        %v4736 = vadd.f32 %v4502, %v4735
        %v4737 = vpop.f32.mrf.mxu0
        %v4738 = vadd.f32 %v4502, %v4737
        %4739 = vmatmul.bf16.gmra.mxu0 %v4432
        %v4740 = vpop.f32.mrf.mxu0
        %v4741 = vadd.f32 %v4502, %v4740
        %v4742 = vpop.f32.mrf.mxu0
        %v4743 = vadd.f32 %v4502, %v4742
        %4744 = vdwg.mxu0
        %4745 = vmatpush.bf16.msra.mxu0 %v4647
        %4746 = vmatpush.bf16.msra.mxu0 %v4646
        %4747 = vmatpush.bf16.msra.mxu0 %v4645
        %4748 = vmatpush.bf16.msra.mxu0 %v4644
        %4749 = vmatpush.bf16.msra.mxu0 %v4643
        %4750 = vmatpush.bf16.msra.mxu0 %v4642
        %4751 = vmatpush.bf16.msra.mxu0 %v4641
        %4752 = vmatpush.bf16.msra.mxu0 %v4640
        %4753 = vmatmul.bf16.gmra.mxu0 %v4405
        %v4754 = vpop.f32.mrf.mxu0
        %v4755 = vadd.f32 %v4706, %v4754
        %v4756 = vpop.f32.mrf.mxu0
        %v4757 = vadd.f32 %v4708, %v4756
        %4758 = vmatmul.bf16.gmra.mxu0 %v4409
        %v4759 = vpop.f32.mrf.mxu0
        %v4760 = vadd.f32 %v4711, %v4759
        %v4761 = vpop.f32.mrf.mxu0
        %v4762 = vadd.f32 %v4713, %v4761
        %4763 = vmatmul.bf16.gmra.mxu0 %v4413
        %v4764 = vpop.f32.mrf.mxu0
        %v4765 = vadd.f32 %v4716, %v4764
        %v4766 = vpop.f32.mrf.mxu0
        %v4767 = vadd.f32 %v4718, %v4766
        %4768 = vmatmul.bf16.gmra.mxu0 %v4417
        %v4769 = vpop.f32.mrf.mxu0
        %v4770 = vadd.f32 %v4721, %v4769
        %v4771 = vpop.f32.mrf.mxu0
        %v4772 = vadd.f32 %v4723, %v4771
        %4773 = vmatmul.bf16.gmra.mxu0 %v4421
        %v4774 = vpop.f32.mrf.mxu0
        %v4775 = vadd.f32 %v4726, %v4774
        %v4776 = vpop.f32.mrf.mxu0
        %v4777 = vadd.f32 %v4728, %v4776
        %4778 = vmatmul.bf16.gmra.mxu0 %v4425
        %v4779 = vpop.f32.mrf.mxu0
        %v4780 = vadd.f32 %v4731, %v4779
        %v4781 = vpop.f32.mrf.mxu0
        %v4782 = vadd.f32 %v4733, %v4781
        %4783 = vmatmul.bf16.gmra.mxu0 %v4429
        %v4784 = vpop.f32.mrf.mxu0
        %v4785 = vadd.f32 %v4736, %v4784
        %v4786 = vpop.f32.mrf.mxu0
        %v4787 = vadd.f32 %v4738, %v4786
        %4788 = vmatmul.bf16.gmra.mxu0 %v4433
        %v4789 = vpop.f32.mrf.mxu0
        %v4790 = vadd.f32 %v4741, %v4789
        %v4791 = vpop.f32.mrf.mxu0
        %v4792 = vadd.f32 %v4743, %v4791
        %4793 = vdwg.mxu0
        %4794 = vmatpush.bf16.msra.mxu0 %v4655
        %4795 = vmatpush.bf16.msra.mxu0 %v4654
        %4796 = vmatpush.bf16.msra.mxu0 %v4653
        %4797 = vmatpush.bf16.msra.mxu0 %v4652
        %4798 = vmatpush.bf16.msra.mxu0 %v4651
        %4799 = vmatpush.bf16.msra.mxu0 %v4650
        %4800 = vmatpush.bf16.msra.mxu0 %v4649
        %4801 = vmatpush.bf16.msra.mxu0 %v4648
        %4802 = vmatmul.bf16.gmra.mxu0 %v4406
        %v4803 = vpop.f32.mrf.mxu0
        %v4804 = vadd.f32 %v4755, %v4803
        %v4805 = vpop.f32.mrf.mxu0
        %v4806 = vadd.f32 %v4757, %v4805
        %4807 = vmatmul.bf16.gmra.mxu0 %v4410
        %v4808 = vpop.f32.mrf.mxu0
        %v4809 = vadd.f32 %v4760, %v4808
        %v4810 = vpop.f32.mrf.mxu0
        %v4811 = vadd.f32 %v4762, %v4810
        %4812 = vmatmul.bf16.gmra.mxu0 %v4414
        %v4813 = vpop.f32.mrf.mxu0
        %v4814 = vadd.f32 %v4765, %v4813
        %v4815 = vpop.f32.mrf.mxu0
        %v4816 = vadd.f32 %v4767, %v4815
        %4817 = vmatmul.bf16.gmra.mxu0 %v4418
        %v4818 = vpop.f32.mrf.mxu0
        %v4819 = vadd.f32 %v4770, %v4818
        %v4820 = vpop.f32.mrf.mxu0
        %v4821 = vadd.f32 %v4772, %v4820
        %4822 = vmatmul.bf16.gmra.mxu0 %v4422
        %v4823 = vpop.f32.mrf.mxu0
        %v4824 = vadd.f32 %v4775, %v4823
        %v4825 = vpop.f32.mrf.mxu0
        %v4826 = vadd.f32 %v4777, %v4825
        %4827 = vmatmul.bf16.gmra.mxu0 %v4426
        %v4828 = vpop.f32.mrf.mxu0
        %v4829 = vadd.f32 %v4780, %v4828
        %v4830 = vpop.f32.mrf.mxu0
        %v4831 = vadd.f32 %v4782, %v4830
        %4832 = vmatmul.bf16.gmra.mxu0 %v4430
        %v4833 = vpop.f32.mrf.mxu0
        %v4834 = vadd.f32 %v4785, %v4833
        %v4835 = vpop.f32.mrf.mxu0
        %v4836 = vadd.f32 %v4787, %v4835
        %4837 = vmatmul.bf16.gmra.mxu0 %v4434
        %v4838 = vpop.f32.mrf.mxu0
        %v4839 = vadd.f32 %v4790, %v4838
        %v4840 = vpop.f32.mrf.mxu0
        %v4841 = vadd.f32 %v4792, %v4840
        %4842 = vdwg.mxu0
        %4843 = vmatpush.bf16.msra.mxu0 %v4663
        %4844 = vmatpush.bf16.msra.mxu0 %v4662
        %4845 = vmatpush.bf16.msra.mxu0 %v4661
        %4846 = vmatpush.bf16.msra.mxu0 %v4660
        %4847 = vmatpush.bf16.msra.mxu0 %v4659
        %4848 = vmatpush.bf16.msra.mxu0 %v4658
        %4849 = vmatpush.bf16.msra.mxu0 %v4657
        %4850 = vmatpush.bf16.msra.mxu0 %v4656
        %4851 = vmatmul.bf16.gmra.mxu0 %v4407
        %v4852 = vpop.f32.mrf.mxu0
        %v4853 = vadd.f32 %v4804, %v4852
        %v4854 = vpop.f32.mrf.mxu0
        %v4855 = vadd.f32 %v4806, %v4854
        %4856 = vmatmul.bf16.gmra.mxu0 %v4411
        %v4857 = vpop.f32.mrf.mxu0
        %v4858 = vadd.f32 %v4809, %v4857
        %v4859 = vpop.f32.mrf.mxu0
        %v4860 = vadd.f32 %v4811, %v4859
        %4861 = vmatmul.bf16.gmra.mxu0 %v4415
        %v4862 = vpop.f32.mrf.mxu0
        %v4863 = vadd.f32 %v4814, %v4862
        %v4864 = vpop.f32.mrf.mxu0
        %v4865 = vadd.f32 %v4816, %v4864
        %4866 = vmatmul.bf16.gmra.mxu0 %v4419
        %v4867 = vpop.f32.mrf.mxu0
        %v4868 = vadd.f32 %v4819, %v4867
        %v4869 = vpop.f32.mrf.mxu0
        %v4870 = vadd.f32 %v4821, %v4869
        %4871 = vmatmul.bf16.gmra.mxu0 %v4423
        %v4872 = vpop.f32.mrf.mxu0
        %v4873 = vadd.f32 %v4824, %v4872
        %v4874 = vpop.f32.mrf.mxu0
        %v4875 = vadd.f32 %v4826, %v4874
        %4876 = vmatmul.bf16.gmra.mxu0 %v4427
        %v4877 = vpop.f32.mrf.mxu0
        %v4878 = vadd.f32 %v4829, %v4877
        %v4879 = vpop.f32.mrf.mxu0
        %v4880 = vadd.f32 %v4831, %v4879
        %4881 = vmatmul.bf16.gmra.mxu0 %v4431
        %v4882 = vpop.f32.mrf.mxu0
        %v4883 = vadd.f32 %v4834, %v4882
        %v4884 = vpop.f32.mrf.mxu0
        %v4885 = vadd.f32 %v4836, %v4884
        %4886 = vmatmul.bf16.gmra.mxu0 %v4435
        %v4887 = vpop.f32.mrf.mxu0
        %v4888 = vadd.f32 %v4839, %v4887
        %v4889 = vpop.f32.mrf.mxu0
        %v4890 = vadd.f32 %v4841, %v4889
        %4891 = vdwg.mxu0
        %v4892 = vmax.f32 %v4853, 0.0
        %v4893 = vmax.f32 %v4855, 0.0
        %v4894 = vmax.f32 %v4858, 0.0
        %v4895 = vmax.f32 %v4860, 0.0
        %v4896 = vmax.f32 %v4863, 0.0
        %v4897 = vmax.f32 %v4865, 0.0
        %v4898 = vmax.f32 %v4868, 0.0
        %v4899 = vmax.f32 %v4870, 0.0
        %v4900 = vmax.f32 %v4873, 0.0
        %v4901 = vmax.f32 %v4875, 0.0
        %v4902 = vmax.f32 %v4878, 0.0
        %v4903 = vmax.f32 %v4880, 0.0
        %v4904 = vmax.f32 %v4883, 0.0
        %v4905 = vmax.f32 %v4885, 0.0
        %v4906 = vmax.f32 %v4888, 0.0
        %v4907 = vmax.f32 %v4890, 0.0
        %v4908 = vadd.f32 %v3884, %v4892
        %v4909 = vadd.f32 %v3885, %v4893
        %v4910 = vadd.f32 %v3900, %v4894
        %v4911 = vadd.f32 %v3901, %v4895
        %v4912 = vadd.f32 %v3916, %v4896
        %v4913 = vadd.f32 %v3917, %v4897
        %v4914 = vadd.f32 %v3932, %v4898
        %v4915 = vadd.f32 %v3933, %v4899
        %v4916 = vadd.f32 %v3948, %v4900
        %v4917 = vadd.f32 %v3949, %v4901
        %v4918 = vadd.f32 %v3964, %v4902
        %v4919 = vadd.f32 %v3965, %v4903
        %v4920 = vadd.f32 %v3980, %v4904
        %v4921 = vadd.f32 %v3981, %v4905
        %v4922 = vadd.f32 %v3996, %v4906
        %v4923 = vadd.f32 %v3997, %v4907
        %4924 = vadd.xlane.f32.xlu0 %v4908
        %v4925 = vpop.xlane.xlu0 %4924
        %4926 = vadd.xlane.f32.xlu0 %v4909
        %v4927 = vpop.xlane.xlu0 %4926
        %4928 = vadd.xlane.f32.xlu0 %v4910
        %v4929 = vpop.xlane.xlu0 %4928
        %4930 = vadd.xlane.f32.xlu0 %v4911
        %v4931 = vpop.xlane.xlu0 %4930
        %4932 = vadd.xlane.f32.xlu0 %v4912
        %v4933 = vpop.xlane.xlu0 %4932
        %4934 = vadd.xlane.f32.xlu0 %v4913
        %v4935 = vpop.xlane.xlu0 %4934
        %4936 = vadd.xlane.f32.xlu0 %v4914
        %v4937 = vpop.xlane.xlu0 %4936
        %4938 = vadd.xlane.f32.xlu0 %v4915
        %v4939 = vpop.xlane.xlu0 %4938
        %4940 = vadd.xlane.f32.xlu0 %v4916
        %v4941 = vpop.xlane.xlu0 %4940
        %4942 = vadd.xlane.f32.xlu0 %v4917
        %v4943 = vpop.xlane.xlu0 %4942
        %4944 = vadd.xlane.f32.xlu0 %v4918
        %v4945 = vpop.xlane.xlu0 %4944
        %4946 = vadd.xlane.f32.xlu0 %v4919
        %v4947 = vpop.xlane.xlu0 %4946
        %4948 = vadd.xlane.f32.xlu0 %v4920
        %v4949 = vpop.xlane.xlu0 %4948
        %4950 = vadd.xlane.f32.xlu0 %v4921
        %v4951 = vpop.xlane.xlu0 %4950
        %4952 = vadd.xlane.f32.xlu0 %v4922
        %v4953 = vpop.xlane.xlu0 %4952
        %4954 = vadd.xlane.f32.xlu0 %v4923
        %v4955 = vpop.xlane.xlu0 %4954
        %v4956 = vrcp.pop 128.0
        %v4957 = vmul.f32 128.0, %v4956
        %v4958 = vsub.f32 1.0, %v4957
        %v4959 = vmul.f32 %v4956, %v4958
        %v4960 = vadd.f32 %v4956, %v4959
        %vm4961 = vweird.f32 %v4956
        %v4962 = vsel %vm4961, %v4956, %v4960
        %v4963 = vmul.f32 %v4925, %v4962
        %v4964 = vmul.f32 %v4927, %v4962
        %v4965 = vmul.f32 %v4929, %v4962
        %v4966 = vmul.f32 %v4931, %v4962
        %v4967 = vmul.f32 %v4933, %v4962
        %v4968 = vmul.f32 %v4935, %v4962
        %v4969 = vmul.f32 %v4937, %v4962
        %v4970 = vmul.f32 %v4939, %v4962
        %v4971 = vmul.f32 %v4941, %v4962
        %v4972 = vmul.f32 %v4943, %v4962
        %v4973 = vmul.f32 %v4945, %v4962
        %v4974 = vmul.f32 %v4947, %v4962
        %v4975 = vmul.f32 %v4949, %v4962
        %v4976 = vmul.f32 %v4951, %v4962
        %v4977 = vmul.f32 %v4953, %v4962
        %v4978 = vmul.f32 %v4955, %v4962
        %v4979 = vsub.f32 %v4908, %v4963
        %v4980 = vsub.f32 %v4909, %v4964
        %v4981 = vsub.f32 %v4910, %v4965
        %v4982 = vsub.f32 %v4911, %v4966
        %v4983 = vsub.f32 %v4912, %v4967
        %v4984 = vsub.f32 %v4913, %v4968
        %v4985 = vsub.f32 %v4914, %v4969
        %v4986 = vsub.f32 %v4915, %v4970
        %v4987 = vsub.f32 %v4916, %v4971
        %v4988 = vsub.f32 %v4917, %v4972
        %v4989 = vsub.f32 %v4918, %v4973
        %v4990 = vsub.f32 %v4919, %v4974
        %v4991 = vsub.f32 %v4920, %v4975
        %v4992 = vsub.f32 %v4921, %v4976
        %v4993 = vsub.f32 %v4922, %v4977
        %v4994 = vsub.f32 %v4923, %v4978
        %v4995 = vmul.f32 %v4979, %v4979
        %v4996 = vmul.f32 %v4980, %v4980
        %v4997 = vmul.f32 %v4981, %v4981
        %v4998 = vmul.f32 %v4982, %v4982
        %v4999 = vmul.f32 %v4983, %v4983
        %v5000 = vmul.f32 %v4984, %v4984
        %v5001 = vmul.f32 %v4985, %v4985
        %v5002 = vmul.f32 %v4986, %v4986
        %v5003 = vmul.f32 %v4987, %v4987
        %v5004 = vmul.f32 %v4988, %v4988
        %v5005 = vmul.f32 %v4989, %v4989
        %v5006 = vmul.f32 %v4990, %v4990
        %v5007 = vmul.f32 %v4991, %v4991
        %v5008 = vmul.f32 %v4992, %v4992
        %v5009 = vmul.f32 %v4993, %v4993
        %v5010 = vmul.f32 %v4994, %v4994
        %5011 = vadd.xlane.f32.xlu0 %v4995
        %v5012 = vpop.xlane.xlu0 %5011
        %5013 = vadd.xlane.f32.xlu0 %v4996
        %v5014 = vpop.xlane.xlu0 %5013
        %5015 = vadd.xlane.f32.xlu0 %v4997
        %v5016 = vpop.xlane.xlu0 %5015
        %5017 = vadd.xlane.f32.xlu0 %v4998
        %v5018 = vpop.xlane.xlu0 %5017
        %5019 = vadd.xlane.f32.xlu0 %v4999
        %v5020 = vpop.xlane.xlu0 %5019
        %5021 = vadd.xlane.f32.xlu0 %v5000
        %v5022 = vpop.xlane.xlu0 %5021
        %5023 = vadd.xlane.f32.xlu0 %v5001
        %v5024 = vpop.xlane.xlu0 %5023
        %5025 = vadd.xlane.f32.xlu0 %v5002
        %v5026 = vpop.xlane.xlu0 %5025
        %5027 = vadd.xlane.f32.xlu0 %v5003
        %v5028 = vpop.xlane.xlu0 %5027
        %5029 = vadd.xlane.f32.xlu0 %v5004
        %v5030 = vpop.xlane.xlu0 %5029
        %5031 = vadd.xlane.f32.xlu0 %v5005
        %v5032 = vpop.xlane.xlu0 %5031
        %5033 = vadd.xlane.f32.xlu0 %v5006
        %v5034 = vpop.xlane.xlu0 %5033
        %5035 = vadd.xlane.f32.xlu0 %v5007
        %v5036 = vpop.xlane.xlu0 %5035
        %5037 = vadd.xlane.f32.xlu0 %v5008
        %v5038 = vpop.xlane.xlu0 %5037
        %5039 = vadd.xlane.f32.xlu0 %v5009
        %v5040 = vpop.xlane.xlu0 %5039
        %5041 = vadd.xlane.f32.xlu0 %v5010
        %v5042 = vpop.xlane.xlu0 %5041
        %v5043 = vmul.f32 %v5012, %v4962
        %v5044 = vmul.f32 %v5014, %v4962
        %v5045 = vmul.f32 %v5016, %v4962
        %v5046 = vmul.f32 %v5018, %v4962
        %v5047 = vmul.f32 %v5020, %v4962
        %v5048 = vmul.f32 %v5022, %v4962
        %v5049 = vmul.f32 %v5024, %v4962
        %v5050 = vmul.f32 %v5026, %v4962
        %v5051 = vmul.f32 %v5028, %v4962
        %v5052 = vmul.f32 %v5030, %v4962
        %v5053 = vmul.f32 %v5032, %v4962
        %v5054 = vmul.f32 %v5034, %v4962
        %v5055 = vmul.f32 %v5036, %v4962
        %v5056 = vmul.f32 %v5038, %v4962
        %v5057 = vmul.f32 %v5040, %v4962
        %v5058 = vmul.f32 %v5042, %v4962
        %v5059 = vadd.f32 %v5043, 1e-05
        %v5060 = vadd.f32 %v5044, 1e-05
        %v5061 = vadd.f32 %v5045, 1e-05
        %v5062 = vadd.f32 %v5046, 1e-05
        %v5063 = vadd.f32 %v5047, 1e-05
        %v5064 = vadd.f32 %v5048, 1e-05
        %v5065 = vadd.f32 %v5049, 1e-05
        %v5066 = vadd.f32 %v5050, 1e-05
        %v5067 = vadd.f32 %v5051, 1e-05
        %v5068 = vadd.f32 %v5052, 1e-05
        %v5069 = vadd.f32 %v5053, 1e-05
        %v5070 = vadd.f32 %v5054, 1e-05
        %v5071 = vadd.f32 %v5055, 1e-05
        %v5072 = vadd.f32 %v5056, 1e-05
        %v5073 = vadd.f32 %v5057, 1e-05
        %v5074 = vadd.f32 %v5058, 1e-05
        %v5075 = vrsqrt.pop %v5059
        %v5076 = vmul.f32 %v5075, %v5059
        %v5077 = vmul.f32 %v5076, %v5075
        %v5078 = vmul.f32 0.5, %v5077
        %v5079 = vsub.f32 1.5, %v5078
        %v5080 = vmul.f32 %v5075, %v5079
        %vm5081 = vweird.f32 %v5059
        %vm5082 = vweird.f32 %v5075
        %vm5083 = vmor %vm5081, %vm5082
        %v5084 = vsel %vm5083, %v5075, %v5080
        %v5085 = vrsqrt.pop %v5060
        %v5086 = vmul.f32 %v5085, %v5060
        %v5087 = vmul.f32 %v5086, %v5085
        %v5088 = vmul.f32 0.5, %v5087
        %v5089 = vsub.f32 1.5, %v5088
        %v5090 = vmul.f32 %v5085, %v5089
        %vm5091 = vweird.f32 %v5060
        %vm5092 = vweird.f32 %v5085
        %vm5093 = vmor %vm5091, %vm5092
        %v5094 = vsel %vm5093, %v5085, %v5090
        %v5095 = vrsqrt.pop %v5061
        %v5096 = vmul.f32 %v5095, %v5061
        %v5097 = vmul.f32 %v5096, %v5095
        %v5098 = vmul.f32 0.5, %v5097
        %v5099 = vsub.f32 1.5, %v5098
        %v5100 = vmul.f32 %v5095, %v5099
        %vm5101 = vweird.f32 %v5061
        %vm5102 = vweird.f32 %v5095
        %vm5103 = vmor %vm5101, %vm5102
        %v5104 = vsel %vm5103, %v5095, %v5100
        %v5105 = vrsqrt.pop %v5062
        %v5106 = vmul.f32 %v5105, %v5062
        %v5107 = vmul.f32 %v5106, %v5105
        %v5108 = vmul.f32 0.5, %v5107
        %v5109 = vsub.f32 1.5, %v5108
        %v5110 = vmul.f32 %v5105, %v5109
        %vm5111 = vweird.f32 %v5062
        %vm5112 = vweird.f32 %v5105
        %vm5113 = vmor %vm5111, %vm5112
        %v5114 = vsel %vm5113, %v5105, %v5110
        %v5115 = vrsqrt.pop %v5063
        %v5116 = vmul.f32 %v5115, %v5063
        %v5117 = vmul.f32 %v5116, %v5115
        %v5118 = vmul.f32 0.5, %v5117
        %v5119 = vsub.f32 1.5, %v5118
        %v5120 = vmul.f32 %v5115, %v5119
        %vm5121 = vweird.f32 %v5063
        %vm5122 = vweird.f32 %v5115
        %vm5123 = vmor %vm5121, %vm5122
        %v5124 = vsel %vm5123, %v5115, %v5120
        %v5125 = vrsqrt.pop %v5064
        %v5126 = vmul.f32 %v5125, %v5064
        %v5127 = vmul.f32 %v5126, %v5125
        %v5128 = vmul.f32 0.5, %v5127
        %v5129 = vsub.f32 1.5, %v5128
        %v5130 = vmul.f32 %v5125, %v5129
        %vm5131 = vweird.f32 %v5064
        %vm5132 = vweird.f32 %v5125
        %vm5133 = vmor %vm5131, %vm5132
        %v5134 = vsel %vm5133, %v5125, %v5130
        %v5135 = vrsqrt.pop %v5065
        %v5136 = vmul.f32 %v5135, %v5065
        %v5137 = vmul.f32 %v5136, %v5135
        %v5138 = vmul.f32 0.5, %v5137
        %v5139 = vsub.f32 1.5, %v5138
        %v5140 = vmul.f32 %v5135, %v5139
        %vm5141 = vweird.f32 %v5065
        %vm5142 = vweird.f32 %v5135
        %vm5143 = vmor %vm5141, %vm5142
        %v5144 = vsel %vm5143, %v5135, %v5140
        %v5145 = vrsqrt.pop %v5066
        %v5146 = vmul.f32 %v5145, %v5066
        %v5147 = vmul.f32 %v5146, %v5145
        %v5148 = vmul.f32 0.5, %v5147
        %v5149 = vsub.f32 1.5, %v5148
        %v5150 = vmul.f32 %v5145, %v5149
        %vm5151 = vweird.f32 %v5066
        %vm5152 = vweird.f32 %v5145
        %vm5153 = vmor %vm5151, %vm5152
        %v5154 = vsel %vm5153, %v5145, %v5150
        %v5155 = vrsqrt.pop %v5067
        %v5156 = vmul.f32 %v5155, %v5067
        %v5157 = vmul.f32 %v5156, %v5155
        %v5158 = vmul.f32 0.5, %v5157
        %v5159 = vsub.f32 1.5, %v5158
        %v5160 = vmul.f32 %v5155, %v5159
        %vm5161 = vweird.f32 %v5067
        %vm5162 = vweird.f32 %v5155
        %vm5163 = vmor %vm5161, %vm5162
        %v5164 = vsel %vm5163, %v5155, %v5160
        %v5165 = vrsqrt.pop %v5068
        %v5166 = vmul.f32 %v5165, %v5068
        %v5167 = vmul.f32 %v5166, %v5165
        %v5168 = vmul.f32 0.5, %v5167
        %v5169 = vsub.f32 1.5, %v5168
        %v5170 = vmul.f32 %v5165, %v5169
        %vm5171 = vweird.f32 %v5068
        %vm5172 = vweird.f32 %v5165
        %vm5173 = vmor %vm5171, %vm5172
        %v5174 = vsel %vm5173, %v5165, %v5170
        %v5175 = vrsqrt.pop %v5069
        %v5176 = vmul.f32 %v5175, %v5069
        %v5177 = vmul.f32 %v5176, %v5175
        %v5178 = vmul.f32 0.5, %v5177
        %v5179 = vsub.f32 1.5, %v5178
        %v5180 = vmul.f32 %v5175, %v5179
        %vm5181 = vweird.f32 %v5069
        %vm5182 = vweird.f32 %v5175
        %vm5183 = vmor %vm5181, %vm5182
        %v5184 = vsel %vm5183, %v5175, %v5180
        %v5185 = vrsqrt.pop %v5070
        %v5186 = vmul.f32 %v5185, %v5070
        %v5187 = vmul.f32 %v5186, %v5185
        %v5188 = vmul.f32 0.5, %v5187
        %v5189 = vsub.f32 1.5, %v5188
        %v5190 = vmul.f32 %v5185, %v5189
        %vm5191 = vweird.f32 %v5070
        %vm5192 = vweird.f32 %v5185
        %vm5193 = vmor %vm5191, %vm5192
        %v5194 = vsel %vm5193, %v5185, %v5190
        %v5195 = vrsqrt.pop %v5071
        %v5196 = vmul.f32 %v5195, %v5071
        %v5197 = vmul.f32 %v5196, %v5195
        %v5198 = vmul.f32 0.5, %v5197
        %v5199 = vsub.f32 1.5, %v5198
        %v5200 = vmul.f32 %v5195, %v5199
        %vm5201 = vweird.f32 %v5071
        %vm5202 = vweird.f32 %v5195
        %vm5203 = vmor %vm5201, %vm5202
        %v5204 = vsel %vm5203, %v5195, %v5200
        %v5205 = vrsqrt.pop %v5072
        %v5206 = vmul.f32 %v5205, %v5072
        %v5207 = vmul.f32 %v5206, %v5205
        %v5208 = vmul.f32 0.5, %v5207
        %v5209 = vsub.f32 1.5, %v5208
        %v5210 = vmul.f32 %v5205, %v5209
        %vm5211 = vweird.f32 %v5072
        %vm5212 = vweird.f32 %v5205
        %vm5213 = vmor %vm5211, %vm5212
        %v5214 = vsel %vm5213, %v5205, %v5210
        %v5215 = vrsqrt.pop %v5073
        %v5216 = vmul.f32 %v5215, %v5073
        %v5217 = vmul.f32 %v5216, %v5215
        %v5218 = vmul.f32 0.5, %v5217
        %v5219 = vsub.f32 1.5, %v5218
        %v5220 = vmul.f32 %v5215, %v5219
        %vm5221 = vweird.f32 %v5073
        %vm5222 = vweird.f32 %v5215
        %vm5223 = vmor %vm5221, %vm5222
        %v5224 = vsel %vm5223, %v5215, %v5220
        %v5225 = vrsqrt.pop %v5074
        %v5226 = vmul.f32 %v5225, %v5074
        %v5227 = vmul.f32 %v5226, %v5225
        %v5228 = vmul.f32 0.5, %v5227
        %v5229 = vsub.f32 1.5, %v5228
        %v5230 = vmul.f32 %v5225, %v5229
        %vm5231 = vweird.f32 %v5074
        %vm5232 = vweird.f32 %v5225
        %vm5233 = vmor %vm5231, %vm5232
        %v5234 = vsel %vm5233, %v5225, %v5230
        %v5235 = vmul.f32 %v4979, %v5084
        %v5236 = vmul.f32 %v4980, %v5094
        %v5237 = vmul.f32 %v4981, %v5104
        %v5238 = vmul.f32 %v4982, %v5114
        %v5239 = vmul.f32 %v4983, %v5124
        %v5240 = vmul.f32 %v4984, %v5134
        %v5241 = vmul.f32 %v4985, %v5144
        %v5242 = vmul.f32 %v4986, %v5154
        %v5243 = vmul.f32 %v4987, %v5164
        %v5244 = vmul.f32 %v4988, %v5174
        %v5245 = vmul.f32 %v4989, %v5184
        %v5246 = vmul.f32 %v4990, %v5194
        %v5247 = vmul.f32 %v4991, %v5204
        %v5248 = vmul.f32 %v4992, %v5214
        %v5249 = vmul.f32 %v4993, %v5224
        %v5250 = vmul.f32 %v4994, %v5234
        %v5251 = vld [vmem:[%s8] sm:$0x1]
        %v5253 = vperm.slane %v5251, 0
        %v5255 = vmul.f32 %v5235, %v5253
        %v5256 = vmul.f32 %v5236, %v5253
        %v5257 = vmul.f32 %v5237, %v5253
        %v5258 = vmul.f32 %v5238, %v5253
        %v5259 = vmul.f32 %v5239, %v5253
        %v5260 = vmul.f32 %v5240, %v5253
        %v5261 = vmul.f32 %v5241, %v5253
        %v5262 = vmul.f32 %v5242, %v5253
        %v5263 = vmul.f32 %v5243, %v5253
        %v5264 = vmul.f32 %v5244, %v5253
        %v5265 = vmul.f32 %v5245, %v5253
        %v5266 = vmul.f32 %v5246, %v5253
        %v5267 = vmul.f32 %v5247, %v5253
        %v5268 = vmul.f32 %v5248, %v5253
        %v5269 = vmul.f32 %v5249, %v5253
        %v5270 = vmul.f32 %v5250, %v5253
        %v5271 = vld [vmem:[%s9] sm:$0x1]
        %v5273 = vperm.slane %v5271, 0
        %v5275 = vadd.f32 %v5255, %v5273
        %v5276 = vadd.f32 %v5256, %v5273
        %v5277 = vadd.f32 %v5257, %v5273
        %v5278 = vadd.f32 %v5258, %v5273
        %v5279 = vadd.f32 %v5259, %v5273
        %v5280 = vadd.f32 %v5260, %v5273
        %v5281 = vadd.f32 %v5261, %v5273
        %v5282 = vadd.f32 %v5262, %v5273
        %v5283 = vadd.f32 %v5263, %v5273
        %v5284 = vadd.f32 %v5264, %v5273
        %v5285 = vadd.f32 %v5265, %v5273
        %v5286 = vadd.f32 %v5266, %v5273
        %v5287 = vadd.f32 %v5267, %v5273
        %v5288 = vadd.f32 %v5268, %v5273
        %v5289 = vadd.f32 %v5269, %v5273
        %v5290 = vadd.f32 %v5270, %v5273
        %v5291 = vadd.f32 %v3884, %v5275
        %v5292 = vadd.f32 %v3885, %v5276
        %v5293 = vadd.f32 %v3900, %v5277
        %v5294 = vadd.f32 %v3901, %v5278
        %v5295 = vadd.f32 %v3916, %v5279
        %v5296 = vadd.f32 %v3917, %v5280
        %v5297 = vadd.f32 %v3932, %v5281
        %v5298 = vadd.f32 %v3933, %v5282
        %v5299 = vadd.f32 %v3948, %v5283
        %v5300 = vadd.f32 %v3949, %v5284
        %v5301 = vadd.f32 %v3964, %v5285
        %v5302 = vadd.f32 %v3965, %v5286
        %v5303 = vadd.f32 %v3980, %v5287
        %v5304 = vadd.f32 %v3981, %v5288
        %v5305 = vadd.f32 %v3996, %v5289
        %v5306 = vadd.f32 %v3997, %v5290
        %v5307 = vmul.f32 %v5291, %v5291
        %v5308 = vmul.f32 %v5292, %v5292
        %v5309 = vmul.f32 %v5293, %v5293
        %v5310 = vmul.f32 %v5294, %v5294
        %v5311 = vmul.f32 %v5295, %v5295
        %v5312 = vmul.f32 %v5296, %v5296
        %v5313 = vmul.f32 %v5297, %v5297
        %v5314 = vmul.f32 %v5298, %v5298
        %v5315 = vmul.f32 %v5299, %v5299
        %v5316 = vmul.f32 %v5300, %v5300
        %v5317 = vmul.f32 %v5301, %v5301
        %v5318 = vmul.f32 %v5302, %v5302
        %v5319 = vmul.f32 %v5303, %v5303
        %v5320 = vmul.f32 %v5304, %v5304
        %v5321 = vmul.f32 %v5305, %v5305
        %v5322 = vmul.f32 %v5306, %v5306
        %v5323 = vadd.f32 %v5307, %v5308
        %v5324 = vrot.slane %v5323, 4
        %v5325 = vadd.f32 %v5323, %v5324
        %v5326 = vrot.slane %v5325, 2
        %v5327 = vadd.f32 %v5325, %v5326
        %v5328 = vrot.slane %v5327, 1
        %v5329 = vadd.f32 %v5327, %v5328
        %v5330 = vadd.f32 %v5309, %v5310
        %v5331 = vrot.slane %v5330, 4
        %v5332 = vadd.f32 %v5330, %v5331
        %v5333 = vrot.slane %v5332, 2
        %v5334 = vadd.f32 %v5332, %v5333
        %v5335 = vrot.slane %v5334, 1
        %v5336 = vadd.f32 %v5334, %v5335
        %v5337 = vadd.f32 %v5311, %v5312
        %v5338 = vrot.slane %v5337, 4
        %v5339 = vadd.f32 %v5337, %v5338
        %v5340 = vrot.slane %v5339, 2
        %v5341 = vadd.f32 %v5339, %v5340
        %v5342 = vrot.slane %v5341, 1
        %v5343 = vadd.f32 %v5341, %v5342
        %v5344 = vadd.f32 %v5313, %v5314
        %v5345 = vrot.slane %v5344, 4
        %v5346 = vadd.f32 %v5344, %v5345
        %v5347 = vrot.slane %v5346, 2
        %v5348 = vadd.f32 %v5346, %v5347
        %v5349 = vrot.slane %v5348, 1
        %v5350 = vadd.f32 %v5348, %v5349
        %v5351 = vadd.f32 %v5315, %v5316
        %v5352 = vrot.slane %v5351, 4
        %v5353 = vadd.f32 %v5351, %v5352
        %v5354 = vrot.slane %v5353, 2
        %v5355 = vadd.f32 %v5353, %v5354
        %v5356 = vrot.slane %v5355, 1
        %v5357 = vadd.f32 %v5355, %v5356
        %v5358 = vadd.f32 %v5317, %v5318
        %v5359 = vrot.slane %v5358, 4
        %v5360 = vadd.f32 %v5358, %v5359
        %v5361 = vrot.slane %v5360, 2
        %v5362 = vadd.f32 %v5360, %v5361
        %v5363 = vrot.slane %v5362, 1
        %v5364 = vadd.f32 %v5362, %v5363
        %v5365 = vadd.f32 %v5319, %v5320
        %v5366 = vrot.slane %v5365, 4
        %v5367 = vadd.f32 %v5365, %v5366
        %v5368 = vrot.slane %v5367, 2
        %v5369 = vadd.f32 %v5367, %v5368
        %v5370 = vrot.slane %v5369, 1
        %v5371 = vadd.f32 %v5369, %v5370
        %v5372 = vadd.f32 %v5321, %v5322
        %v5373 = vrot.slane %v5372, 4
        %v5374 = vadd.f32 %v5372, %v5373
        %v5375 = vrot.slane %v5374, 2
        %v5376 = vadd.f32 %v5374, %v5375
        %v5377 = vrot.slane %v5376, 1
        %v5378 = vadd.f32 %v5376, %v5377
        %v5379 = vrsqrt.pop %v5329
        %v5380 = vmul.f32 %v5379, %v5329
        %v5381 = vmul.f32 %v5380, %v5379
        %v5382 = vmul.f32 0.5, %v5381
        %v5383 = vsub.f32 1.5, %v5382
        %v5384 = vmul.f32 %v5379, %v5383
        %v5385 = vmul.f32 %v5329, %v5384
        %vm5386 = vcmp.eq.f32.partialorder %v5329, inf
        %v5387 = vsel %vm5386, %v5329, %v5385
        %vm5388 = vcmp.eq.f32.partialorder %v5329, 0.0
        %v5389 = vand.u32 %v5329, 2147483648
        %v5390 = vsel %vm5388, %v5389, %v5387
        %v5391 = vrsqrt.pop %v5336
        %v5392 = vmul.f32 %v5391, %v5336
        %v5393 = vmul.f32 %v5392, %v5391
        %v5394 = vmul.f32 0.5, %v5393
        %v5395 = vsub.f32 1.5, %v5394
        %v5396 = vmul.f32 %v5391, %v5395
        %v5397 = vmul.f32 %v5336, %v5396
        %vm5398 = vcmp.eq.f32.partialorder %v5336, inf
        %v5399 = vsel %vm5398, %v5336, %v5397
        %vm5400 = vcmp.eq.f32.partialorder %v5336, 0.0
        %v5401 = vand.u32 %v5336, 2147483648
        %v5402 = vsel %vm5400, %v5401, %v5399
        %v5403 = vrsqrt.pop %v5343
        %v5404 = vmul.f32 %v5403, %v5343
        %v5405 = vmul.f32 %v5404, %v5403
        %v5406 = vmul.f32 0.5, %v5405
        %v5407 = vsub.f32 1.5, %v5406
        %v5408 = vmul.f32 %v5403, %v5407
        %v5409 = vmul.f32 %v5343, %v5408
        %vm5410 = vcmp.eq.f32.partialorder %v5343, inf
        %v5411 = vsel %vm5410, %v5343, %v5409
        %vm5412 = vcmp.eq.f32.partialorder %v5343, 0.0
        %v5413 = vand.u32 %v5343, 2147483648
        %v5414 = vsel %vm5412, %v5413, %v5411
        %v5415 = vrsqrt.pop %v5350
        %v5416 = vmul.f32 %v5415, %v5350
        %v5417 = vmul.f32 %v5416, %v5415
        %v5418 = vmul.f32 0.5, %v5417
        %v5419 = vsub.f32 1.5, %v5418
        %v5420 = vmul.f32 %v5415, %v5419
        %v5421 = vmul.f32 %v5350, %v5420
        %vm5422 = vcmp.eq.f32.partialorder %v5350, inf
        %v5423 = vsel %vm5422, %v5350, %v5421
        %vm5424 = vcmp.eq.f32.partialorder %v5350, 0.0
        %v5425 = vand.u32 %v5350, 2147483648
        %v5426 = vsel %vm5424, %v5425, %v5423
        %v5427 = vrsqrt.pop %v5357
        %v5428 = vmul.f32 %v5427, %v5357
        %v5429 = vmul.f32 %v5428, %v5427
        %v5430 = vmul.f32 0.5, %v5429
        %v5431 = vsub.f32 1.5, %v5430
        %v5432 = vmul.f32 %v5427, %v5431
        %v5433 = vmul.f32 %v5357, %v5432
        %vm5434 = vcmp.eq.f32.partialorder %v5357, inf
        %v5435 = vsel %vm5434, %v5357, %v5433
        %vm5436 = vcmp.eq.f32.partialorder %v5357, 0.0
        %v5437 = vand.u32 %v5357, 2147483648
        %v5438 = vsel %vm5436, %v5437, %v5435
        %v5439 = vrsqrt.pop %v5364
        %v5440 = vmul.f32 %v5439, %v5364
        %v5441 = vmul.f32 %v5440, %v5439
        %v5442 = vmul.f32 0.5, %v5441
        %v5443 = vsub.f32 1.5, %v5442
        %v5444 = vmul.f32 %v5439, %v5443
        %v5445 = vmul.f32 %v5364, %v5444
        %vm5446 = vcmp.eq.f32.partialorder %v5364, inf
        %v5447 = vsel %vm5446, %v5364, %v5445
        %vm5448 = vcmp.eq.f32.partialorder %v5364, 0.0
        %v5449 = vand.u32 %v5364, 2147483648
        %v5450 = vsel %vm5448, %v5449, %v5447
        %v5451 = vrsqrt.pop %v5371
        %v5452 = vmul.f32 %v5451, %v5371
        %v5453 = vmul.f32 %v5452, %v5451
        %v5454 = vmul.f32 0.5, %v5453
        %v5455 = vsub.f32 1.5, %v5454
        %v5456 = vmul.f32 %v5451, %v5455
        %v5457 = vmul.f32 %v5371, %v5456
        %vm5458 = vcmp.eq.f32.partialorder %v5371, inf
        %v5459 = vsel %vm5458, %v5371, %v5457
        %vm5460 = vcmp.eq.f32.partialorder %v5371, 0.0
        %v5461 = vand.u32 %v5371, 2147483648
        %v5462 = vsel %vm5460, %v5461, %v5459
        %v5463 = vrsqrt.pop %v5378
        %v5464 = vmul.f32 %v5463, %v5378
        %v5465 = vmul.f32 %v5464, %v5463
        %v5466 = vmul.f32 0.5, %v5465
        %v5467 = vsub.f32 1.5, %v5466
        %v5468 = vmul.f32 %v5463, %v5467
        %v5469 = vmul.f32 %v5378, %v5468
        %vm5470 = vcmp.eq.f32.partialorder %v5378, inf
        %v5471 = vsel %vm5470, %v5378, %v5469
        %vm5472 = vcmp.eq.f32.partialorder %v5378, 0.0
        %v5473 = vand.u32 %v5378, 2147483648
        %v5474 = vsel %vm5472, %v5473, %v5471
        %v5475 = vmax.f32 %v5390, 1e-12
        %v5476 = vmax.f32 %v5402, 1e-12
        %v5477 = vmax.f32 %v5414, 1e-12
        %v5478 = vmax.f32 %v5426, 1e-12
        %v5479 = vmax.f32 %v5438, 1e-12
        %v5480 = vmax.f32 %v5450, 1e-12
        %v5481 = vmax.f32 %v5462, 1e-12
        %v5482 = vmax.f32 %v5474, 1e-12
        %v5483 = vrcp.pop %v5475
        %v5484 = vmul.f32 %v5475, %v5483
        %v5485 = vsub.f32 1.0, %v5484
        %v5486 = vmul.f32 %v5483, %v5485
        %v5487 = vadd.f32 %v5483, %v5486
        %vm5488 = vweird.f32 %v5475
        %vm5489 = vweird.f32 %v5483
        %vm5490 = vmor %vm5488, %vm5489
        %v5491 = vsel %vm5490, %v5483, %v5487
        %v5492 = vand.u32 2147483647, %v5475
        %vm5493 = vcmp.eq.f32.partialorder %v5492, 8.507059e+37
        %v5494 = vand.u32 %v5475, 2147483648
        %v5495 = vor.u32 1.1754944e-38, %v5494
        %v5496 = vsel %vm5493, %v5495, %v5491
        %v5497 = vmul.f32 %v5291, %v5496
        %v5498 = vmul.f32 %v5292, %v5496
        %v5499 = vrcp.pop %v5476
        %v5500 = vmul.f32 %v5476, %v5499
        %v5501 = vsub.f32 1.0, %v5500
        %v5502 = vmul.f32 %v5499, %v5501
        %v5503 = vadd.f32 %v5499, %v5502
        %vm5504 = vweird.f32 %v5476
        %vm5505 = vweird.f32 %v5499
        %vm5506 = vmor %vm5504, %vm5505
        %v5507 = vsel %vm5506, %v5499, %v5503
        %v5508 = vand.u32 2147483647, %v5476
        %vm5509 = vcmp.eq.f32.partialorder %v5508, 8.507059e+37
        %v5510 = vand.u32 %v5476, 2147483648
        %v5511 = vor.u32 1.1754944e-38, %v5510
        %v5512 = vsel %vm5509, %v5511, %v5507
        %v5513 = vmul.f32 %v5293, %v5512
        %v5514 = vmul.f32 %v5294, %v5512
        %v5515 = vrcp.pop %v5477
        %v5516 = vmul.f32 %v5477, %v5515
        %v5517 = vsub.f32 1.0, %v5516
        %v5518 = vmul.f32 %v5515, %v5517
        %v5519 = vadd.f32 %v5515, %v5518
        %vm5520 = vweird.f32 %v5477
        %vm5521 = vweird.f32 %v5515
        %vm5522 = vmor %vm5520, %vm5521
        %v5523 = vsel %vm5522, %v5515, %v5519
        %v5524 = vand.u32 2147483647, %v5477
        %vm5525 = vcmp.eq.f32.partialorder %v5524, 8.507059e+37
        %v5526 = vand.u32 %v5477, 2147483648
        %v5527 = vor.u32 1.1754944e-38, %v5526
        %v5528 = vsel %vm5525, %v5527, %v5523
        %v5529 = vmul.f32 %v5295, %v5528
        %v5530 = vmul.f32 %v5296, %v5528
        %v5531 = vrcp.pop %v5478
        %v5532 = vmul.f32 %v5478, %v5531
        %v5533 = vsub.f32 1.0, %v5532
        %v5534 = vmul.f32 %v5531, %v5533
        %v5535 = vadd.f32 %v5531, %v5534
        %vm5536 = vweird.f32 %v5478
        %vm5537 = vweird.f32 %v5531
        %vm5538 = vmor %vm5536, %vm5537
        %v5539 = vsel %vm5538, %v5531, %v5535
        %v5540 = vand.u32 2147483647, %v5478
        %vm5541 = vcmp.eq.f32.partialorder %v5540, 8.507059e+37
        %v5542 = vand.u32 %v5478, 2147483648
        %v5543 = vor.u32 1.1754944e-38, %v5542
        %v5544 = vsel %vm5541, %v5543, %v5539
        %v5545 = vmul.f32 %v5297, %v5544
        %v5546 = vmul.f32 %v5298, %v5544
        %v5547 = vrcp.pop %v5479
        %v5548 = vmul.f32 %v5479, %v5547
        %v5549 = vsub.f32 1.0, %v5548
        %v5550 = vmul.f32 %v5547, %v5549
        %v5551 = vadd.f32 %v5547, %v5550
        %vm5552 = vweird.f32 %v5479
        %vm5553 = vweird.f32 %v5547
        %vm5554 = vmor %vm5552, %vm5553
        %v5555 = vsel %vm5554, %v5547, %v5551
        %v5556 = vand.u32 2147483647, %v5479
        %vm5557 = vcmp.eq.f32.partialorder %v5556, 8.507059e+37
        %v5558 = vand.u32 %v5479, 2147483648
        %v5559 = vor.u32 1.1754944e-38, %v5558
        %v5560 = vsel %vm5557, %v5559, %v5555
        %v5561 = vmul.f32 %v5299, %v5560
        %v5562 = vmul.f32 %v5300, %v5560
        %v5563 = vrcp.pop %v5480
        %v5564 = vmul.f32 %v5480, %v5563
        %v5565 = vsub.f32 1.0, %v5564
        %v5566 = vmul.f32 %v5563, %v5565
        %v5567 = vadd.f32 %v5563, %v5566
        %vm5568 = vweird.f32 %v5480
        %vm5569 = vweird.f32 %v5563
        %vm5570 = vmor %vm5568, %vm5569
        %v5571 = vsel %vm5570, %v5563, %v5567
        %v5572 = vand.u32 2147483647, %v5480
        %vm5573 = vcmp.eq.f32.partialorder %v5572, 8.507059e+37
        %v5574 = vand.u32 %v5480, 2147483648
        %v5575 = vor.u32 1.1754944e-38, %v5574
        %v5576 = vsel %vm5573, %v5575, %v5571
        %v5577 = vmul.f32 %v5301, %v5576
        %v5578 = vmul.f32 %v5302, %v5576
        %v5579 = vrcp.pop %v5481
        %v5580 = vmul.f32 %v5481, %v5579
        %v5581 = vsub.f32 1.0, %v5580
        %v5582 = vmul.f32 %v5579, %v5581
        %v5583 = vadd.f32 %v5579, %v5582
        %vm5584 = vweird.f32 %v5481
        %vm5585 = vweird.f32 %v5579
        %vm5586 = vmor %vm5584, %vm5585
        %v5587 = vsel %vm5586, %v5579, %v5583
        %v5588 = vand.u32 2147483647, %v5481
        %vm5589 = vcmp.eq.f32.partialorder %v5588, 8.507059e+37
        %v5590 = vand.u32 %v5481, 2147483648
        %v5591 = vor.u32 1.1754944e-38, %v5590
        %v5592 = vsel %vm5589, %v5591, %v5587
        %v5593 = vmul.f32 %v5303, %v5592
        %v5594 = vmul.f32 %v5304, %v5592
        %v5595 = vrcp.pop %v5482
        %v5596 = vmul.f32 %v5482, %v5595
        %v5597 = vsub.f32 1.0, %v5596
        %v5598 = vmul.f32 %v5595, %v5597
        %v5599 = vadd.f32 %v5595, %v5598
        %vm5600 = vweird.f32 %v5482
        %vm5601 = vweird.f32 %v5595
        %vm5602 = vmor %vm5600, %vm5601
        %v5603 = vsel %vm5602, %v5595, %v5599
        %v5604 = vand.u32 2147483647, %v5482
        %vm5605 = vcmp.eq.f32.partialorder %v5604, 8.507059e+37
        %v5606 = vand.u32 %v5482, 2147483648
        %v5607 = vor.u32 1.1754944e-38, %v5606
        %v5608 = vsel %vm5605, %v5607, %v5603
        %v5609 = vmul.f32 %v5305, %v5608
        %v5610 = vmul.f32 %v5306, %v5608
        %5611 = vst [vmem:[%s489] sm:$0xff] %v5497
        %5612 = vst [vmem:[%s489 + $0x8] sm:$0xff] %v5498
        %5613 = vst [vmem:[%s489 + $0x10] sm:$0xff] %v5513
        %5614 = vst [vmem:[%s489 + $0x18] sm:$0xff] %v5514
        %5615 = vst [vmem:[%s489 + $0x20] sm:$0xff] %v5529
        %5616 = vst [vmem:[%s489 + $0x28] sm:$0xff] %v5530
        %5617 = vst [vmem:[%s489 + $0x30] sm:$0xff] %v5545
        %5618 = vst [vmem:[%s489 + $0x38] sm:$0xff] %v5546
        %5619 = vst [vmem:[%s489 + $0x40] sm:$0xff] %v5561
        %5620 = vst [vmem:[%s489 + $0x48] sm:$0xff] %v5562
        %5621 = vst [vmem:[%s489 + $0x50] sm:$0xff] %v5577
        %5622 = vst [vmem:[%s489 + $0x58] sm:$0xff] %v5578
        %5623 = vst [vmem:[%s489 + $0x60] sm:$0xff] %v5593
        %5624 = vst [vmem:[%s489 + $0x68] sm:$0xff] %v5594
        %5625 = vst [vmem:[%s489 + $0x70] sm:$0xff] %v5609
        %5626 = vst [vmem:[%s489 + $0x78] sm:$0xff] %v5610
        %s5627 = sand.u32 %s260, 1
        %s5628 = scalar_lea.sflag [#allocation4], %s5627
        %s5629 = sand.u32 %s260, 1
        %s5630 = smul.addr %s5629, 128
        %s5631 = scalar_lea.vmem [#allocation13], %s5630
        // Predicated region
        $region85: #{tpu_custom_call.1} parent=59 // pred_check
          %p5632 = pneg %p270
        $region86: #{tpu_custom_call.1} parent=59 // pred_check_branch
          %5634 = sbr.rel (%p5632) target = $region88
        $region87: #{tpu_custom_call.1} parent=59 // pred_region
          %s5635 = smul.u32 8, %s32
          %5637 = vsyncadd %s5628, 0
          %s5638 = smul.addr %s5635, 2
          %s5639 = smul.addr %s5638, 8
          %s5640 = scalar_lea.hbm %s10, %s5639
          %s5641 = sshll.u32 %s5631, 4
          %s5642 = int_to_ptr.vmem [resolvable:$true] %s5641
          %s5643 = sshll.u32 %s5640, 4
          %s5644 = int_to_ptr.hbm [resolvable:$true] %s5643
          %5649 = dma.vmem_to_hbm [thread:$0]  %s5642, 2048, %s5644, %s5628, 128, 128, 8
        $region88: #{tpu_custom_call.1} parent=59 // pred_fallthru
          _
      $region60: #{tpu_custom_call.1} parent=5 // pred_fallthru
        _
      %p5650 = scmp.le.s32.totalorder 2, %s27
      // Predicated region
      $region89: #{tpu_custom_call.1} parent=5 // pred_check
        %p5651 = pneg %p5650
      $region90: #{tpu_custom_call.1} parent=5 // pred_check_branch
        %5653 = sbr.rel (%p5651) target = $region92
      $region91: #{tpu_custom_call.1} parent=5 // pred_region
        %s5654 = ssub.s32 %s27, 2
        // Predicated region
        $region93: #{tpu_custom_call.1} parent=91 // pred_check
          %p5655 = pneg %p276
        $region94: #{tpu_custom_call.1} parent=91 // pred_check_branch
          %5657 = sbr.rel (%p5655) target = $region96
        $region95: #{tpu_custom_call.1} parent=91 // pred_region
          %s5658 = sand.u32 %s261, 1
          %s5659 = scalar_lea.sflag [#allocation4], %s5658
          %s5660 = sand.u32 %s261, 1
          %s5661 = smul.addr %s5660, 128
          %s5662 = scalar_lea.vmem [#allocation13], %s5661
          %5664 = dma.done %s5659, 2048
        $region96: #{tpu_custom_call.1} parent=91 // pred_fallthru
          _
      $region92: #{tpu_custom_call.1} parent=5 // pred_fallthru
        _
    $region6: #{tpu_custom_call.1} parent=1 // loop_footer
      %s31 = sadd.s32 1, %s27
    $region7: #{tpu_custom_call.1} parent=1 // loop_footer_branch
      %26 = sbr.rel target = $region3
    $region8: #{tpu_custom_call.1} parent=1 // loop_exit
      _
    %5665 = vsyncpa [#allocation3], 1
    %s5666 = scalar_lea.sflag [#allocation3], 1
    %5667 = vsyncpa %s5666, 1
    %5668 = vsyncpa [#allocation6], 1
    %s5669 = scalar_lea.sflag [#allocation6], 1
    %5670 = vsyncpa %s5669, 1
    %5671 = vsyncpa [#allocation9], 1
    %5672 = vsyncpa [#allocation12], 1
    %5673 = vsyncpa [#allocation4], 1
    %s5674 = scalar_lea.sflag [#allocation4], 1
    %5675 = vsyncpa %s5674, 1

</llo_original>
